<compile_context>
chip_gen: v7x
topology: tpu7x:2x2x1
jax: 0.10.0
libtpu: 0.0.40
codegen_flags: <defaults>
</compile_context>

<pallas_src>
import functools

import jax
import jax.numpy as jnp
from jax import lax
from jax.experimental import pallas as pl
from jax.experimental.pallas import tpu as pltpu

SELECT_NUM = 10
_VMEM_LIMIT = 48 * 1024 * 1024  # < v7x's 64 MiB physical per-TensorCore VMEM


def _round_up(x, m):
    return ((x + m - 1) // m) * m


# ---------------------------------------------------------------------------
# Slab geometry.
#
# Each image is stored as a flat, zero-padded row slab of shape (stride, C):
# pixel (h, w) of the HxW image lives at slab row OFF + h*P + w with P = W + 2
# and OFF = round_up(P + 1, 8) (so slab writes are sublane-aligned).  All other
# rows (halo, "garbage" columns w in [W, P), tail padding) are zero.  A 3x3
# "SAME" conv then becomes 9 statically shifted row-views of the slab, each a
# plain MXU matmul.
# ---------------------------------------------------------------------------
def _geom(H, W):
    P = W + 2
    hp = H * P
    hp_pad = _round_up(hp, 8)
    off = _round_up(P + 1, 8)
    stride = _round_up(off + hp_pad + P + 2, 8)
    return P, hp, hp_pad, off, stride


def make_slab(x_nhwc):
    """(B,H,W,C) float -> (B, stride, C) bf16 zero-padded slab (see _geom)."""
    B, H, W, C = x_nhwc.shape
    P, hp, hp_pad, off, stride = _geom(H, W)
    xb = jnp.pad(x_nhwc.astype(jnp.bfloat16), ((0, 0), (1, 1), (1, 1), (0, 0)))
    xb = xb.reshape(B, (H + 2) * P, C)
    front = off - (P + 1)
    tail = stride - front - (H + 2) * P
    return jnp.pad(xb, ((0, 0), (front, tail), (0, 0)))


def flat_to_nhwc(flat, H, W, cout):
    """Masked flat conv output (B, hp_pad, Np) -> (B, H, W, cout)."""
    B = flat.shape[0]
    P, hp, _, _, _ = _geom(H, W)
    return flat[:, :hp, :cout].reshape(B, H, P, cout)[:, :, :W, :]


def flat_to_mean(flat, H, W, cout):
    """Spatial mean of a masked flat conv output -> (B, cout) f32."""
    # garbage rows are already zeroed inside the kernel -> plain sum / (H*W)
    return flat.astype(jnp.float32).sum(axis=1)[:, :cout] / float(H * W)


# ---------------------------------------------------------------------------
# Fused 3x3 "SAME" convolution kernel.
#
# x_ref : (Bg, stride, Cin)  bf16 slab (all images of this group, full Cin)
# w_ref : (9, Cin, tn)       bf16 tap weights for this Cout tile
# b_ref : (1, tn)            f32 bias
# m_ref : (Bg*hp_pad, 1)     f32 validity mask (1 = real pixel row)
# o_ref : (Bg, hp_pad|stride, tn) bf16  -- flat masked output, or next-layer slab
# acc   : (Bg*hp_pad, tn)    f32 VMEM accumulator
# ---------------------------------------------------------------------------
def _conv3x3_kernel(x_ref, w_ref, b_ref, m_ref, o_ref, acc_ref, *,
                    n_img, hp_pad, P, off, relu, out_slab):
    rows = n_img * hp_pad
    rb = off - (P + 1)                          # static read base
    for t in range(9):                          # 9 taps, each batched over all images
        dy, dx = divmod(t, 3)
        xs = x_ref[:, pl.ds(rb + dy * P + dx, hp_pad), :].reshape(rows, -1)
        d = jnp.dot(xs, w_ref[t], preferred_element_type=jnp.float32)   # MXU, f32 acc
        if t == 0:
            acc_ref[...] = d
        else:
            acc_ref[...] += d
    r = acc_ref[...] + b_ref[...]
    if relu:
        r = jnp.maximum(r, 0.0)
    r = r * m_ref[...]                          # zero garbage columns / tail rows
    r = r.astype(o_ref.dtype).reshape(n_img, hp_pad, -1)
    if out_slab:
        # write directly into the next layer's zero-padded slab (aligned: off % 8 == 0)
        o_ref[...] = jnp.zeros_like(o_ref)
        o_ref[:, pl.ds(off, hp_pad), :] = r
    else:
        o_ref[...] = r


def conv3x3_slab(x_slab, H, W, w9, b, *, relu=False, out_slab=False,
                 tn=None, n_groups=None):
    """y = relu?(conv3x3_same(x) + b) on a slab input.

    x_slab: (B, stride, Cin_slab) bf16 slab (from make_slab or a previous out_slab=True call)
    w9:     (9, Cin, Cout)  (Cin <= Cin_slab; extra slab channels are zero and get zero weights)
    Returns (B, stride, Np) slab if out_slab else a masked flat (B, hp_pad, Np) map.
    """
    B, stride, cin_slab = x_slab.shape
    P, hp, hp_pad, off, stride_ref = _geom(H, W)
    assert stride == stride_ref, "input slab geometry mismatch"
    assert w9.shape[0] == 9
    cin_w, cout = w9.shape[1], w9.shape[2]
    assert cin_w <= cin_slab

    wb = w9.astype(jnp.bfloat16)
    if cin_w < cin_slab:                        # chained slab may carry zero-padded channels
        wb = jnp.pad(wb, ((0, 0), (0, cin_slab - cin_w), (0, 0)))
    Np = _round_up(cout, 128)                   # lane-dense output
    bb = b.astype(jnp.float32)
    if Np != cout:
        wb = jnp.pad(wb, ((0, 0), (0, 0), (0, Np - cout)))
        bb = jnp.pad(bb, (0, Np - cout))

    if tn is None:
        tn = 256 if Np % 256 == 0 else 128
    assert Np % tn == 0 and tn % 128 == 0
    n_n = Np // tn

    # If only one Cout tile, split the image axis so v7x's two TensorCores both run
    # and the slab DMA pipelines against compute on v5e/v6e.
    if n_groups is None:
        n_groups = 2 if (n_n == 1 and B % 2 == 0 and B >= 2) else 1
    G = n_groups
    assert B % G == 0
    Bg = B // G
    rows = Bg * hp_pad

    # validity mask (1 = real pixel row, 0 = garbage column / tail padding)
    r_idx = jnp.arange(hp_pad)
    mrow = ((r_idx < hp) & ((r_idx % P) < W)).astype(jnp.float32)
    mask = jnp.tile(mrow, (Bg,)).reshape(rows, 1)

    out_rows = stride if out_slab else hp_pad
    kern = functools.partial(_conv3x3_kernel, n_img=Bg, hp_pad=hp_pad, P=P,
                             off=off, relu=relu, out_slab=out_slab)
    out = pl.pallas_call(
        kern,
        out_shape=jax.ShapeDtypeStruct((B, out_rows, Np), jnp.bfloat16),
        grid_spec=pltpu.PrefetchScalarGridSpec(
            num_scalar_prefetch=0,
            grid=(G, n_n),
            in_specs=[
                pl.BlockSpec((Bg, stride, cin_slab), lambda g, j: (g, 0, 0)),   # resident per group
                pl.BlockSpec((9, cin_slab, tn), lambda g, j: (0, 0, j)),
                pl.BlockSpec((1, tn), lambda g, j: (0, j)),
                pl.BlockSpec((rows, 1), lambda g, j: (0, 0)),
            ],
            out_specs=pl.BlockSpec((Bg, out_rows, tn), lambda g, j: (g, 0, j)),
            scratch_shapes=[pltpu.VMEM((rows, tn), jnp.float32)],
        ),
        compiler_params=pltpu.CompilerParams(
            dimension_semantics=("parallel", "parallel"),
            vmem_limit_bytes=_VMEM_LIMIT),
    )(x_slab, wb, bb.reshape(1, Np), mask)
    return out


def conv3x3(x_nhwc, w9, b, *, relu=False):
    """Convenience single-layer wrapper: (B,H,W,Cin) NHWC -> (B,H,W,Cout) bf16."""
    B, H, W, _ = x_nhwc.shape
    cout = w9.shape[2]
    flat = conv3x3_slab(make_slab(x_nhwc), H, W, w9, b, relu=relu, out_slab=False)
    return flat_to_nhwc(flat, H, W, cout)


# ---------------------------------------------------------------------------
# Small fused dense layer (single step, no scratch): y = relu?(x @ w + b).
# ---------------------------------------------------------------------------
def _dense_kernel(x_ref, w_ref, b_ref, o_ref, *, relu):
    r = jnp.dot(x_ref[...], w_ref[...], preferred_element_type=jnp.float32) + b_ref[...]
    if relu:
        r = jnp.maximum(r, 0.0)
    o_ref[...] = r


def dense(x, w, b, *, relu=False):
    """x:(M,K) w:(K,N) b:(N,) -> (M,N) float32 (bf16 MXU, f32 accumulate)."""
    M, K = x.shape
    _, N = w.shape
    xb = x.astype(jnp.bfloat16)
    wb = w.astype(jnp.bfloat16)
    bp = b.astype(jnp.float32)
    Mp, Np = _round_up(M, 8), _round_up(N, 128)
    if Mp != M:
        xb = jnp.pad(xb, ((0, Mp - M), (0, 0)))
    if Np != N:
        wb = jnp.pad(wb, ((0, 0), (0, Np - N)))
        bp = jnp.pad(bp, (0, Np - N))
    out = pl.pallas_call(
        functools.partial(_dense_kernel, relu=relu),
        out_shape=jax.ShapeDtypeStruct((Mp, Np), jnp.float32),
        grid_spec=pltpu.PrefetchScalarGridSpec(
            num_scalar_prefetch=0, grid=(1,),
            in_specs=[pl.BlockSpec((Mp, K), lambda i: (0, 0)),
                      pl.BlockSpec((K, Np), lambda i: (0, 0)),
                      pl.BlockSpec((1, Np), lambda i: (0, 0))],
            out_specs=pl.BlockSpec((Mp, Np), lambda i: (0, 0)),
        ),
        compiler_params=pltpu.CompilerParams(vmem_limit_bytes=_VMEM_LIMIT),
    )(xb, wb, bp.reshape(1, Np))
    return out[:M, :N]


# ---------------------------------------------------------------------------
# Fused dense tail: reasons = fcr(f); f2 = relu(fc2(f)); actions = fc3(f2).
# Weight layout (pre-packed once in init_params):
#   wc: (2560, 256)  cols [0:64]=fc2, [64:128]=0, [128:128+nr]=fcr, rest 0
#   w3: (128, 128)   rows [0:64]=fc3 (cols [0:na]), rest 0
# ---------------------------------------------------------------------------
def _tail_kernel(f_ref, wc_ref, bc_ref, w3_ref, b3_ref, o_ref):
    rf = jnp.dot(f_ref[...], wc_ref[...], preferred_element_type=jnp.float32) + bc_ref[...]
    f2 = jnp.maximum(rf[:, :128], 0.0)                      # fc2 (+ zero padding cols)
    act = jnp.dot(f2.astype(jnp.bfloat16), w3_ref[...],
                  preferred_element_type=jnp.float32) + b3_ref[...]
    o_ref[...] = jnp.concatenate([act, rf[:, 128:]], axis=1)


def fused_tail(f, wc, bc, w3, b3, num_actions, num_reasons):
    """f (B, 2560) -> (actions (B, num_actions), reasons (B, num_reasons))."""
    B, K = f.shape
    Bp = _round_up(B, 8)
    fb = f.astype(jnp.bfloat16)
    if Bp != B:
        fb = jnp.pad(fb, ((0, Bp - B), (0, 0)))
    out = pl.pallas_call(
        _tail_kernel,
        out_shape=jax.ShapeDtypeStruct((Bp, 256), jnp.float32),
        grid_spec=pltpu.PrefetchScalarGridSpec(
            num_scalar_prefetch=0, grid=(1,),
            in_specs=[pl.BlockSpec((Bp, K), lambda i: (0, 0)),
                      pl.BlockSpec((K, 256), lambda i: (0, 0)),
                      pl.BlockSpec((1, 256), lambda i: (0, 0)),
                      pl.BlockSpec((128, 128), lambda i: (0, 0)),
                      pl.BlockSpec((1, 128), lambda i: (0, 0))],
            out_specs=pl.BlockSpec((Bp, 256), lambda i: (0, 0)),
        ),
        compiler_params=pltpu.CompilerParams(vmem_limit_bytes=_VMEM_LIMIT),
    )(fb, wc, bc.reshape(1, 256), w3, b3.reshape(1, 128))
    return out[:B, :num_actions], out[:B, 128:128 + num_reasons]


# ---------------------------------------------------------------------------
# Parameter layout helpers (PyTorch OIHW -> kernel layout (9, Cin, Cout)).
# ---------------------------------------------------------------------------
def conv_w_from_oihw(w_oihw):
    cout, cin = w_oihw.shape[0], w_oihw.shape[1]
    return jnp.transpose(w_oihw, (2, 3, 1, 0)).reshape(9, cin, cout)


def init_params(key, num_actions, num_reasons):
    ks = jax.random.split(key, 20)

    def conv_w(k, cin, cout):
        w = jax.random.normal(k, (cout, cin, 3, 3), jnp.float32) / jnp.sqrt(cin * 9.0)
        return conv_w_from_oihw(w).astype(jnp.bfloat16)

    def lin_w(k, cin, cout):  # nn.Linear weight (out,in) stored transposed as (in,out)
        return (jax.random.normal(k, (cin, cout), jnp.float32)
                / jnp.sqrt(float(cin))).astype(jnp.bfloat16)

    def bias(k, n):
        return jax.random.normal(k, (n,), jnp.float32) * 0.01

    fc2_w, fc2_b = lin_w(ks[14], 256 * SELECT_NUM, 64), bias(ks[15], 64)
    fc3_w, fc3_b = lin_w(ks[16], 64, num_actions), bias(ks[17], num_actions)
    fcr_w, fcr_b = lin_w(ks[18], 256 * SELECT_NUM, num_reasons), bias(ks[19], num_reasons)

    # pre-packed fused tail weights (built ONCE, not per forward step)
    tail_wc = jnp.zeros((256 * SELECT_NUM, 256), jnp.bfloat16)
    tail_wc = tail_wc.at[:, :64].set(fc2_w).at[:, 128:128 + num_reasons].set(fcr_w)
    tail_bc = jnp.zeros((256,), jnp.float32)
    tail_bc = tail_bc.at[:64].set(fc2_b).at[128:128 + num_reasons].set(fcr_b)
    tail_w3 = jnp.zeros((128, 128), jnp.bfloat16).at[:64, :num_actions].set(fc3_w)
    tail_b3 = jnp.zeros((128,), jnp.float32).at[:num_actions].set(fc3_b)

    return {
        'cg1_w': conv_w(ks[0], 2048, 1024), 'cg1_b': bias(ks[1], 1024),
        'cg2_w': conv_w(ks[2], 1024, 512), 'cg2_b': bias(ks[3], 512),
        'cg3_w': conv_w(ks[4], 512, 256), 'cg3_b': bias(ks[5], 256),
        'sel1_w': conv_w(ks[6], 512, 64), 'sel1_b': bias(ks[7], 64),
        'sel2_w': conv_w(ks[8], 64, 32), 'sel2_b': bias(ks[9], 32),
        # selector's 1x1 conv stored as a (32,1) matrix -- folded into mean-then-dot.
        'sel3_w': jax.random.normal(ks[10], (32, 1), jnp.float32) / jnp.sqrt(32.0),
        'sel3_b': jax.random.normal(ks[11], (1,), jnp.float32) * 0.01,
        'fc1_w': lin_w(ks[12], 512, 256), 'fc1_b': bias(ks[13], 256),
        'fc2_w': fc2_w, 'fc2_b': fc2_b,
        'fc3_w': fc3_w, 'fc3_b': fc3_b,
        'fcr_w': fcr_w, 'fcr_b': fcr_b,
        'tail_wc': tail_wc, 'tail_bc': tail_bc,
        'tail_w3': tail_w3, 'tail_b3': tail_b3,
    }


# ---------------------------------------------------------------------------
# ExplanationModel forward (post-detector part, select=True, use_edl=False).
# Inputs arrive in PyTorch NCHW layout; converted once and kept channels-last.
# ---------------------------------------------------------------------------
def explanation_head(global_features, object_features, p, *, num_actions, num_reasons):
    B = global_features.shape[0]
    n_obj = object_features.shape[1]
    Hg, Wg = global_features.shape[2], global_features.shape[3]

    # --- global branch: conv_glob1..3, chained in slab layout (no per-layer glue)
    g_slab = make_slab(jnp.transpose(global_features, (0, 2, 3, 1)))        # (B,stride,2048)
    g_slab = conv3x3_slab(g_slab, Hg, Wg, p['cg1_w'], p['cg1_b'], relu=True, out_slab=True)
    g_slab = conv3x3_slab(g_slab, Hg, Wg, p['cg2_w'], p['cg2_b'], relu=True, out_slab=True)
    g_flat = conv3x3_slab(g_slab, Hg, Wg, p['cg3_w'], p['cg3_b'], relu=True, out_slab=False)
    g = flat_to_nhwc(g_flat, Hg, Wg, 256)                                    # (B,Hg,Wg,256) bf16

    # F.adaptive_avg_pool2d -> (7,7): exact mean pooling for 14x14 res5 maps.
    assert Hg % 7 == 0 and Wg % 7 == 0
    g7 = g.astype(jnp.float32).reshape(B, 7, Hg // 7, 7, Wg // 7, 256).mean(axis=(2, 4))

    # --- selector on per-box [object | global] features
    obj = jnp.transpose(object_features, (0, 1, 3, 4, 2))                    # (B,N,7,7,256)
    g7b = jnp.broadcast_to(g7[:, None].astype(jnp.bfloat16), (B, n_obj, 7, 7, 256))
    combined = jnp.concatenate([obj.astype(jnp.bfloat16), g7b], axis=-1)     # (B,N,7,7,512)
    s_slab = make_slab(combined.reshape(B * n_obj, 7, 7, 512))
    s_slab = conv3x3_slab(s_slab, 7, 7, p['sel1_w'], p['sel1_b'], relu=True, out_slab=True)
    s_flat = conv3x3_slab(s_slab, 7, 7, p['sel2_w'], p['sel2_b'], relu=True, out_slab=False)
    s_mean = flat_to_mean(s_flat, 7, 7, 32)                                  # (B*N,32)
    # selector's 1x1 conv is linear -> fold it into the spatial mean (exact).
    scores = (s_mean @ p['sel3_w'] + p['sel3_b']).reshape(B, n_obj)
    # softmax over boxes is monotonic -> top-k on the raw scores gives the same selection.
    _, idx = lax.top_k(scores, SELECT_NUM)

    # mean-pool(combined) gathered at the top-k boxes; gather/mean commute, and the per-box
    # means are rebuilt from already-pooled pieces (no re-read of the 7x7 combined maps).
    obj_mean = object_features.astype(jnp.float32).mean(axis=(3, 4))         # (B,N,256)
    g_mean = jnp.broadcast_to(g7.mean(axis=(1, 2))[:, None], (B, n_obj, 256))
    comb_mean = jnp.concatenate([obj_mean, g_mean], axis=-1)                 # (B,N,512)
    sel = jnp.take_along_axis(comb_mean, idx[:, :, None], axis=1) / SELECT_NUM

    # --- dense tail (dropout = identity at inference)
    f = dense(sel.reshape(B * SELECT_NUM, 512), p['fc1_w'], p['fc1_b'], relu=True)
    f = f.reshape(B, SELECT_NUM * 256)                                       # (B, 2560)
    actions, reasons = fused_tail(f, p['tail_wc'], p['tail_bc'],
                                  p['tail_w3'], p['tail_b3'], num_actions, num_reasons)
    return actions, reasons, None


if __name__ == "__main__":
    key = jax.random.PRNGKey(0)
    B, NOBJ = 2, 12           # batch, detected boxes per image
    HG = WG = 14              # res5 spatial size (448x448 input image)
    NUM_ACTIONS, NUM_REASONS = 4, 21

    keys = jax.random.split(key, 12)
    params = init_params(keys[0], NUM_ACTIONS, NUM_REASONS)
    global_features = jax.random.normal(keys[1], (B, 2048, HG, WG), jnp.float32) * 0.1
    object_features = jax.random.normal(keys[2], (B, NOBJ, 256, 7, 7), jnp.float32) * 0.1

    # --- correctness checks of the Pallas kernels vs plain JAX (bf16 tolerance) ---
    def conv_ref_nchw(x_nchw, w_oihw, bias_, relu):
        y = lax.conv_general_dilated(
            x_nchw, w_oihw, (1, 1), 'SAME',
            dimension_numbers=('NCHW', 'OIHW', 'NCHW'),
            precision=lax.Precision.HIGHEST) + bias_[None, :, None, None]
        return jax.nn.relu(y) if relu else y

    # (a) single layer, 7x7 images, 6 images -> exercises the image-group grid axis
    xo = jax.random.normal(keys[3], (6, 64, 7, 7), jnp.float32)
    wo = jax.random.normal(keys[4], (32, 64, 3, 3), jnp.float32) / jnp.sqrt(64 * 9.0)
    bo = jnp.linspace(-0.1, 0.1, 32, dtype=jnp.float32)
    got = conv3x3(jnp.transpose(xo, (0, 2, 3, 1)), conv_w_from_oihw(wo), bo, relu=True)
    got = jnp.transpose(got.astype(jnp.float32), (0, 3, 1, 2))
    ref = conv_ref_nchw(xo, wo, bo, True)
    assert jnp.allclose(got, ref, atol=5e-2, rtol=5e-2), "conv3x3 (7x7) mismatch"

    # (b) two chained layers kept in slab layout -> exercises slab output + Cout tiling
    x2 = jax.random.normal(keys[5], (2, 128, 14, 14), jnp.float32)
    w_a = jax.random.normal(keys[6], (512, 128, 3, 3), jnp.float32) / jnp.sqrt(128 * 9.0)
    b_a = jnp.linspace(-0.05, 0.05, 512, dtype=jnp.float32)
    w_b = jax.random.normal(keys[7], (64, 512, 3, 3), jnp.float32) / jnp.sqrt(512 * 9.0)
    b_b = jnp.linspace(-0.05, 0.05, 64, dtype=jnp.float32)
    slab = make_slab(jnp.transpose(x2, (0, 2, 3, 1)))
    slab = conv3x3_slab(slab, 14, 14, conv_w_from_oihw(w_a), b_a, relu=True, out_slab=True)
    flat = conv3x3_slab(slab, 14, 14, conv_w_from_oihw(w_b), b_b, relu=True, out_slab=False)
    got2 = jnp.transpose(flat_to_nhwc(flat, 14, 14, 64).astype(jnp.float32), (0, 3, 1, 2))
    ref1 = conv_ref_nchw(x2, w_a, b_a, True).astype(jnp.bfloat16).astype(jnp.float32)
    ref2 = conv_ref_nchw(ref1, w_b, b_b, True)
    assert jnp.allclose(got2, ref2, atol=6e-2, rtol=6e-2), "chained conv3x3 mismatch"

    # (c) dense
    xd = jax.random.normal(keys[8], (16, 256), jnp.float32)
    wd = jax.random.normal(keys[9], (256, 96), jnp.float32) / 16.0
    bd = jax.random.normal(keys[10], (96,), jnp.float32) * 0.1
    d_got = dense(xd, wd, bd, relu=True)
    d_ref = jax.nn.relu(jnp.dot(xd, wd, precision='highest') + bd)
    assert jnp.allclose(d_got, d_ref, atol=5e-2, rtol=5e-2), "dense mismatch"

    # (d) fused dense tail
    ft = jax.random.normal(keys[11], (B, 256 * SELECT_NUM), jnp.float32)
    a_got, r_got = fused_tail(ft, params['tail_wc'], params['tail_bc'],
                              params['tail_w3'], params['tail_b3'],
                              NUM_ACTIONS, NUM_REASONS)
    r_ref = jnp.dot(ft, params['fcr_w'].astype(jnp.float32),
                    precision='highest') + params['fcr_b']
    f2_ref = jax.nn.relu(jnp.dot(ft, params['fc2_w'].astype(jnp.float32),
                                 precision='highest') + params['fc2_b'])
    a_ref = jnp.dot(f2_ref, params['fc3_w'].astype(jnp.float32),
                    precision='highest') + params['fc3_b']
    assert jnp.allclose(a_got, a_ref, atol=5e-2, rtol=5e-2), "tail actions mismatch"
    assert jnp.allclose(r_got, r_ref, atol=5e-2, rtol=5e-2), "tail reasons mismatch"

    # --- full explanation head ---
    head = jax.jit(functools.partial(explanation_head,
                                     num_actions=NUM_ACTIONS, num_reasons=NUM_REASONS))
    actions, reasons, _ = head(global_features, object_features, params)
    actions = jax.block_until_ready(actions)
    reasons = jax.block_until_ready(reasons)

    assert actions.shape == (B, NUM_ACTIONS)
    assert reasons.shape == (B, NUM_REASONS)
    assert bool(jnp.all(jnp.isfinite(actions))) and bool(jnp.all(jnp.isfinite(reasons)))

    print("KERNEL_OK")
</pallas_src>

<mosaic_0001>
module attributes {stable_mosaic.version = 11 : i64} {
  func.func @_conv3x3_kernel(%arg0: i32, %arg1: i32, %arg2: memref<3x96x64xbf16, #tpu.memory_space<vmem>>, %arg3: memref<9x64x128xbf16, #tpu.memory_space<vmem>>, %arg4: memref<1x128xf32, #tpu.memory_space<vmem>>, %arg5: memref<192x1xf32, #tpu.memory_space<vmem>>, %arg6: memref<3x64x128xbf16, #tpu.memory_space<vmem>>, %arg7: memref<192x128xf32, #tpu.memory_space<vmem>>) attributes {dimension_semantics = [#tpu.dimension_semantics<parallel>, #tpu.dimension_semantics<parallel>], iteration_bounds = array<i64: 2, 1>, scalar_prefetch = 0 : i64, scratch_operands = 1 : i64, tpu.core_type = #tpu.core_type<tc>, window_params = [{transform_indices = @transform_0, window_bounds = array<i64: 3, 96, 64>}, {transform_indices = @transform_1, window_bounds = array<i64: 9, 64, 128>}, {transform_indices = @transform_2, window_bounds = array<i64: 1, 128>}, {pipeline_mode = #tpu.pipeline_mode<synchronous>, transform_indices = @transform_3, window_bounds = array<i64: 192, 1>}, {transform_indices = @transform_4, window_bounds = array<i64: 3, 64, 128>}]} {
    %c0 = arith.constant 0 : index
    %c6 = arith.constant 6 : index
    %c0_0 = arith.constant 0 : index
    %0 = vector.load %arg2[%c0, %c6, %c0_0] : memref<3x96x64xbf16, #tpu.memory_space<vmem>>, vector<3x64x64xbf16>
    %1 = vector.shape_cast %0 : vector<3x64x64xbf16> to vector<192x64xbf16>
    %c0_1 = arith.constant 0 : index
    %c0_2 = arith.constant 0 : index
    %c0_3 = arith.constant 0 : index
    %2 = vector.load %arg3[%c0_1, %c0_2, %c0_3] : memref<9x64x128xbf16, #tpu.memory_space<vmem>>, vector<1x64x128xbf16>
    %3 = vector.shape_cast %2 : vector<1x64x128xbf16> to vector<64x128xbf16>
    %cst = arith.constant dense<0.000000e+00> : vector<192x128xf32>
    %4 = tpu.matmul %1, %3, %cst {dimension_numbers = #tpu.dot_dimension_numbers<[1], [0], [0], [1], [0, 0, 1, 1], [], []>} : vector<192x64xbf16>, vector<64x128xbf16>, vector<192x128xf32> -> vector<192x128xf32>
    %c0_4 = arith.constant 0 : index
    %c0_5 = arith.constant 0 : index
    %5 = vector.load %arg7[%c0_4, %c0_5] : memref<192x128xf32, #tpu.memory_space<vmem>>, vector<192x128xf32>
    tpu.vector_store %arg7[%c0_4, %c0_5], %4 {strides = array<i32>} : memref<192x128xf32, #tpu.memory_space<vmem>>, vector<192x128xf32>,
    %c0_6 = arith.constant 0 : index
    %c7 = arith.constant 7 : index
    %c0_7 = arith.constant 0 : index
    %6 = vector.load %arg2[%c0_6, %c7, %c0_7] : memref<3x96x64xbf16, #tpu.memory_space<vmem>>, vector<3x64x64xbf16>
    %7 = vector.shape_cast %6 : vector<3x64x64xbf16> to vector<192x64xbf16>
    %c1 = arith.constant 1 : index
    %c0_8 = arith.constant 0 : index
    %c0_9 = arith.constant 0 : index
    %8 = vector.load %arg3[%c1, %c0_8, %c0_9] : memref<9x64x128xbf16, #tpu.memory_space<vmem>>, vector<1x64x128xbf16>
    %9 = vector.shape_cast %8 : vector<1x64x128xbf16> to vector<64x128xbf16>
    %cst_10 = arith.constant dense<0.000000e+00> : vector<192x128xf32>
    %10 = tpu.matmul %7, %9, %cst_10 {dimension_numbers = #tpu.dot_dimension_numbers<[1], [0], [0], [1], [0, 0, 1, 1], [], []>} : vector<192x64xbf16>, vector<64x128xbf16>, vector<192x128xf32> -> vector<192x128xf32>
    %c0_11 = arith.constant 0 : index
    %c0_12 = arith.constant 0 : index
    %11 = vector.load %arg7[%c0_11, %c0_12] : memref<192x128xf32, #tpu.memory_space<vmem>>, vector<192x128xf32>
    %12 = arith.addf %11, %10 : vector<192x128xf32>
    %c0_13 = arith.constant 0 : index
    %c0_14 = arith.constant 0 : index
    %13 = vector.load %arg7[%c0_13, %c0_14] : memref<192x128xf32, #tpu.memory_space<vmem>>, vector<192x128xf32>
    tpu.vector_store %arg7[%c0_13, %c0_14], %12 {strides = array<i32>} : memref<192x128xf32, #tpu.memory_space<vmem>>, vector<192x128xf32>,
    %c0_15 = arith.constant 0 : index
    %c8 = arith.constant 8 : index
    %c0_16 = arith.constant 0 : index
    %14 = vector.load %arg2[%c0_15, %c8, %c0_16] : memref<3x96x64xbf16, #tpu.memory_space<vmem>>, vector<3x64x64xbf16>
    %15 = vector.shape_cast %14 : vector<3x64x64xbf16> to vector<192x64xbf16>
    %c2 = arith.constant 2 : index
    %c0_17 = arith.constant 0 : index
    %c0_18 = arith.constant 0 : index
    %16 = vector.load %arg3[%c2, %c0_17, %c0_18] : memref<9x64x128xbf16, #tpu.memory_space<vmem>>, vector<1x64x128xbf16>
    %17 = vector.shape_cast %16 : vector<1x64x128xbf16> to vector<64x128xbf16>
    %cst_19 = arith.constant dense<0.000000e+00> : vector<192x128xf32>
    %18 = tpu.matmul %15, %17, %cst_19 {dimension_numbers = #tpu.dot_dimension_numbers<[1], [0], [0], [1], [0, 0, 1, 1], [], []>} : vector<192x64xbf16>, vector<64x128xbf16>, vector<192x128xf32> -> vector<192x128xf32>
    %c0_20 = arith.constant 0 : index
    %c0_21 = arith.constant 0 : index
    %19 = vector.load %arg7[%c0_20, %c0_21] : memref<192x128xf32, #tpu.memory_space<vmem>>, vector<192x128xf32>
    %20 = arith.addf %19, %18 : vector<192x128xf32>
    %c0_22 = arith.constant 0 : index
    %c0_23 = arith.constant 0 : index
    %21 = vector.load %arg7[%c0_22, %c0_23] : memref<192x128xf32, #tpu.memory_space<vmem>>, vector<192x128xf32>
    tpu.vector_store %arg7[%c0_22, %c0_23], %20 {strides = array<i32>} : memref<192x128xf32, #tpu.memory_space<vmem>>, vector<192x128xf32>,
    %c0_24 = arith.constant 0 : index
    %c15 = arith.constant 15 : index
    %c0_25 = arith.constant 0 : index
    %22 = vector.load %arg2[%c0_24, %c15, %c0_25] : memref<3x96x64xbf16, #tpu.memory_space<vmem>>, vector<3x64x64xbf16>
    %23 = vector.shape_cast %22 : vector<3x64x64xbf16> to vector<192x64xbf16>
    %c3 = arith.constant 3 : index
    %c0_26 = arith.constant 0 : index
    %c0_27 = arith.constant 0 : index
    %24 = vector.load %arg3[%c3, %c0_26, %c0_27] : memref<9x64x128xbf16, #tpu.memory_space<vmem>>, vector<1x64x128xbf16>
    %25 = vector.shape_cast %24 : vector<1x64x128xbf16> to vector<64x128xbf16>
    %cst_28 = arith.constant dense<0.000000e+00> : vector<192x128xf32>
    %26 = tpu.matmul %23, %25, %cst_28 {dimension_numbers = #tpu.dot_dimension_numbers<[1], [0], [0], [1], [0, 0, 1, 1], [], []>} : vector<192x64xbf16>, vector<64x128xbf16>, vector<192x128xf32> -> vector<192x128xf32>
    %c0_29 = arith.constant 0 : index
    %c0_30 = arith.constant 0 : index
    %27 = vector.load %arg7[%c0_29, %c0_30] : memref<192x128xf32, #tpu.memory_space<vmem>>, vector<192x128xf32>
    %28 = arith.addf %27, %26 : vector<192x128xf32>
    %c0_31 = arith.constant 0 : index
    %c0_32 = arith.constant 0 : index
    %29 = vector.load %arg7[%c0_31, %c0_32] : memref<192x128xf32, #tpu.memory_space<vmem>>, vector<192x128xf32>
    tpu.vector_store %arg7[%c0_31, %c0_32], %28 {strides = array<i32>} : memref<192x128xf32, #tpu.memory_space<vmem>>, vector<192x128xf32>,
    %c0_33 = arith.constant 0 : index
    %c16 = arith.constant 16 : index
    %c0_34 = arith.constant 0 : index
    %30 = vector.load %arg2[%c0_33, %c16, %c0_34] : memref<3x96x64xbf16, #tpu.memory_space<vmem>>, vector<3x64x64xbf16>
    %31 = vector.shape_cast %30 : vector<3x64x64xbf16> to vector<192x64xbf16>
    %c4 = arith.constant 4 : index
    %c0_35 = arith.constant 0 : index
    %c0_36 = arith.constant 0 : index
    %32 = vector.load %arg3[%c4, %c0_35, %c0_36] : memref<9x64x128xbf16, #tpu.memory_space<vmem>>, vector<1x64x128xbf16>
    %33 = vector.shape_cast %32 : vector<1x64x128xbf16> to vector<64x128xbf16>
    %cst_37 = arith.constant dense<0.000000e+00> : vector<192x128xf32>
    %34 = tpu.matmul %31, %33, %cst_37 {dimension_numbers = #tpu.dot_dimension_numbers<[1], [0], [0], [1], [0, 0, 1, 1], [], []>} : vector<192x64xbf16>, vector<64x128xbf16>, vector<192x128xf32> -> vector<192x128xf32>
    %c0_38 = arith.constant 0 : index
    %c0_39 = arith.constant 0 : index
    %35 = vector.load %arg7[%c0_38, %c0_39] : memref<192x128xf32, #tpu.memory_space<vmem>>, vector<192x128xf32>
    %36 = arith.addf %35, %34 : vector<192x128xf32>
    %c0_40 = arith.constant 0 : index
    %c0_41 = arith.constant 0 : index
    %37 = vector.load %arg7[%c0_40, %c0_41] : memref<192x128xf32, #tpu.memory_space<vmem>>, vector<192x128xf32>
    tpu.vector_store %arg7[%c0_40, %c0_41], %36 {strides = array<i32>} : memref<192x128xf32, #tpu.memory_space<vmem>>, vector<192x128xf32>,
    %c0_42 = arith.constant 0 : index
    %c17 = arith.constant 17 : index
    %c0_43 = arith.constant 0 : index
    %38 = vector.load %arg2[%c0_42, %c17, %c0_43] : memref<3x96x64xbf16, #tpu.memory_space<vmem>>, vector<3x64x64xbf16>
    %39 = vector.shape_cast %38 : vector<3x64x64xbf16> to vector<192x64xbf16>
    %c5 = arith.constant 5 : index
    %c0_44 = arith.constant 0 : index
    %c0_45 = arith.constant 0 : index
    %40 = vector.load %arg3[%c5, %c0_44, %c0_45] : memref<9x64x128xbf16, #tpu.memory_space<vmem>>, vector<1x64x128xbf16>
    %41 = vector.shape_cast %40 : vector<1x64x128xbf16> to vector<64x128xbf16>
    %cst_46 = arith.constant dense<0.000000e+00> : vector<192x128xf32>
    %42 = tpu.matmul %39, %41, %cst_46 {dimension_numbers = #tpu.dot_dimension_numbers<[1], [0], [0], [1], [0, 0, 1, 1], [], []>} : vector<192x64xbf16>, vector<64x128xbf16>, vector<192x128xf32> -> vector<192x128xf32>
    %c0_47 = arith.constant 0 : index
    %c0_48 = arith.constant 0 : index
    %43 = vector.load %arg7[%c0_47, %c0_48] : memref<192x128xf32, #tpu.memory_space<vmem>>, vector<192x128xf32>
    %44 = arith.addf %43, %42 : vector<192x128xf32>
    %c0_49 = arith.constant 0 : index
    %c0_50 = arith.constant 0 : index
    %45 = vector.load %arg7[%c0_49, %c0_50] : memref<192x128xf32, #tpu.memory_space<vmem>>, vector<192x128xf32>
    tpu.vector_store %arg7[%c0_49, %c0_50], %44 {strides = array<i32>} : memref<192x128xf32, #tpu.memory_space<vmem>>, vector<192x128xf32>,
    %c0_51 = arith.constant 0 : index
    %c24 = arith.constant 24 : index
    %c0_52 = arith.constant 0 : index
    %46 = vector.load %arg2[%c0_51, %c24, %c0_52] : memref<3x96x64xbf16, #tpu.memory_space<vmem>>, vector<3x64x64xbf16>
    %47 = vector.shape_cast %46 : vector<3x64x64xbf16> to vector<192x64xbf16>
    %c6_53 = arith.constant 6 : index
    %c0_54 = arith.constant 0 : index
    %c0_55 = arith.constant 0 : index
    %48 = vector.load %arg3[%c6_53, %c0_54, %c0_55] : memref<9x64x128xbf16, #tpu.memory_space<vmem>>, vector<1x64x128xbf16>
    %49 = vector.shape_cast %48 : vector<1x64x128xbf16> to vector<64x128xbf16>
    %cst_56 = arith.constant dense<0.000000e+00> : vector<192x128xf32>
    %50 = tpu.matmul %47, %49, %cst_56 {dimension_numbers = #tpu.dot_dimension_numbers<[1], [0], [0], [1], [0, 0, 1, 1], [], []>} : vector<192x64xbf16>, vector<64x128xbf16>, vector<192x128xf32> -> vector<192x128xf32>
    %c0_57 = arith.constant 0 : index
    %c0_58 = arith.constant 0 : index
    %51 = vector.load %arg7[%c0_57, %c0_58] : memref<192x128xf32, #tpu.memory_space<vmem>>, vector<192x128xf32>
    %52 = arith.addf %51, %50 : vector<192x128xf32>
    %c0_59 = arith.constant 0 : index
    %c0_60 = arith.constant 0 : index
    %53 = vector.load %arg7[%c0_59, %c0_60] : memref<192x128xf32, #tpu.memory_space<vmem>>, vector<192x128xf32>
    tpu.vector_store %arg7[%c0_59, %c0_60], %52 {strides = array<i32>} : memref<192x128xf32, #tpu.memory_space<vmem>>, vector<192x128xf32>,
    %c0_61 = arith.constant 0 : index
    %c25 = arith.constant 25 : index
    %c0_62 = arith.constant 0 : index
    %54 = vector.load %arg2[%c0_61, %c25, %c0_62] : memref<3x96x64xbf16, #tpu.memory_space<vmem>>, vector<3x64x64xbf16>
    %55 = vector.shape_cast %54 : vector<3x64x64xbf16> to vector<192x64xbf16>
    %c7_63 = arith.constant 7 : index
    %c0_64 = arith.constant 0 : index
    %c0_65 = arith.constant 0 : index
    %56 = vector.load %arg3[%c7_63, %c0_64, %c0_65] : memref<9x64x128xbf16, #tpu.memory_space<vmem>>, vector<1x64x128xbf16>
    %57 = vector.shape_cast %56 : vector<1x64x128xbf16> to vector<64x128xbf16>
    %cst_66 = arith.constant dense<0.000000e+00> : vector<192x128xf32>
    %58 = tpu.matmul %55, %57, %cst_66 {dimension_numbers = #tpu.dot_dimension_numbers<[1], [0], [0], [1], [0, 0, 1, 1], [], []>} : vector<192x64xbf16>, vector<64x128xbf16>, vector<192x128xf32> -> vector<192x128xf32>
    %c0_67 = arith.constant 0 : index
    %c0_68 = arith.constant 0 : index
    %59 = vector.load %arg7[%c0_67, %c0_68] : memref<192x128xf32, #tpu.memory_space<vmem>>, vector<192x128xf32>
    %60 = arith.addf %59, %58 : vector<192x128xf32>
    %c0_69 = arith.constant 0 : index
    %c0_70 = arith.constant 0 : index
    %61 = vector.load %arg7[%c0_69, %c0_70] : memref<192x128xf32, #tpu.memory_space<vmem>>, vector<192x128xf32>
    tpu.vector_store %arg7[%c0_69, %c0_70], %60 {strides = array<i32>} : memref<192x128xf32, #tpu.memory_space<vmem>>, vector<192x128xf32>,
    %c0_71 = arith.constant 0 : index
    %c26 = arith.constant 26 : index
    %c0_72 = arith.constant 0 : index
    %62 = vector.load %arg2[%c0_71, %c26, %c0_72] : memref<3x96x64xbf16, #tpu.memory_space<vmem>>, vector<3x64x64xbf16>
    %63 = vector.shape_cast %62 : vector<3x64x64xbf16> to vector<192x64xbf16>
    %c8_73 = arith.constant 8 : index
    %c0_74 = arith.constant 0 : index
    %c0_75 = arith.constant 0 : index
    %64 = vector.load %arg3[%c8_73, %c0_74, %c0_75] : memref<9x64x128xbf16, #tpu.memory_space<vmem>>, vector<1x64x128xbf16>
    %65 = vector.shape_cast %64 : vector<1x64x128xbf16> to vector<64x128xbf16>
    %cst_76 = arith.constant dense<0.000000e+00> : vector<192x128xf32>
    %66 = tpu.matmul %63, %65, %cst_76 {dimension_numbers = #tpu.dot_dimension_numbers<[1], [0], [0], [1], [0, 0, 1, 1], [], []>} : vector<192x64xbf16>, vector<64x128xbf16>, vector<192x128xf32> -> vector<192x128xf32>
    %c0_77 = arith.constant 0 : index
    %c0_78 = arith.constant 0 : index
    %67 = vector.load %arg7[%c0_77, %c0_78] : memref<192x128xf32, #tpu.memory_space<vmem>>, vector<192x128xf32>
    %68 = arith.addf %67, %66 : vector<192x128xf32>
    %c0_79 = arith.constant 0 : index
    %c0_80 = arith.constant 0 : index
    %69 = vector.load %arg7[%c0_79, %c0_80] : memref<192x128xf32, #tpu.memory_space<vmem>>, vector<192x128xf32>
    tpu.vector_store %arg7[%c0_79, %c0_80], %68 {strides = array<i32>} : memref<192x128xf32, #tpu.memory_space<vmem>>, vector<192x128xf32>,
    %c0_81 = arith.constant 0 : index
    %c0_82 = arith.constant 0 : index
    %70 = vector.load %arg7[%c0_81, %c0_82] : memref<192x128xf32, #tpu.memory_space<vmem>>, vector<192x128xf32>
    %c0_83 = arith.constant 0 : index
    %c0_84 = arith.constant 0 : index
    %71 = vector.load %arg4[%c0_83, %c0_84] : memref<1x128xf32, #tpu.memory_space<vmem>>, vector<1x128xf32>
    %72 = vector.broadcast %71 : vector<1x128xf32> to vector<192x128xf32>
    %73 = arith.addf %70, %72 : vector<192x128xf32>
    %cst_85 = arith.constant 0.000000e+00 : f32
    %74 = vector.broadcast %cst_85 : f32 to vector<192x128xf32>
    %75 = arith.maximumf %73, %74 : vector<192x128xf32>
    %c0_86 = arith.constant 0 : index
    %c0_87 = arith.constant 0 : index
    %76 = vector.load %arg5[%c0_86, %c0_87] : memref<192x1xf32, #tpu.memory_space<vmem>>, vector<192x1xf32>
    %77 = vector.broadcast %76 : vector<192x1xf32> to vector<192x128xf32>
    %78 = arith.mulf %75, %77 : vector<192x128xf32>
    %79 = arith.truncf %78 : vector<192x128xf32> to vector<192x128xbf16>
    %80 = vector.shape_cast %79 : vector<192x128xbf16> to vector<3x64x128xbf16>
    %c0_88 = arith.constant 0 : index
    %c0_89 = arith.constant 0 : index
    %c0_90 = arith.constant 0 : index
    %81 = vector.load %arg6[%c0_88, %c0_89, %c0_90] : memref<3x64x128xbf16, #tpu.memory_space<vmem>>, vector<3x64x128xbf16>
    tpu.vector_store %arg6[%c0_88, %c0_89, %c0_90], %80 {strides = array<i32>} : memref<3x64x128xbf16, #tpu.memory_space<vmem>>, vector<3x64x128xbf16>,
    return
  }
  func.func @transform_0(%arg0: i32, %arg1: i32) -> (i32, i32, i32) {
    %c0_i32 = arith.constant 0 : i32
    %c0_i32_0 = arith.constant 0 : i32
    %c0_i32_1 = arith.constant 0 : i32
    return %arg0, %c0_i32, %c0_i32_0 : i32, i32, i32
  }
  func.func @transform_1(%arg0: i32, %arg1: i32) -> (i32, i32, i32) {
    %c0_i32 = arith.constant 0 : i32
    %c0_i32_0 = arith.constant 0 : i32
    %c0_i32_1 = arith.constant 0 : i32
    return %c0_i32, %c0_i32_0, %arg1 : i32, i32, i32
  }
  func.func @transform_2(%arg0: i32, %arg1: i32) -> (i32, i32) {
    %c0_i32 = arith.constant 0 : i32
    %c0_i32_0 = arith.constant 0 : i32
    return %c0_i32, %arg1 : i32, i32
  }
  func.func @transform_3(%arg0: i32, %arg1: i32) -> (i32, i32) {
    %c0_i32 = arith.constant 0 : i32
    %c0_i32_0 = arith.constant 0 : i32
    %c0_i32_1 = arith.constant 0 : i32
    return %c0_i32, %c0_i32_0 : i32, i32
  }
  func.func @transform_4(%arg0: i32, %arg1: i32) -> (i32, i32, i32) {
    %c0_i32 = arith.constant 0 : i32
    %c0_i32_0 = arith.constant 0 : i32
    return %arg0, %c0_i32, %arg1 : i32, i32, i32
  }
}

</mosaic_0001>

<llo_original>
// kernel: tpu_custom_call.1
$region0: #{tpu_custom_call.1}
  #allocation0 [shape = 'u32[]', space=smem, size = 0x4, offset = 0x4, fixed_abs, tag = 'smem constant byte address 0x4 - core index']
  #allocation1 [shape = 'u32[144,128]{1,0:T(1,128)}', space=vmem, size = 0x12000, scoped, tag = 'internal scratch']
  #allocation2 [shape = 'f32[192,128]{1,0:T(8,128)}', space=vmem, size = 0x18000, scoped, tag = 'scratch operand']
  %s0 = inlined_call_operand.vmem [shape: bf16[6,96,64], index: 0, kind: input, shape index: {}]
  %s1 = inlined_call_operand.vmem [shape: bf16[9,64,128], index: 1, kind: input, shape index: {}]
  %s2 = inlined_call_operand.vmem [shape: f32[1,128], index: 2, kind: input, shape index: {}]
  %s3 = inlined_call_operand.vmem [shape: f32[192,1], index: 3, kind: input, shape index: {}]
  %s4 = inlined_call_operand.hbm [shape: bf16[6,64,128], index: 4, kind: output, shape index: {}]
  %s5 = sld [smem:[#allocation0]]
  $region49: #{tpu_custom_call.1} parent=0
    _
  %s7 = ssub.s32 1, %s5
  %s8 = scalar_select 0, %s7, %s5
  $region1: #{tpu_custom_call.1} parent=0
    #allocation3 [shape = 'u8[98304]{0}', space=vmem, size = 0x18000, scoped, tag = 'output window, operand 0']
    #allocation4 [shape = 's32[2]{0}', space=sflag, size = 0x8, scoped, tag = 'scoped memory for tpu_custom_call.1']
    %9 = vsyncpa [#allocation4], 0
    %s10 = scalar_lea.sflag [#allocation4], 1
    %11 = vsyncpa %s10, 0
    loop: start=0, step=1, limit=4
    $region2: #{tpu_custom_call.1} parent=1 // loop_pre_header
      _
    $region3: #{tpu_custom_call.1} parent=1 // loop_header
      %s13 = sphi 0, %s17
      %p14 = scmp.ge.s32.totalorder %s13, 4
      %s20 = sphi 0, %s32
      %s21 = sphi 0, %s28
      %s22 = sphi 0, %s20
      %s23 = sphi 0, %s21
      %s24 = sphi 0, %s22
      %s25 = sphi 0, %s23
      %s35 = sphi 0, %s37
      %s38 = sphi 0, %s35
      %s39 = sphi 0, %s38
      %s55 = sphi 0, %s39
      %s61 = sphi 0, %s63
      %s64 = sphi 0, %s61
      %s65 = sphi 0, %s64
      %s81 = sphi 0, %s65
      %s87 = sphi 0, %s89
      %s90 = sphi 0, %s87
      %s91 = sphi 0, %s90
      %s107 = sphi 0, %s91
      %s111 = sphi 0, %s111
      %s113 = sphi 0, %s111
      %s114 = sphi 0, %s113
      %s128 = sphi 0, %s114
      %s136 = sphi 0, %s138
      %s139 = sphi 0, %s136
      %s140 = sphi 0, %s139
      %s156 = sphi 0, %s140
    $region4: #{tpu_custom_call.1} parent=1 // loop_header_branch
      %16 = sbr.rel (%p14) target = $region8
    $region5: #{tpu_custom_call.1} parent=1 // loop_body
      %s18 = ssub.s32 %s13, 1
      %s19 = ssub.s32 %s13, 2
      %s26 = sadd.s32 1, %s21
      %p27 = scmp.ge.s32.totalorder %s26, 1
      %s28 = scalar_select %p27, 0, %s26
      %s29 = sadd.s32 1, %s20
      %s30 = scalar_select %p27, %s29, %s20
      %p31 = scmp.ge.s32.totalorder %s30, 2
      %s32 = scalar_select %p31, 0, %s30
      %s33 = ssub.s32 %s20, %s32
      %p34 = scmp.eq.s32.totalorder %s33, 0
      %s36 = sadd.s32 %s35, 1
      %s37 = scalar_select %p34, %s35, %s36
      %p40 = pneg %p34
      %p41 = scmp.eq.s32.totalorder %s13, 1
      %p42 = por %p40, %p41
      %p43 = scmp.ne.s32.totalorder %s35, %s38
      %p44 = scmp.eq.s32.totalorder %s13, 0
      %p45 = por %p43, %p44
      %p46 = scmp.ne.s32.totalorder %s35, %s38
      %p47 = scmp.eq.s32.totalorder %s18, 1
      %p48 = por %p46, %p47
      %p49 = scmp.ne.s32.totalorder %s38, %s39
      %p50 = scmp.eq.s32.totalorder %s18, 0
      %p51 = por %p49, %p50
      %p52 = scmp.ne.s32.totalorder %s38, %s39
      %p53 = scmp.eq.s32.totalorder %s19, 1
      %p54 = por %p52, %p53
      %p56 = scmp.ne.s32.totalorder %s39, %s55
      %p57 = scmp.eq.s32.totalorder %s19, 0
      %p58 = por %p56, %p57
      %s59 = ssub.s32 %s21, %s28
      %p60 = scmp.eq.s32.totalorder %s59, 0
      %s62 = sadd.s32 %s61, 1
      %s63 = scalar_select %p60, %s61, %s62
      %p66 = pneg %p60
      %p67 = scmp.eq.s32.totalorder %s13, 1
      %p68 = por %p66, %p67
      %p69 = scmp.ne.s32.totalorder %s61, %s64
      %p70 = scmp.eq.s32.totalorder %s13, 0
      %p71 = por %p69, %p70
      %p72 = scmp.ne.s32.totalorder %s61, %s64
      %p73 = scmp.eq.s32.totalorder %s18, 1
      %p74 = por %p72, %p73
      %p75 = scmp.ne.s32.totalorder %s64, %s65
      %p76 = scmp.eq.s32.totalorder %s18, 0
      %p77 = por %p75, %p76
      %p78 = scmp.ne.s32.totalorder %s64, %s65
      %p79 = scmp.eq.s32.totalorder %s19, 1
      %p80 = por %p78, %p79
      %p82 = scmp.ne.s32.totalorder %s65, %s81
      %p83 = scmp.eq.s32.totalorder %s19, 0
      %p84 = por %p82, %p83
      %s85 = ssub.s32 %s21, %s28
      %p86 = scmp.eq.s32.totalorder %s85, 0
      %s88 = sadd.s32 %s87, 1
      %s89 = scalar_select %p86, %s87, %s88
      %p92 = pneg %p86
      %p93 = scmp.eq.s32.totalorder %s13, 1
      %p94 = por %p92, %p93
      %p95 = scmp.ne.s32.totalorder %s87, %s90
      %p96 = scmp.eq.s32.totalorder %s13, 0
      %p97 = por %p95, %p96
      %p98 = scmp.ne.s32.totalorder %s87, %s90
      %p99 = scmp.eq.s32.totalorder %s18, 1
      %p100 = por %p98, %p99
      %p101 = scmp.ne.s32.totalorder %s90, %s91
      %p102 = scmp.eq.s32.totalorder %s18, 0
      %p103 = por %p101, %p102
      %p104 = scmp.ne.s32.totalorder %s90, %s91
      %p105 = scmp.eq.s32.totalorder %s19, 1
      %p106 = por %p104, %p105
      %p108 = scmp.ne.s32.totalorder %s91, %s107
      %p109 = scmp.eq.s32.totalorder %s19, 0
      %p110 = por %p108, %p109
      %s112 = sadd.s32 %s111, 1
      %p115 = scmp.eq.s32.totalorder %s13, 1
      %p116 = scmp.ne.s32.totalorder %s111, %s113
      %p117 = scmp.eq.s32.totalorder %s13, 0
      %p118 = por %p116, %p117
      %p119 = scmp.ne.s32.totalorder %s111, %s113
      %p120 = scmp.eq.s32.totalorder %s18, 1
      %p121 = por %p119, %p120
      %p122 = scmp.ne.s32.totalorder %s113, %s114
      %p123 = scmp.eq.s32.totalorder %s18, 0
      %p124 = por %p122, %p123
      %p125 = scmp.ne.s32.totalorder %s113, %s114
      %p126 = scmp.eq.s32.totalorder %s19, 1
      %p127 = por %p125, %p126
      %p129 = scmp.ne.s32.totalorder %s114, %s128
      %p130 = scmp.eq.s32.totalorder %s19, 0
      %p131 = por %p129, %p130
      %s132 = ssub.s32 %s20, %s32
      %s133 = ssub.s32 %s21, %s28
      %s134 = sor.u32 %s132, %s133
      %p135 = scmp.eq.s32.totalorder %s134, 0
      %s137 = sadd.s32 %s136, 1
      %s138 = scalar_select %p135, %s136, %s137
      %p141 = pneg %p135
      %p142 = scmp.eq.s32.totalorder %s13, 1
      %p143 = por %p141, %p142
      %p144 = scmp.ne.s32.totalorder %s136, %s139
      %p145 = scmp.eq.s32.totalorder %s13, 0
      %p146 = por %p144, %p145
      %p147 = scmp.ne.s32.totalorder %s136, %s139
      %p148 = scmp.eq.s32.totalorder %s18, 1
      %p149 = por %p147, %p148
      %p150 = scmp.ne.s32.totalorder %s139, %s140
      %p151 = scmp.eq.s32.totalorder %s18, 0
      %p152 = por %p150, %p151
      %p153 = scmp.ne.s32.totalorder %s139, %s140
      %p154 = scmp.eq.s32.totalorder %s19, 1
      %p155 = por %p153, %p154
      %p157 = scmp.ne.s32.totalorder %s140, %s156
      %p158 = scmp.eq.s32.totalorder %s19, 0
      %p159 = por %p157, %p158
      %p160 = scmp.le.s32.totalorder 1, %s13
      %p161 = scmp.lt.s32.totalorder %s13, 3
      %p162 = pnand %p160, %p161
      %p163 = pneg %p162
      // Predicated region
      $region9: #{tpu_custom_call.1} parent=5 // pred_check
        _
      $region10: #{tpu_custom_call.1} parent=5 // pred_check_branch
        %165 = sbr.rel (%p162) target = $region12
      $region11: #{tpu_custom_call.1} parent=5 // pred_region
        %s166 = ssub.s32 %s13, 1
        // Predicated region
        $region13: #{tpu_custom_call.1} parent=11 // pred_check
          %p167 = pneg %p77
        $region14: #{tpu_custom_call.1} parent=11 // pred_check_branch
          %169 = sbr.rel (%p167) target = $region16
        $region15: #{tpu_custom_call.1} parent=11 // pred_region
          %p170 = scmp.lt.s32.totalorder %s23, 0
          %s171 = scalar_select %p170, %s23, 0
          %s172 = smul.addr %s171, 4
          %s173 = scalar_lea.vmem %s1, %s172
        $region16: #{tpu_custom_call.1} parent=11 // pred_fallthru
          _
        // Predicated region
        $region17: #{tpu_custom_call.1} parent=11 // pred_check
          %p174 = pneg %p103
        $region18: #{tpu_custom_call.1} parent=11 // pred_check_branch
          %176 = sbr.rel (%p174) target = $region20
        $region19: #{tpu_custom_call.1} parent=11 // pred_region
          %p177 = scmp.lt.s32.totalorder %s23, 0
          %s178 = scalar_select %p177, %s23, 0
          %s179 = scalar_lea.vmem %s2, %s178
        $region20: #{tpu_custom_call.1} parent=11 // pred_fallthru
          _
        // Predicated region
        $region21: #{tpu_custom_call.1} parent=11 // pred_check
          %p180 = pneg %p124
        $region22: #{tpu_custom_call.1} parent=11 // pred_check_branch
          %182 = sbr.rel (%p180) target = $region24
        $region23: #{tpu_custom_call.1} parent=11 // pred_region
          _
        $region24: #{tpu_custom_call.1} parent=11 // pred_fallthru
          _
      $region12: #{tpu_custom_call.1} parent=5 // pred_fallthru
        _
      %p183 = scmp.lt.s32.totalorder %s13, 2
      // Predicated region
      $region25: #{tpu_custom_call.1} parent=5 // pred_check
        %p184 = pneg %p183
      $region26: #{tpu_custom_call.1} parent=5 // pred_check_branch
        %186 = sbr.rel (%p184) target = $region28
      $region27: #{tpu_custom_call.1} parent=5 // pred_region
        // Predicated region
        $region29: #{tpu_custom_call.1} parent=27 // pred_check
          %p187 = pneg %p45
        $region30: #{tpu_custom_call.1} parent=27 // pred_check_branch
          %189 = sbr.rel (%p187) target = $region32
        $region31: #{tpu_custom_call.1} parent=27 // pred_region
          %s190 = smul.u32 3, %s20
          %p191 = scmp.lt.s32.totalorder %s190, 5
          %s192 = scalar_select %p191, %s190, 5
          %s193 = smul.addr %s192, 12
          %s194 = smul.addr %s193, 4
          %s195 = scalar_lea.vmem %s0, %s194
          %s196 = smul.u32 3, %s20
        $region32: #{tpu_custom_call.1} parent=27 // pred_fallthru
          _
      $region28: #{tpu_custom_call.1} parent=5 // pred_fallthru
        _
      %p197 = scmp.le.s32.totalorder 1, %s13
      %p198 = scmp.lt.s32.totalorder %s13, 3
      %p199 = pnand %p197, %p198
      %p200 = pneg %p199
      // Predicated region
      $region33: #{tpu_custom_call.1} parent=5 // pred_check
        _
      $region34: #{tpu_custom_call.1} parent=5 // pred_check_branch
        %202 = sbr.rel (%p199) target = $region36
      $region35: #{tpu_custom_call.1} parent=5 // pred_region
        %s203 = ssub.s32 %s13, 1
        %s204 = smul.u32 3, %s22
        %p205 = scmp.lt.s32.totalorder %s204, 5
        %s206 = scalar_select %p205, %s204, 5
        %s207 = smul.addr %s206, 12
        %s208 = smul.addr %s207, 4
        %s209 = scalar_lea.vmem %s0, %s208
        %p210 = pneg %p51
        %p211 = pneg %p48
        %p212 = scmp.lt.s32.totalorder %s23, 0
        %s213 = scalar_select %p212, %s23, 0
        %s214 = smul.addr %s213, 4
        %s215 = scalar_lea.vmem %s1, %s214
        %p216 = pneg %p77
        %p217 = pneg %p74
        %p218 = scmp.lt.s32.totalorder %s23, 0
        %s219 = scalar_select %p218, %s23, 0
        %s220 = scalar_lea.vmem %s2, %s219
        %p221 = pneg %p103
        %p222 = pneg %p100
        %p223 = pneg %p124
        %p224 = pneg %p121
        %p225 = pneg %p152
        %p226 = pneg %p149
        %s227 = sand.u32 %s139, 1
        %s228 = scalar_lea.sflag [#allocation4], %s227
        %s229 = sand.u32 %s139, 1
        %s230 = smul.addr %s229, 96
        %s231 = scalar_lea.vmem [#allocation3], %s230
        %s232 = smul.u32 3, %s22
        %p233 = scmp.lt.s32.totalorder %s232, 5
        %s234 = scalar_select %p233, %s232, 5
        %s235 = smul.addr %s234, 12
        %s236 = smul.addr %s235, 4
        %s237 = scalar_lea.vmem %s0, %s236
        %s238 = smul.u32 3, %s22
        %p239 = scmp.lt.s32.totalorder %s23, 0
        %s240 = scalar_select %p239, %s23, 0
        %s241 = smul.addr %s240, 4
        %s242 = scalar_lea.vmem %s1, %s241
        %p243 = scmp.lt.s32.totalorder %s23, 0
        %s244 = scalar_select %p243, %s23, 0
        %s245 = scalar_lea.vmem %s2, %s244
        %s246 = smul.u32 3, %s22
        %v248 = vld [vmem:[%s237] sm:$0x8]
        %v249 = vld [vmem:[%s237 + $0x4] sm:$0xf]
        %v250 = vld [vmem:[%s237 + $0x8] sm:$0xf]
        %v251 = vld [vmem:[%s237 + $0xc] sm:$0xf]
        %v252 = vld [vmem:[%s237 + $0x10] sm:$0xf]
        %v253 = vld [vmem:[%s237 + $0x14] sm:$0xf]
        %v254 = vld [vmem:[%s237 + $0x18] sm:$0xf]
        %v255 = vld [vmem:[%s237 + $0x1c] sm:$0xf]
        %v256 = vld [vmem:[%s237 + $0x20] sm:$0x7]
        %v257 = vld [vmem:[%s237 + $0x30] sm:$0x8]
        %v258 = vld [vmem:[%s237 + $0x34] sm:$0xf]
        %v259 = vld [vmem:[%s237 + $0x38] sm:$0xf]
        %v260 = vld [vmem:[%s237 + $0x3c] sm:$0xf]
        %v261 = vld [vmem:[%s237 + $0x40] sm:$0xf]
        %v262 = vld [vmem:[%s237 + $0x44] sm:$0xf]
        %v263 = vld [vmem:[%s237 + $0x48] sm:$0xf]
        %v264 = vld [vmem:[%s237 + $0x4c] sm:$0xf]
        %v265 = vld [vmem:[%s237 + $0x50] sm:$0x7]
        %v266 = vld [vmem:[%s237 + $0x60] sm:$0x8]
        %v267 = vld [vmem:[%s237 + $0x64] sm:$0xf]
        %v268 = vld [vmem:[%s237 + $0x68] sm:$0xf]
        %v269 = vld [vmem:[%s237 + $0x6c] sm:$0xf]
        %v270 = vld [vmem:[%s237 + $0x70] sm:$0xf]
        %v271 = vld [vmem:[%s237 + $0x74] sm:$0xf]
        %v272 = vld [vmem:[%s237 + $0x78] sm:$0xf]
        %v273 = vld [vmem:[%s237 + $0x7c] sm:$0xf]
        %v274 = vld [vmem:[%s237 + $0x80] sm:$0x7]
        %vm302 = vcmask 1040384
        %vm303 = vcmask 1044484
        %vm304 = vmor %vm302, %vm303
        %v305 = vrot.slane %v248, 7
        %v306 = vrot.slane %v305, 4
        %v307 = vrot.slane %v249, 7
        %v308 = vsel %vm304, %v306, %v307
        %v309 = vrot.slane %v307, 4
        %v310 = vrot.slane %v250, 7
        %v311 = vsel %vm304, %v309, %v310
        %v312 = vrot.slane %v310, 4
        %v313 = vrot.slane %v251, 7
        %v314 = vsel %vm304, %v312, %v313
        %v315 = vrot.slane %v313, 4
        %v316 = vrot.slane %v252, 7
        %v317 = vsel %vm304, %v315, %v316
        %v318 = vrot.slane %v316, 4
        %v319 = vrot.slane %v253, 7
        %v320 = vsel %vm304, %v318, %v319
        %v321 = vrot.slane %v319, 4
        %v322 = vrot.slane %v254, 7
        %v323 = vsel %vm304, %v321, %v322
        %v324 = vrot.slane %v322, 4
        %v325 = vrot.slane %v255, 7
        %v326 = vsel %vm304, %v324, %v325
        %v327 = vrot.slane %v325, 4
        %v328 = vrot.slane %v256, 7
        %v329 = vsel %vm304, %v327, %v328
        %v330 = vrot.slane %v257, 7
        %v331 = vrot.slane %v330, 4
        %v332 = vrot.slane %v258, 7
        %v333 = vsel %vm304, %v331, %v332
        %v334 = vrot.slane %v332, 4
        %v335 = vrot.slane %v259, 7
        %v336 = vsel %vm304, %v334, %v335
        %v337 = vrot.slane %v335, 4
        %v338 = vrot.slane %v260, 7
        %v339 = vsel %vm304, %v337, %v338
        %v340 = vrot.slane %v338, 4
        %v341 = vrot.slane %v261, 7
        %v342 = vsel %vm304, %v340, %v341
        %v343 = vrot.slane %v341, 4
        %v344 = vrot.slane %v262, 7
        %v345 = vsel %vm304, %v343, %v344
        %v346 = vrot.slane %v344, 4
        %v347 = vrot.slane %v263, 7
        %v348 = vsel %vm304, %v346, %v347
        %v349 = vrot.slane %v347, 4
        %v350 = vrot.slane %v264, 7
        %v351 = vsel %vm304, %v349, %v350
        %v352 = vrot.slane %v350, 4
        %v353 = vrot.slane %v265, 7
        %v354 = vsel %vm304, %v352, %v353
        %v355 = vrot.slane %v266, 7
        %v356 = vrot.slane %v355, 4
        %v357 = vrot.slane %v267, 7
        %v358 = vsel %vm304, %v356, %v357
        %v359 = vrot.slane %v357, 4
        %v360 = vrot.slane %v268, 7
        %v361 = vsel %vm304, %v359, %v360
        %v362 = vrot.slane %v360, 4
        %v363 = vrot.slane %v269, 7
        %v364 = vsel %vm304, %v362, %v363
        %v365 = vrot.slane %v363, 4
        %v366 = vrot.slane %v270, 7
        %v367 = vsel %vm304, %v365, %v366
        %v368 = vrot.slane %v366, 4
        %v369 = vrot.slane %v271, 7
        %v370 = vsel %vm304, %v368, %v369
        %v371 = vrot.slane %v369, 4
        %v372 = vrot.slane %v272, 7
        %v373 = vsel %vm304, %v371, %v372
        %v374 = vrot.slane %v372, 4
        %v375 = vrot.slane %v273, 7
        %v376 = vsel %vm304, %v374, %v375
        %v377 = vrot.slane %v375, 4
        %v378 = vrot.slane %v274, 7
        %v379 = vsel %vm304, %v377, %v378
        %v380 = vld [vmem:[%s242] sm:$0xf]
        %v381 = vld [vmem:[%s242 + $0x4] sm:$0xf]
        %v382 = vld [vmem:[%s242 + $0x8] sm:$0xf]
        %v383 = vld [vmem:[%s242 + $0xc] sm:$0xf]
        %v384 = vld [vmem:[%s242 + $0x10] sm:$0xf]
        %v385 = vld [vmem:[%s242 + $0x14] sm:$0xf]
        %v386 = vld [vmem:[%s242 + $0x18] sm:$0xf]
        %v387 = vld [vmem:[%s242 + $0x1c] sm:$0xf]
        %v388 = vunpack.c.l.b16 %v308
        %v389 = vunpack.c.l.b16 %v311
        %v390 = vunpack.c.l.b16 %v314
        %v391 = vunpack.c.l.b16 %v317
        %v392 = vunpack.c.l.b16 %v320
        %v393 = vunpack.c.l.b16 %v323
        %v394 = vunpack.c.l.b16 %v326
        %v395 = vunpack.c.l.b16 %v329
        %v396 = vunpack.c.l.b16 %v333
        %v397 = vunpack.c.l.b16 %v336
        %v398 = vunpack.c.l.b16 %v339
        %v399 = vunpack.c.l.b16 %v342
        %v400 = vunpack.c.l.b16 %v345
        %v401 = vunpack.c.l.b16 %v348
        %v402 = vunpack.c.l.b16 %v351
        %v403 = vunpack.c.l.b16 %v354
        %v404 = vunpack.c.l.b16 %v358
        %v405 = vunpack.c.l.b16 %v361
        %v406 = vunpack.c.l.b16 %v364
        %v407 = vunpack.c.l.b16 %v367
        %v408 = vunpack.c.l.b16 %v370
        %v409 = vunpack.c.l.b16 %v373
        %v410 = vunpack.c.l.b16 %v376
        %v411 = vunpack.c.l.b16 %v379
        %v412 = vpack.c.b16 %v389, %v388
        %v413 = vpack.c.b16 %v391, %v390
        %v414 = vpack.c.b16 %v393, %v392
        %v415 = vpack.c.b16 %v395, %v394
        %v416 = vpack.c.b16 %v397, %v396
        %v417 = vpack.c.b16 %v399, %v398
        %v418 = vpack.c.b16 %v401, %v400
        %v419 = vpack.c.b16 %v403, %v402
        %v420 = vpack.c.b16 %v405, %v404
        %v421 = vpack.c.b16 %v407, %v406
        %v422 = vpack.c.b16 %v409, %v408
        %v423 = vpack.c.b16 %v411, %v410
        %v432 = vunpack.c.l.b16 %v380
        %v433 = vunpack.c.l.b16 %v381
        %v434 = vunpack.c.l.b16 %v382
        %v435 = vunpack.c.l.b16 %v383
        %v436 = vunpack.c.l.b16 %v384
        %v437 = vunpack.c.l.b16 %v385
        %v438 = vunpack.c.l.b16 %v386
        %v439 = vunpack.c.l.b16 %v387
        %v440 = vpack.c.b16 %v433, %v432
        %v441 = vpack.c.b16 %v435, %v434
        %v442 = vpack.c.b16 %v437, %v436
        %v443 = vpack.c.b16 %v439, %v438
        %vm448 = vcmask 523264
        %v450 = vsel %vm448, %v412, 0
        %v453 = vsel %vm448, %v413, 0
        %v456 = vsel %vm448, %v414, 0
        %v459 = vsel %vm448, %v415, 0
        %v462 = vsel %vm448, %v416, 0
        %v465 = vsel %vm448, %v417, 0
        %v468 = vsel %vm448, %v418, 0
        %v471 = vsel %vm448, %v419, 0
        %v474 = vsel %vm448, %v420, 0
        %v477 = vsel %vm448, %v421, 0
        %v480 = vsel %vm448, %v422, 0
        %v483 = vsel %vm448, %v423, 0
        %485 = vmatprep.subr.bf16.mxu0 0
        %486 = vmatpush1.bf16.msra.mxu0 %v440
        %487 = vmatprep.subr.bf16.mxu0 0
        %488 = vmatpush1.bf16.msra.mxu0 %v441
        %489 = vmatprep.subr.bf16.mxu0 0
        %490 = vmatpush1.bf16.msra.mxu0 %v442
        %491 = vmatprep.subr.bf16.mxu0 0
        %492 = vmatpush1.bf16.msra.mxu0 %v443
        %493 = vmatprep.subr.bf16.mxu0 0
        %494 = vmatpush1.bf16.msra.mxu0 0
        %495 = vmatprep.subr.bf16.mxu0 0
        %496 = vmatpush1.bf16.msra.mxu0 0
        %497 = vmatprep.subr.bf16.mxu0 0
        %498 = vmatpush1.bf16.msra.mxu0 0
        %499 = vmatprep.subr.bf16.mxu0 0
        %500 = vmatpush1.bf16.msra.mxu0 0
        %501 = vmatprep.subr.bf16.mxu0 0
        %502 = vmatpush1.bf16.msra.mxu0 0
        %503 = vmatprep.subr.bf16.mxu0 0
        %504 = vmatpush1.bf16.msra.mxu0 0
        %505 = vmatprep.subr.bf16.mxu0 0
        %506 = vmatpush1.bf16.msra.mxu0 0
        %507 = vmatprep.subr.bf16.mxu0 0
        %508 = vmatpush1.bf16.msra.mxu0 0
        %509 = vmatprep.subr.bf16.mxu0 0
        %510 = vmatpush1.bf16.msra.mxu0 0
        %511 = vmatprep.subr.bf16.mxu0 0
        %512 = vmatpush1.bf16.msra.mxu0 0
        %513 = vmatprep.subr.bf16.mxu0 0
        %514 = vmatpush1.bf16.msra.mxu0 0
        %515 = vmatprep.subr.bf16.mxu0 0
        %516 = vmatpush1.bf16.msra.mxu0 0
        %517 = vmatprep.mubr.bf16.mxu0 0
        %518 = vmatmul.mubr.bf16.gmra.mrb[0].mxu0 %v450
        %v519 = vpop.f32.mrb[0].mxu0
        %v520 = vadd.f32 0.0, %v519
        %v521 = vpop.f32.mrb[0].mxu0
        %v522 = vpop.f32.mrb[0].mxu0
        %v523 = vadd.f32 0.0, %v522
        %v524 = vpop.f32.mrb[0].mxu0
        %525 = vmatprep.mubr.bf16.mxu0 0
        %526 = vmatmul.mubr.bf16.gmra.mrb[0].mxu0 %v453
        %v527 = vpop.f32.mrb[0].mxu0
        %v528 = vadd.f32 0.0, %v527
        %v529 = vpop.f32.mrb[0].mxu0
        %v530 = vpop.f32.mrb[0].mxu0
        %v531 = vadd.f32 0.0, %v530
        %v532 = vpop.f32.mrb[0].mxu0
        %533 = vmatprep.mubr.bf16.mxu0 0
        %534 = vmatmul.mubr.bf16.gmra.mrb[0].mxu0 %v456
        %v535 = vpop.f32.mrb[0].mxu0
        %v536 = vadd.f32 0.0, %v535
        %v537 = vpop.f32.mrb[0].mxu0
        %v538 = vpop.f32.mrb[0].mxu0
        %v539 = vadd.f32 0.0, %v538
        %v540 = vpop.f32.mrb[0].mxu0
        %541 = vmatprep.mubr.bf16.mxu0 0
        %542 = vmatmul.mubr.bf16.gmra.mrb[0].mxu0 %v459
        %v543 = vpop.f32.mrb[0].mxu0
        %v544 = vadd.f32 0.0, %v543
        %v545 = vpop.f32.mrb[0].mxu0
        %v546 = vpop.f32.mrb[0].mxu0
        %v547 = vadd.f32 0.0, %v546
        %v548 = vpop.f32.mrb[0].mxu0
        %549 = vmatprep.mubr.bf16.mxu0 0
        %550 = vmatmul.mubr.bf16.gmra.mrb[0].mxu0 %v462
        %v551 = vpop.f32.mrb[0].mxu0
        %v552 = vadd.f32 0.0, %v551
        %v553 = vpop.f32.mrb[0].mxu0
        %v554 = vpop.f32.mrb[0].mxu0
        %v555 = vadd.f32 0.0, %v554
        %v556 = vpop.f32.mrb[0].mxu0
        %557 = vmatprep.mubr.bf16.mxu0 0
        %558 = vmatmul.mubr.bf16.gmra.mrb[0].mxu0 %v465
        %v559 = vpop.f32.mrb[0].mxu0
        %v560 = vadd.f32 0.0, %v559
        %v561 = vpop.f32.mrb[0].mxu0
        %v562 = vpop.f32.mrb[0].mxu0
        %v563 = vadd.f32 0.0, %v562
        %v564 = vpop.f32.mrb[0].mxu0
        %565 = vmatprep.mubr.bf16.mxu0 0
        %566 = vmatmul.mubr.bf16.gmra.mrb[0].mxu0 %v468
        %v567 = vpop.f32.mrb[0].mxu0
        %v568 = vadd.f32 0.0, %v567
        %v569 = vpop.f32.mrb[0].mxu0
        %v570 = vpop.f32.mrb[0].mxu0
        %v571 = vadd.f32 0.0, %v570
        %v572 = vpop.f32.mrb[0].mxu0
        %573 = vmatprep.mubr.bf16.mxu0 0
        %574 = vmatmul.mubr.bf16.gmra.mrb[0].mxu0 %v471
        %v575 = vpop.f32.mrb[0].mxu0
        %v576 = vadd.f32 0.0, %v575
        %v577 = vpop.f32.mrb[0].mxu0
        %v578 = vpop.f32.mrb[0].mxu0
        %v579 = vadd.f32 0.0, %v578
        %v580 = vpop.f32.mrb[0].mxu0
        %581 = vmatprep.mubr.bf16.mxu0 0
        %582 = vmatmul.mubr.bf16.gmra.mrb[0].mxu0 %v474
        %v583 = vpop.f32.mrb[0].mxu0
        %v584 = vadd.f32 0.0, %v583
        %v585 = vpop.f32.mrb[0].mxu0
        %v586 = vpop.f32.mrb[0].mxu0
        %v587 = vadd.f32 0.0, %v586
        %v588 = vpop.f32.mrb[0].mxu0
        %589 = vmatprep.mubr.bf16.mxu0 0
        %590 = vmatmul.mubr.bf16.gmra.mrb[0].mxu0 %v477
        %v591 = vpop.f32.mrb[0].mxu0
        %v592 = vadd.f32 0.0, %v591
        %v593 = vpop.f32.mrb[0].mxu0
        %v594 = vpop.f32.mrb[0].mxu0
        %v595 = vadd.f32 0.0, %v594
        %v596 = vpop.f32.mrb[0].mxu0
        %597 = vmatprep.mubr.bf16.mxu0 0
        %598 = vmatmul.mubr.bf16.gmra.mrb[0].mxu0 %v480
        %v599 = vpop.f32.mrb[0].mxu0
        %v600 = vadd.f32 0.0, %v599
        %v601 = vpop.f32.mrb[0].mxu0
        %v602 = vpop.f32.mrb[0].mxu0
        %v603 = vadd.f32 0.0, %v602
        %v604 = vpop.f32.mrb[0].mxu0
        %605 = vmatprep.mubr.bf16.mxu0 0
        %606 = vmatmul.mubr.bf16.gmra.mrb[0].mxu0 %v483
        %v607 = vpop.f32.mrb[0].mxu0
        %v608 = vadd.f32 0.0, %v607
        %v609 = vpop.f32.mrb[0].mxu0
        %v610 = vpop.f32.mrb[0].mxu0
        %v611 = vadd.f32 0.0, %v610
        %v612 = vpop.f32.mrb[0].mxu0
        %613 = vdwg.mxu0
        %614 = vst [vmem:[#allocation2] sm:$0xff] %v520
        %615 = vst [vmem:[#allocation2 + $0x8] sm:$0xff] %v523
        %616 = vst [vmem:[#allocation2 + $0x10] sm:$0xff] %v528
        %617 = vst [vmem:[#allocation2 + $0x18] sm:$0xff] %v531
        %618 = vst [vmem:[#allocation2 + $0x20] sm:$0xff] %v536
        %619 = vst [vmem:[#allocation2 + $0x28] sm:$0xff] %v539
        %620 = vst [vmem:[#allocation2 + $0x30] sm:$0xff] %v544
        %621 = vst [vmem:[#allocation2 + $0x38] sm:$0xff] %v547
        %622 = vst [vmem:[#allocation2 + $0x40] sm:$0xff] %v552
        %623 = vst [vmem:[#allocation2 + $0x48] sm:$0xff] %v555
        %624 = vst [vmem:[#allocation2 + $0x50] sm:$0xff] %v560
        %625 = vst [vmem:[#allocation2 + $0x58] sm:$0xff] %v563
        %626 = vst [vmem:[#allocation2 + $0x60] sm:$0xff] %v568
        %627 = vst [vmem:[#allocation2 + $0x68] sm:$0xff] %v571
        %628 = vst [vmem:[#allocation2 + $0x70] sm:$0xff] %v576
        %629 = vst [vmem:[#allocation2 + $0x78] sm:$0xff] %v579
        %630 = vst [vmem:[#allocation2 + $0x80] sm:$0xff] %v584
        %631 = vst [vmem:[#allocation2 + $0x88] sm:$0xff] %v587
        %632 = vst [vmem:[#allocation2 + $0x90] sm:$0xff] %v592
        %633 = vst [vmem:[#allocation2 + $0x98] sm:$0xff] %v595
        %634 = vst [vmem:[#allocation2 + $0xa0] sm:$0xff] %v600
        %635 = vst [vmem:[#allocation2 + $0xa8] sm:$0xff] %v603
        %636 = vst [vmem:[#allocation2 + $0xb0] sm:$0xff] %v608
        %637 = vst [vmem:[#allocation2 + $0xb8] sm:$0xff] %v611
        %v638 = vld [vmem:[%s237] sm:$0x8]
        %v639 = vld [vmem:[%s237 + $0x4] sm:$0xf]
        %v640 = vld [vmem:[%s237 + $0x8] sm:$0xf]
        %v641 = vld [vmem:[%s237 + $0xc] sm:$0xf]
        %v642 = vld [vmem:[%s237 + $0x10] sm:$0xf]
        %v643 = vld [vmem:[%s237 + $0x14] sm:$0xf]
        %v644 = vld [vmem:[%s237 + $0x18] sm:$0xf]
        %v645 = vld [vmem:[%s237 + $0x1c] sm:$0xf]
        %v646 = vld [vmem:[%s237 + $0x20] sm:$0xf]
        %v647 = vld [vmem:[%s237 + $0x30] sm:$0x8]
        %v648 = vld [vmem:[%s237 + $0x34] sm:$0xf]
        %v649 = vld [vmem:[%s237 + $0x38] sm:$0xf]
        %v650 = vld [vmem:[%s237 + $0x3c] sm:$0xf]
        %v651 = vld [vmem:[%s237 + $0x40] sm:$0xf]
        %v652 = vld [vmem:[%s237 + $0x44] sm:$0xf]
        %v653 = vld [vmem:[%s237 + $0x48] sm:$0xf]
        %v654 = vld [vmem:[%s237 + $0x4c] sm:$0xf]
        %v655 = vld [vmem:[%s237 + $0x50] sm:$0xf]
        %v656 = vld [vmem:[%s237 + $0x60] sm:$0x8]
        %v657 = vld [vmem:[%s237 + $0x64] sm:$0xf]
        %v658 = vld [vmem:[%s237 + $0x68] sm:$0xf]
        %v659 = vld [vmem:[%s237 + $0x6c] sm:$0xf]
        %v660 = vld [vmem:[%s237 + $0x70] sm:$0xf]
        %v661 = vld [vmem:[%s237 + $0x74] sm:$0xf]
        %v662 = vld [vmem:[%s237 + $0x78] sm:$0xf]
        %v663 = vld [vmem:[%s237 + $0x7c] sm:$0xf]
        %v664 = vld [vmem:[%s237 + $0x80] sm:$0xf]
        %vm665 = vsmask.f32 256
        %vm666 = vsmask.f32 4368
        %vm667 = vmor %vm665, %vm666
        %v669 = vshrl.u32 %v638, 16
        %v671 = vrot.slane %v669, 7
        %v672 = vrot.slane %v671, 4
        %v674 = vshrl.u32 %v639, 16
        %v676 = vrot.slane %v674, 7
        %v677 = vshll.u32 %v639, 16
        %v679 = vor.u32 %v676, %v677
        %v680 = vsel %vm667, %v672, %v679
        %v681 = vrot.slane %v676, 4
        %v683 = vshrl.u32 %v640, 16
        %v685 = vrot.slane %v683, 7
        %v686 = vshll.u32 %v640, 16
        %v688 = vor.u32 %v685, %v686
        %v689 = vsel %vm667, %v681, %v688
        %v690 = vrot.slane %v685, 4
        %v692 = vshrl.u32 %v641, 16
        %v694 = vrot.slane %v692, 7
        %v695 = vshll.u32 %v641, 16
        %v697 = vor.u32 %v694, %v695
        %v698 = vsel %vm667, %v690, %v697
        %v699 = vrot.slane %v694, 4
        %v701 = vshrl.u32 %v642, 16
        %v703 = vrot.slane %v701, 7
        %v704 = vshll.u32 %v642, 16
        %v706 = vor.u32 %v703, %v704
        %v707 = vsel %vm667, %v699, %v706
        %v708 = vrot.slane %v703, 4
        %v710 = vshrl.u32 %v643, 16
        %v712 = vrot.slane %v710, 7
        %v713 = vshll.u32 %v643, 16
        %v715 = vor.u32 %v712, %v713
        %v716 = vsel %vm667, %v708, %v715
        %v717 = vrot.slane %v712, 4
        %v719 = vshrl.u32 %v644, 16
        %v721 = vrot.slane %v719, 7
        %v722 = vshll.u32 %v644, 16
        %v724 = vor.u32 %v721, %v722
        %v725 = vsel %vm667, %v717, %v724
        %v726 = vrot.slane %v721, 4
        %v728 = vshrl.u32 %v645, 16
        %v730 = vrot.slane %v728, 7
        %v731 = vshll.u32 %v645, 16
        %v733 = vor.u32 %v730, %v731
        %v734 = vsel %vm667, %v726, %v733
        %v735 = vrot.slane %v730, 4
        %v737 = vshrl.u32 %v646, 16
        %v739 = vrot.slane %v737, 7
        %v740 = vshll.u32 %v646, 16
        %v742 = vor.u32 %v739, %v740
        %v743 = vsel %vm667, %v735, %v742
        %v745 = vshrl.u32 %v647, 16
        %v747 = vrot.slane %v745, 7
        %v748 = vrot.slane %v747, 4
        %v750 = vshrl.u32 %v648, 16
        %v752 = vrot.slane %v750, 7
        %v753 = vshll.u32 %v648, 16
        %v755 = vor.u32 %v752, %v753
        %v756 = vsel %vm667, %v748, %v755
        %v757 = vrot.slane %v752, 4
        %v759 = vshrl.u32 %v649, 16
        %v761 = vrot.slane %v759, 7
        %v762 = vshll.u32 %v649, 16
        %v764 = vor.u32 %v761, %v762
        %v765 = vsel %vm667, %v757, %v764
        %v766 = vrot.slane %v761, 4
        %v768 = vshrl.u32 %v650, 16
        %v770 = vrot.slane %v768, 7
        %v771 = vshll.u32 %v650, 16
        %v773 = vor.u32 %v770, %v771
        %v774 = vsel %vm667, %v766, %v773
        %v775 = vrot.slane %v770, 4
        %v777 = vshrl.u32 %v651, 16
        %v779 = vrot.slane %v777, 7
        %v780 = vshll.u32 %v651, 16
        %v782 = vor.u32 %v779, %v780
        %v783 = vsel %vm667, %v775, %v782
        %v784 = vrot.slane %v779, 4
        %v786 = vshrl.u32 %v652, 16
        %v788 = vrot.slane %v786, 7
        %v789 = vshll.u32 %v652, 16
        %v791 = vor.u32 %v788, %v789
        %v792 = vsel %vm667, %v784, %v791
        %v793 = vrot.slane %v788, 4
        %v795 = vshrl.u32 %v653, 16
        %v797 = vrot.slane %v795, 7
        %v798 = vshll.u32 %v653, 16
        %v800 = vor.u32 %v797, %v798
        %v801 = vsel %vm667, %v793, %v800
        %v802 = vrot.slane %v797, 4
        %v804 = vshrl.u32 %v654, 16
        %v806 = vrot.slane %v804, 7
        %v807 = vshll.u32 %v654, 16
        %v809 = vor.u32 %v806, %v807
        %v810 = vsel %vm667, %v802, %v809
        %v811 = vrot.slane %v806, 4
        %v813 = vshrl.u32 %v655, 16
        %v815 = vrot.slane %v813, 7
        %v816 = vshll.u32 %v655, 16
        %v818 = vor.u32 %v815, %v816
        %v819 = vsel %vm667, %v811, %v818
        %v821 = vshrl.u32 %v656, 16
        %v823 = vrot.slane %v821, 7
        %v824 = vrot.slane %v823, 4
        %v826 = vshrl.u32 %v657, 16
        %v828 = vrot.slane %v826, 7
        %v829 = vshll.u32 %v657, 16
        %v831 = vor.u32 %v828, %v829
        %v832 = vsel %vm667, %v824, %v831
        %v833 = vrot.slane %v828, 4
        %v835 = vshrl.u32 %v658, 16
        %v837 = vrot.slane %v835, 7
        %v838 = vshll.u32 %v658, 16
        %v840 = vor.u32 %v837, %v838
        %v841 = vsel %vm667, %v833, %v840
        %v842 = vrot.slane %v837, 4
        %v844 = vshrl.u32 %v659, 16
        %v846 = vrot.slane %v844, 7
        %v847 = vshll.u32 %v659, 16
        %v849 = vor.u32 %v846, %v847
        %v850 = vsel %vm667, %v842, %v849
        %v851 = vrot.slane %v846, 4
        %v853 = vshrl.u32 %v660, 16
        %v855 = vrot.slane %v853, 7
        %v856 = vshll.u32 %v660, 16
        %v858 = vor.u32 %v855, %v856
        %v859 = vsel %vm667, %v851, %v858
        %v860 = vrot.slane %v855, 4
        %v862 = vshrl.u32 %v661, 16
        %v864 = vrot.slane %v862, 7
        %v865 = vshll.u32 %v661, 16
        %v867 = vor.u32 %v864, %v865
        %v868 = vsel %vm667, %v860, %v867
        %v869 = vrot.slane %v864, 4
        %v871 = vshrl.u32 %v662, 16
        %v873 = vrot.slane %v871, 7
        %v874 = vshll.u32 %v662, 16
        %v876 = vor.u32 %v873, %v874
        %v877 = vsel %vm667, %v869, %v876
        %v878 = vrot.slane %v873, 4
        %v880 = vshrl.u32 %v663, 16
        %v882 = vrot.slane %v880, 7
        %v883 = vshll.u32 %v663, 16
        %v885 = vor.u32 %v882, %v883
        %v886 = vsel %vm667, %v878, %v885
        %v887 = vrot.slane %v882, 4
        %v889 = vshrl.u32 %v664, 16
        %v891 = vrot.slane %v889, 7
        %v892 = vshll.u32 %v664, 16
        %v894 = vor.u32 %v891, %v892
        %v895 = vsel %vm667, %v887, %v894
        %s896 = scalar_lea.vmem %s242, 32
        %v897 = vld [vmem:[%s896] sm:$0xf]
        %v898 = vld [vmem:[%s896 + $0x4] sm:$0xf]
        %v899 = vld [vmem:[%s896 + $0x8] sm:$0xf]
        %v900 = vld [vmem:[%s896 + $0xc] sm:$0xf]
        %v901 = vld [vmem:[%s896 + $0x10] sm:$0xf]
        %v902 = vld [vmem:[%s896 + $0x14] sm:$0xf]
        %v903 = vld [vmem:[%s896 + $0x18] sm:$0xf]
        %v904 = vld [vmem:[%s896 + $0x1c] sm:$0xf]
        %v905 = vunpack.c.l.b16 %v680
        %v906 = vunpack.c.l.b16 %v689
        %v907 = vunpack.c.l.b16 %v698
        %v908 = vunpack.c.l.b16 %v707
        %v909 = vunpack.c.l.b16 %v716
        %v910 = vunpack.c.l.b16 %v725
        %v911 = vunpack.c.l.b16 %v734
        %v912 = vunpack.c.l.b16 %v743
        %v913 = vunpack.c.l.b16 %v756
        %v914 = vunpack.c.l.b16 %v765
        %v915 = vunpack.c.l.b16 %v774
        %v916 = vunpack.c.l.b16 %v783
        %v917 = vunpack.c.l.b16 %v792
        %v918 = vunpack.c.l.b16 %v801
        %v919 = vunpack.c.l.b16 %v810
        %v920 = vunpack.c.l.b16 %v819
        %v921 = vunpack.c.l.b16 %v832
        %v922 = vunpack.c.l.b16 %v841
        %v923 = vunpack.c.l.b16 %v850
        %v924 = vunpack.c.l.b16 %v859
        %v925 = vunpack.c.l.b16 %v868
        %v926 = vunpack.c.l.b16 %v877
        %v927 = vunpack.c.l.b16 %v886
        %v928 = vunpack.c.l.b16 %v895
        %v929 = vpack.c.b16 %v906, %v905
        %v930 = vpack.c.b16 %v908, %v907
        %v931 = vpack.c.b16 %v910, %v909
        %v932 = vpack.c.b16 %v912, %v911
        %v933 = vpack.c.b16 %v914, %v913
        %v934 = vpack.c.b16 %v916, %v915
        %v935 = vpack.c.b16 %v918, %v917
        %v936 = vpack.c.b16 %v920, %v919
        %v937 = vpack.c.b16 %v922, %v921
        %v938 = vpack.c.b16 %v924, %v923
        %v939 = vpack.c.b16 %v926, %v925
        %v940 = vpack.c.b16 %v928, %v927
        %v949 = vunpack.c.l.b16 %v897
        %v950 = vunpack.c.l.b16 %v898
        %v951 = vunpack.c.l.b16 %v899
        %v952 = vunpack.c.l.b16 %v900
        %v953 = vunpack.c.l.b16 %v901
        %v954 = vunpack.c.l.b16 %v902
        %v955 = vunpack.c.l.b16 %v903
        %v956 = vunpack.c.l.b16 %v904
        %v957 = vpack.c.b16 %v950, %v949
        %v958 = vpack.c.b16 %v952, %v951
        %v959 = vpack.c.b16 %v954, %v953
        %v960 = vpack.c.b16 %v956, %v955
        %v966 = vsel %vm448, %v929, 0
        %v969 = vsel %vm448, %v930, 0
        %v972 = vsel %vm448, %v931, 0
        %v975 = vsel %vm448, %v932, 0
        %v978 = vsel %vm448, %v933, 0
        %v981 = vsel %vm448, %v934, 0
        %v984 = vsel %vm448, %v935, 0
        %v987 = vsel %vm448, %v936, 0
        %v990 = vsel %vm448, %v937, 0
        %v993 = vsel %vm448, %v938, 0
        %v996 = vsel %vm448, %v939, 0
        %v999 = vsel %vm448, %v940, 0
        %1001 = vmatprep.subr.bf16.mxu0 0
        %1002 = vmatpush1.bf16.msra.mxu0 %v957
        %1003 = vmatprep.subr.bf16.mxu0 0
        %1004 = vmatpush1.bf16.msra.mxu0 %v958
        %1005 = vmatprep.subr.bf16.mxu0 0
        %1006 = vmatpush1.bf16.msra.mxu0 %v959
        %1007 = vmatprep.subr.bf16.mxu0 0
        %1008 = vmatpush1.bf16.msra.mxu0 %v960
        %1009 = vmatprep.subr.bf16.mxu0 0
        %1010 = vmatpush1.bf16.msra.mxu0 0
        %1011 = vmatprep.subr.bf16.mxu0 0
        %1012 = vmatpush1.bf16.msra.mxu0 0
        %1013 = vmatprep.subr.bf16.mxu0 0
        %1014 = vmatpush1.bf16.msra.mxu0 0
        %1015 = vmatprep.subr.bf16.mxu0 0
        %1016 = vmatpush1.bf16.msra.mxu0 0
        %1017 = vmatprep.subr.bf16.mxu0 0
        %1018 = vmatpush1.bf16.msra.mxu0 0
        %1019 = vmatprep.subr.bf16.mxu0 0
        %1020 = vmatpush1.bf16.msra.mxu0 0
        %1021 = vmatprep.subr.bf16.mxu0 0
        %1022 = vmatpush1.bf16.msra.mxu0 0
        %1023 = vmatprep.subr.bf16.mxu0 0
        %1024 = vmatpush1.bf16.msra.mxu0 0
        %1025 = vmatprep.subr.bf16.mxu0 0
        %1026 = vmatpush1.bf16.msra.mxu0 0
        %1027 = vmatprep.subr.bf16.mxu0 0
        %1028 = vmatpush1.bf16.msra.mxu0 0
        %1029 = vmatprep.subr.bf16.mxu0 0
        %1030 = vmatpush1.bf16.msra.mxu0 0
        %1031 = vmatprep.subr.bf16.mxu0 0
        %1032 = vmatpush1.bf16.msra.mxu0 0
        %1033 = vmatprep.mubr.bf16.mxu0 0
        %1034 = vmatmul.mubr.bf16.gmra.mrb[0].mxu0 %v966
        %v1035 = vpop.f32.mrb[0].mxu0
        %v1036 = vadd.f32 0.0, %v1035
        %v1037 = vpop.f32.mrb[0].mxu0
        %v1038 = vpop.f32.mrb[0].mxu0
        %v1039 = vadd.f32 0.0, %v1038
        %v1040 = vpop.f32.mrb[0].mxu0
        %1041 = vmatprep.mubr.bf16.mxu0 0
        %1042 = vmatmul.mubr.bf16.gmra.mrb[0].mxu0 %v969
        %v1043 = vpop.f32.mrb[0].mxu0
        %v1044 = vadd.f32 0.0, %v1043
        %v1045 = vpop.f32.mrb[0].mxu0
        %v1046 = vpop.f32.mrb[0].mxu0
        %v1047 = vadd.f32 0.0, %v1046
        %v1048 = vpop.f32.mrb[0].mxu0
        %1049 = vmatprep.mubr.bf16.mxu0 0
        %1050 = vmatmul.mubr.bf16.gmra.mrb[0].mxu0 %v972
        %v1051 = vpop.f32.mrb[0].mxu0
        %v1052 = vadd.f32 0.0, %v1051
        %v1053 = vpop.f32.mrb[0].mxu0
        %v1054 = vpop.f32.mrb[0].mxu0
        %v1055 = vadd.f32 0.0, %v1054
        %v1056 = vpop.f32.mrb[0].mxu0
        %1057 = vmatprep.mubr.bf16.mxu0 0
        %1058 = vmatmul.mubr.bf16.gmra.mrb[0].mxu0 %v975
        %v1059 = vpop.f32.mrb[0].mxu0
        %v1060 = vadd.f32 0.0, %v1059
        %v1061 = vpop.f32.mrb[0].mxu0
        %v1062 = vpop.f32.mrb[0].mxu0
        %v1063 = vadd.f32 0.0, %v1062
        %v1064 = vpop.f32.mrb[0].mxu0
        %1065 = vmatprep.mubr.bf16.mxu0 0
        %1066 = vmatmul.mubr.bf16.gmra.mrb[0].mxu0 %v978
        %v1067 = vpop.f32.mrb[0].mxu0
        %v1068 = vadd.f32 0.0, %v1067
        %v1069 = vpop.f32.mrb[0].mxu0
        %v1070 = vpop.f32.mrb[0].mxu0
        %v1071 = vadd.f32 0.0, %v1070
        %v1072 = vpop.f32.mrb[0].mxu0
        %1073 = vmatprep.mubr.bf16.mxu0 0
        %1074 = vmatmul.mubr.bf16.gmra.mrb[0].mxu0 %v981
        %v1075 = vpop.f32.mrb[0].mxu0
        %v1076 = vadd.f32 0.0, %v1075
        %v1077 = vpop.f32.mrb[0].mxu0
        %v1078 = vpop.f32.mrb[0].mxu0
        %v1079 = vadd.f32 0.0, %v1078
        %v1080 = vpop.f32.mrb[0].mxu0
        %1081 = vmatprep.mubr.bf16.mxu0 0
        %1082 = vmatmul.mubr.bf16.gmra.mrb[0].mxu0 %v984
        %v1083 = vpop.f32.mrb[0].mxu0
        %v1084 = vadd.f32 0.0, %v1083
        %v1085 = vpop.f32.mrb[0].mxu0
        %v1086 = vpop.f32.mrb[0].mxu0
        %v1087 = vadd.f32 0.0, %v1086
        %v1088 = vpop.f32.mrb[0].mxu0
        %1089 = vmatprep.mubr.bf16.mxu0 0
        %1090 = vmatmul.mubr.bf16.gmra.mrb[0].mxu0 %v987
        %v1091 = vpop.f32.mrb[0].mxu0
        %v1092 = vadd.f32 0.0, %v1091
        %v1093 = vpop.f32.mrb[0].mxu0
        %v1094 = vpop.f32.mrb[0].mxu0
        %v1095 = vadd.f32 0.0, %v1094
        %v1096 = vpop.f32.mrb[0].mxu0
        %1097 = vmatprep.mubr.bf16.mxu0 0
        %1098 = vmatmul.mubr.bf16.gmra.mrb[0].mxu0 %v990
        %v1099 = vpop.f32.mrb[0].mxu0
        %v1100 = vadd.f32 0.0, %v1099
        %v1101 = vpop.f32.mrb[0].mxu0
        %v1102 = vpop.f32.mrb[0].mxu0
        %v1103 = vadd.f32 0.0, %v1102
        %v1104 = vpop.f32.mrb[0].mxu0
        %1105 = vmatprep.mubr.bf16.mxu0 0
        %1106 = vmatmul.mubr.bf16.gmra.mrb[0].mxu0 %v993
        %v1107 = vpop.f32.mrb[0].mxu0
        %v1108 = vadd.f32 0.0, %v1107
        %v1109 = vpop.f32.mrb[0].mxu0
        %v1110 = vpop.f32.mrb[0].mxu0
        %v1111 = vadd.f32 0.0, %v1110
        %v1112 = vpop.f32.mrb[0].mxu0
        %1113 = vmatprep.mubr.bf16.mxu0 0
        %1114 = vmatmul.mubr.bf16.gmra.mrb[0].mxu0 %v996
        %v1115 = vpop.f32.mrb[0].mxu0
        %v1116 = vadd.f32 0.0, %v1115
        %v1117 = vpop.f32.mrb[0].mxu0
        %v1118 = vpop.f32.mrb[0].mxu0
        %v1119 = vadd.f32 0.0, %v1118
        %v1120 = vpop.f32.mrb[0].mxu0
        %1121 = vmatprep.mubr.bf16.mxu0 0
        %1122 = vmatmul.mubr.bf16.gmra.mrb[0].mxu0 %v999
        %v1123 = vpop.f32.mrb[0].mxu0
        %v1124 = vadd.f32 0.0, %v1123
        %v1125 = vpop.f32.mrb[0].mxu0
        %v1126 = vpop.f32.mrb[0].mxu0
        %v1127 = vadd.f32 0.0, %v1126
        %v1128 = vpop.f32.mrb[0].mxu0
        %1129 = vdwg.mxu0
        %v1130 = vld [vmem:[#allocation2] sm:$0xff]
        %v1131 = vld [vmem:[#allocation2 + $0x8] sm:$0xff]
        %v1132 = vld [vmem:[#allocation2 + $0x10] sm:$0xff]
        %v1133 = vld [vmem:[#allocation2 + $0x18] sm:$0xff]
        %v1134 = vld [vmem:[#allocation2 + $0x20] sm:$0xff]
        %v1135 = vld [vmem:[#allocation2 + $0x28] sm:$0xff]
        %v1136 = vld [vmem:[#allocation2 + $0x30] sm:$0xff]
        %v1137 = vld [vmem:[#allocation2 + $0x38] sm:$0xff]
        %v1138 = vld [vmem:[#allocation2 + $0x40] sm:$0xff]
        %v1139 = vld [vmem:[#allocation2 + $0x48] sm:$0xff]
        %v1140 = vld [vmem:[#allocation2 + $0x50] sm:$0xff]
        %v1141 = vld [vmem:[#allocation2 + $0x58] sm:$0xff]
        %v1142 = vld [vmem:[#allocation2 + $0x60] sm:$0xff]
        %v1143 = vld [vmem:[#allocation2 + $0x68] sm:$0xff]
        %v1144 = vld [vmem:[#allocation2 + $0x70] sm:$0xff]
        %v1145 = vld [vmem:[#allocation2 + $0x78] sm:$0xff]
        %v1146 = vld [vmem:[#allocation2 + $0x80] sm:$0xff]
        %v1147 = vld [vmem:[#allocation2 + $0x88] sm:$0xff]
        %v1148 = vld [vmem:[#allocation2 + $0x90] sm:$0xff]
        %v1149 = vld [vmem:[#allocation2 + $0x98] sm:$0xff]
        %v1150 = vld [vmem:[#allocation2 + $0xa0] sm:$0xff]
        %v1151 = vld [vmem:[#allocation2 + $0xa8] sm:$0xff]
        %v1152 = vld [vmem:[#allocation2 + $0xb0] sm:$0xff]
        %v1153 = vld [vmem:[#allocation2 + $0xb8] sm:$0xff]
        %v1154 = vadd.f32 %v1130, %v1036
        %v1155 = vadd.f32 %v1131, %v1039
        %v1156 = vadd.f32 %v1132, %v1044
        %v1157 = vadd.f32 %v1133, %v1047
        %v1158 = vadd.f32 %v1134, %v1052
        %v1159 = vadd.f32 %v1135, %v1055
        %v1160 = vadd.f32 %v1136, %v1060
        %v1161 = vadd.f32 %v1137, %v1063
        %v1162 = vadd.f32 %v1138, %v1068
        %v1163 = vadd.f32 %v1139, %v1071
        %v1164 = vadd.f32 %v1140, %v1076
        %v1165 = vadd.f32 %v1141, %v1079
        %v1166 = vadd.f32 %v1142, %v1084
        %v1167 = vadd.f32 %v1143, %v1087
        %v1168 = vadd.f32 %v1144, %v1092
        %v1169 = vadd.f32 %v1145, %v1095
        %v1170 = vadd.f32 %v1146, %v1100
        %v1171 = vadd.f32 %v1147, %v1103
        %v1172 = vadd.f32 %v1148, %v1108
        %v1173 = vadd.f32 %v1149, %v1111
        %v1174 = vadd.f32 %v1150, %v1116
        %v1175 = vadd.f32 %v1151, %v1119
        %v1176 = vadd.f32 %v1152, %v1124
        %v1177 = vadd.f32 %v1153, %v1127
        %1178 = vst [vmem:[#allocation2] sm:$0xff] %v1154
        %1179 = vst [vmem:[#allocation2 + $0x8] sm:$0xff] %v1155
        %1180 = vst [vmem:[#allocation2 + $0x10] sm:$0xff] %v1156
        %1181 = vst [vmem:[#allocation2 + $0x18] sm:$0xff] %v1157
        %1182 = vst [vmem:[#allocation2 + $0x20] sm:$0xff] %v1158
        %1183 = vst [vmem:[#allocation2 + $0x28] sm:$0xff] %v1159
        %1184 = vst [vmem:[#allocation2 + $0x30] sm:$0xff] %v1160
        %1185 = vst [vmem:[#allocation2 + $0x38] sm:$0xff] %v1161
        %1186 = vst [vmem:[#allocation2 + $0x40] sm:$0xff] %v1162
        %1187 = vst [vmem:[#allocation2 + $0x48] sm:$0xff] %v1163
        %1188 = vst [vmem:[#allocation2 + $0x50] sm:$0xff] %v1164
        %1189 = vst [vmem:[#allocation2 + $0x58] sm:$0xff] %v1165
        %1190 = vst [vmem:[#allocation2 + $0x60] sm:$0xff] %v1166
        %1191 = vst [vmem:[#allocation2 + $0x68] sm:$0xff] %v1167
        %1192 = vst [vmem:[#allocation2 + $0x70] sm:$0xff] %v1168
        %1193 = vst [vmem:[#allocation2 + $0x78] sm:$0xff] %v1169
        %1194 = vst [vmem:[#allocation2 + $0x80] sm:$0xff] %v1170
        %1195 = vst [vmem:[#allocation2 + $0x88] sm:$0xff] %v1171
        %1196 = vst [vmem:[#allocation2 + $0x90] sm:$0xff] %v1172
        %1197 = vst [vmem:[#allocation2 + $0x98] sm:$0xff] %v1173
        %1198 = vst [vmem:[#allocation2 + $0xa0] sm:$0xff] %v1174
        %1199 = vst [vmem:[#allocation2 + $0xa8] sm:$0xff] %v1175
        %1200 = vst [vmem:[#allocation2 + $0xb0] sm:$0xff] %v1176
        %1201 = vst [vmem:[#allocation2 + $0xb8] sm:$0xff] %v1177
        %v1202 = vld [vmem:[%s237 + $0x4] sm:$0xf]
        %v1203 = vld [vmem:[%s237 + $0x8] sm:$0xf]
        %v1204 = vld [vmem:[%s237 + $0xc] sm:$0xf]
        %v1205 = vld [vmem:[%s237 + $0x10] sm:$0xf]
        %v1206 = vld [vmem:[%s237 + $0x14] sm:$0xf]
        %v1207 = vld [vmem:[%s237 + $0x18] sm:$0xf]
        %v1208 = vld [vmem:[%s237 + $0x1c] sm:$0xf]
        %v1209 = vld [vmem:[%s237 + $0x20] sm:$0xf]
        %v1210 = vld [vmem:[%s237 + $0x34] sm:$0xf]
        %v1211 = vld [vmem:[%s237 + $0x38] sm:$0xf]
        %v1212 = vld [vmem:[%s237 + $0x3c] sm:$0xf]
        %v1213 = vld [vmem:[%s237 + $0x40] sm:$0xf]
        %v1214 = vld [vmem:[%s237 + $0x44] sm:$0xf]
        %v1215 = vld [vmem:[%s237 + $0x48] sm:$0xf]
        %v1216 = vld [vmem:[%s237 + $0x4c] sm:$0xf]
        %v1217 = vld [vmem:[%s237 + $0x50] sm:$0xf]
        %v1218 = vld [vmem:[%s237 + $0x64] sm:$0xf]
        %v1219 = vld [vmem:[%s237 + $0x68] sm:$0xf]
        %v1220 = vld [vmem:[%s237 + $0x6c] sm:$0xf]
        %v1221 = vld [vmem:[%s237 + $0x70] sm:$0xf]
        %v1222 = vld [vmem:[%s237 + $0x74] sm:$0xf]
        %v1223 = vld [vmem:[%s237 + $0x78] sm:$0xf]
        %v1224 = vld [vmem:[%s237 + $0x7c] sm:$0xf]
        %v1225 = vld [vmem:[%s237 + $0x80] sm:$0xf]
        %s1226 = scalar_lea.vmem %s242, 64
        %v1227 = vld [vmem:[%s1226] sm:$0xf]
        %v1228 = vld [vmem:[%s1226 + $0x4] sm:$0xf]
        %v1229 = vld [vmem:[%s1226 + $0x8] sm:$0xf]
        %v1230 = vld [vmem:[%s1226 + $0xc] sm:$0xf]
        %v1231 = vld [vmem:[%s1226 + $0x10] sm:$0xf]
        %v1232 = vld [vmem:[%s1226 + $0x14] sm:$0xf]
        %v1233 = vld [vmem:[%s1226 + $0x18] sm:$0xf]
        %v1234 = vld [vmem:[%s1226 + $0x1c] sm:$0xf]
        %v1259 = vunpack.c.l.b16 %v1202
        %v1260 = vunpack.c.l.b16 %v1203
        %v1261 = vunpack.c.l.b16 %v1204
        %v1262 = vunpack.c.l.b16 %v1205
        %v1263 = vunpack.c.l.b16 %v1206
        %v1264 = vunpack.c.l.b16 %v1207
        %v1265 = vunpack.c.l.b16 %v1208
        %v1266 = vunpack.c.l.b16 %v1209
        %v1267 = vunpack.c.l.b16 %v1210
        %v1268 = vunpack.c.l.b16 %v1211
        %v1269 = vunpack.c.l.b16 %v1212
        %v1270 = vunpack.c.l.b16 %v1213
        %v1271 = vunpack.c.l.b16 %v1214
        %v1272 = vunpack.c.l.b16 %v1215
        %v1273 = vunpack.c.l.b16 %v1216
        %v1274 = vunpack.c.l.b16 %v1217
        %v1275 = vunpack.c.l.b16 %v1218
        %v1276 = vunpack.c.l.b16 %v1219
        %v1277 = vunpack.c.l.b16 %v1220
        %v1278 = vunpack.c.l.b16 %v1221
        %v1279 = vunpack.c.l.b16 %v1222
        %v1280 = vunpack.c.l.b16 %v1223
        %v1281 = vunpack.c.l.b16 %v1224
        %v1282 = vunpack.c.l.b16 %v1225
        %v1283 = vpack.c.b16 %v1260, %v1259
        %v1284 = vpack.c.b16 %v1262, %v1261
        %v1285 = vpack.c.b16 %v1264, %v1263
        %v1286 = vpack.c.b16 %v1266, %v1265
        %v1287 = vpack.c.b16 %v1268, %v1267
        %v1288 = vpack.c.b16 %v1270, %v1269
        %v1289 = vpack.c.b16 %v1272, %v1271
        %v1290 = vpack.c.b16 %v1274, %v1273
        %v1291 = vpack.c.b16 %v1276, %v1275
        %v1292 = vpack.c.b16 %v1278, %v1277
        %v1293 = vpack.c.b16 %v1280, %v1279
        %v1294 = vpack.c.b16 %v1282, %v1281
        %v1303 = vunpack.c.l.b16 %v1227
        %v1304 = vunpack.c.l.b16 %v1228
        %v1305 = vunpack.c.l.b16 %v1229
        %v1306 = vunpack.c.l.b16 %v1230
        %v1307 = vunpack.c.l.b16 %v1231
        %v1308 = vunpack.c.l.b16 %v1232
        %v1309 = vunpack.c.l.b16 %v1233
        %v1310 = vunpack.c.l.b16 %v1234
        %v1311 = vpack.c.b16 %v1304, %v1303
        %v1312 = vpack.c.b16 %v1306, %v1305
        %v1313 = vpack.c.b16 %v1308, %v1307
        %v1314 = vpack.c.b16 %v1310, %v1309
        %v1320 = vsel %vm448, %v1283, 0
        %v1323 = vsel %vm448, %v1284, 0
        %v1326 = vsel %vm448, %v1285, 0
        %v1329 = vsel %vm448, %v1286, 0
        %v1332 = vsel %vm448, %v1287, 0
        %v1335 = vsel %vm448, %v1288, 0
        %v1338 = vsel %vm448, %v1289, 0
        %v1341 = vsel %vm448, %v1290, 0
        %v1344 = vsel %vm448, %v1291, 0
        %v1347 = vsel %vm448, %v1292, 0
        %v1350 = vsel %vm448, %v1293, 0
        %v1353 = vsel %vm448, %v1294, 0
        %1355 = vmatprep.subr.bf16.mxu0 0
        %1356 = vmatpush1.bf16.msra.mxu0 %v1311
        %1357 = vmatprep.subr.bf16.mxu0 0
        %1358 = vmatpush1.bf16.msra.mxu0 %v1312
        %1359 = vmatprep.subr.bf16.mxu0 0
        %1360 = vmatpush1.bf16.msra.mxu0 %v1313
        %1361 = vmatprep.subr.bf16.mxu0 0
        %1362 = vmatpush1.bf16.msra.mxu0 %v1314
        %1363 = vmatprep.subr.bf16.mxu0 0
        %1364 = vmatpush1.bf16.msra.mxu0 0
        %1365 = vmatprep.subr.bf16.mxu0 0
        %1366 = vmatpush1.bf16.msra.mxu0 0
        %1367 = vmatprep.subr.bf16.mxu0 0
        %1368 = vmatpush1.bf16.msra.mxu0 0
        %1369 = vmatprep.subr.bf16.mxu0 0
        %1370 = vmatpush1.bf16.msra.mxu0 0
        %1371 = vmatprep.subr.bf16.mxu0 0
        %1372 = vmatpush1.bf16.msra.mxu0 0
        %1373 = vmatprep.subr.bf16.mxu0 0
        %1374 = vmatpush1.bf16.msra.mxu0 0
        %1375 = vmatprep.subr.bf16.mxu0 0
        %1376 = vmatpush1.bf16.msra.mxu0 0
        %1377 = vmatprep.subr.bf16.mxu0 0
        %1378 = vmatpush1.bf16.msra.mxu0 0
        %1379 = vmatprep.subr.bf16.mxu0 0
        %1380 = vmatpush1.bf16.msra.mxu0 0
        %1381 = vmatprep.subr.bf16.mxu0 0
        %1382 = vmatpush1.bf16.msra.mxu0 0
        %1383 = vmatprep.subr.bf16.mxu0 0
        %1384 = vmatpush1.bf16.msra.mxu0 0
        %1385 = vmatprep.subr.bf16.mxu0 0
        %1386 = vmatpush1.bf16.msra.mxu0 0
        %1387 = vmatprep.mubr.bf16.mxu0 0
        %1388 = vmatmul.mubr.bf16.gmra.mrb[0].mxu0 %v1320
        %v1389 = vpop.f32.mrb[0].mxu0
        %v1390 = vadd.f32 0.0, %v1389
        %v1391 = vpop.f32.mrb[0].mxu0
        %v1392 = vpop.f32.mrb[0].mxu0
        %v1393 = vadd.f32 0.0, %v1392
        %v1394 = vpop.f32.mrb[0].mxu0
        %1395 = vmatprep.mubr.bf16.mxu0 0
        %1396 = vmatmul.mubr.bf16.gmra.mrb[0].mxu0 %v1323
        %v1397 = vpop.f32.mrb[0].mxu0
        %v1398 = vadd.f32 0.0, %v1397
        %v1399 = vpop.f32.mrb[0].mxu0
        %v1400 = vpop.f32.mrb[0].mxu0
        %v1401 = vadd.f32 0.0, %v1400
        %v1402 = vpop.f32.mrb[0].mxu0
        %1403 = vmatprep.mubr.bf16.mxu0 0
        %1404 = vmatmul.mubr.bf16.gmra.mrb[0].mxu0 %v1326
        %v1405 = vpop.f32.mrb[0].mxu0
        %v1406 = vadd.f32 0.0, %v1405
        %v1407 = vpop.f32.mrb[0].mxu0
        %v1408 = vpop.f32.mrb[0].mxu0
        %v1409 = vadd.f32 0.0, %v1408
        %v1410 = vpop.f32.mrb[0].mxu0
        %1411 = vmatprep.mubr.bf16.mxu0 0
        %1412 = vmatmul.mubr.bf16.gmra.mrb[0].mxu0 %v1329
        %v1413 = vpop.f32.mrb[0].mxu0
        %v1414 = vadd.f32 0.0, %v1413
        %v1415 = vpop.f32.mrb[0].mxu0
        %v1416 = vpop.f32.mrb[0].mxu0
        %v1417 = vadd.f32 0.0, %v1416
        %v1418 = vpop.f32.mrb[0].mxu0
        %1419 = vmatprep.mubr.bf16.mxu0 0
        %1420 = vmatmul.mubr.bf16.gmra.mrb[0].mxu0 %v1332
        %v1421 = vpop.f32.mrb[0].mxu0
        %v1422 = vadd.f32 0.0, %v1421
        %v1423 = vpop.f32.mrb[0].mxu0
        %v1424 = vpop.f32.mrb[0].mxu0
        %v1425 = vadd.f32 0.0, %v1424
        %v1426 = vpop.f32.mrb[0].mxu0
        %1427 = vmatprep.mubr.bf16.mxu0 0
        %1428 = vmatmul.mubr.bf16.gmra.mrb[0].mxu0 %v1335
        %v1429 = vpop.f32.mrb[0].mxu0
        %v1430 = vadd.f32 0.0, %v1429
        %v1431 = vpop.f32.mrb[0].mxu0
        %v1432 = vpop.f32.mrb[0].mxu0
        %v1433 = vadd.f32 0.0, %v1432
        %v1434 = vpop.f32.mrb[0].mxu0
        %1435 = vmatprep.mubr.bf16.mxu0 0
        %1436 = vmatmul.mubr.bf16.gmra.mrb[0].mxu0 %v1338
        %v1437 = vpop.f32.mrb[0].mxu0
        %v1438 = vadd.f32 0.0, %v1437
        %v1439 = vpop.f32.mrb[0].mxu0
        %v1440 = vpop.f32.mrb[0].mxu0
        %v1441 = vadd.f32 0.0, %v1440
        %v1442 = vpop.f32.mrb[0].mxu0
        %1443 = vmatprep.mubr.bf16.mxu0 0
        %1444 = vmatmul.mubr.bf16.gmra.mrb[0].mxu0 %v1341
        %v1445 = vpop.f32.mrb[0].mxu0
        %v1446 = vadd.f32 0.0, %v1445
        %v1447 = vpop.f32.mrb[0].mxu0
        %v1448 = vpop.f32.mrb[0].mxu0
        %v1449 = vadd.f32 0.0, %v1448
        %v1450 = vpop.f32.mrb[0].mxu0
        %1451 = vmatprep.mubr.bf16.mxu0 0
        %1452 = vmatmul.mubr.bf16.gmra.mrb[0].mxu0 %v1344
        %v1453 = vpop.f32.mrb[0].mxu0
        %v1454 = vadd.f32 0.0, %v1453
        %v1455 = vpop.f32.mrb[0].mxu0
        %v1456 = vpop.f32.mrb[0].mxu0
        %v1457 = vadd.f32 0.0, %v1456
        %v1458 = vpop.f32.mrb[0].mxu0
        %1459 = vmatprep.mubr.bf16.mxu0 0
        %1460 = vmatmul.mubr.bf16.gmra.mrb[0].mxu0 %v1347
        %v1461 = vpop.f32.mrb[0].mxu0
        %v1462 = vadd.f32 0.0, %v1461
        %v1463 = vpop.f32.mrb[0].mxu0
        %v1464 = vpop.f32.mrb[0].mxu0
        %v1465 = vadd.f32 0.0, %v1464
        %v1466 = vpop.f32.mrb[0].mxu0
        %1467 = vmatprep.mubr.bf16.mxu0 0
        %1468 = vmatmul.mubr.bf16.gmra.mrb[0].mxu0 %v1350
        %v1469 = vpop.f32.mrb[0].mxu0
        %v1470 = vadd.f32 0.0, %v1469
        %v1471 = vpop.f32.mrb[0].mxu0
        %v1472 = vpop.f32.mrb[0].mxu0
        %v1473 = vadd.f32 0.0, %v1472
        %v1474 = vpop.f32.mrb[0].mxu0
        %1475 = vmatprep.mubr.bf16.mxu0 0
        %1476 = vmatmul.mubr.bf16.gmra.mrb[0].mxu0 %v1353
        %v1477 = vpop.f32.mrb[0].mxu0
        %v1478 = vadd.f32 0.0, %v1477
        %v1479 = vpop.f32.mrb[0].mxu0
        %v1480 = vpop.f32.mrb[0].mxu0
        %v1481 = vadd.f32 0.0, %v1480
        %v1482 = vpop.f32.mrb[0].mxu0
        %1483 = vdwg.mxu0
        %v1484 = vld [vmem:[#allocation2] sm:$0xff]
        %v1485 = vld [vmem:[#allocation2 + $0x8] sm:$0xff]
        %v1486 = vld [vmem:[#allocation2 + $0x10] sm:$0xff]
        %v1487 = vld [vmem:[#allocation2 + $0x18] sm:$0xff]
        %v1488 = vld [vmem:[#allocation2 + $0x20] sm:$0xff]
        %v1489 = vld [vmem:[#allocation2 + $0x28] sm:$0xff]
        %v1490 = vld [vmem:[#allocation2 + $0x30] sm:$0xff]
        %v1491 = vld [vmem:[#allocation2 + $0x38] sm:$0xff]
        %v1492 = vld [vmem:[#allocation2 + $0x40] sm:$0xff]
        %v1493 = vld [vmem:[#allocation2 + $0x48] sm:$0xff]
        %v1494 = vld [vmem:[#allocation2 + $0x50] sm:$0xff]
        %v1495 = vld [vmem:[#allocation2 + $0x58] sm:$0xff]
        %v1496 = vld [vmem:[#allocation2 + $0x60] sm:$0xff]
        %v1497 = vld [vmem:[#allocation2 + $0x68] sm:$0xff]
        %v1498 = vld [vmem:[#allocation2 + $0x70] sm:$0xff]
        %v1499 = vld [vmem:[#allocation2 + $0x78] sm:$0xff]
        %v1500 = vld [vmem:[#allocation2 + $0x80] sm:$0xff]
        %v1501 = vld [vmem:[#allocation2 + $0x88] sm:$0xff]
        %v1502 = vld [vmem:[#allocation2 + $0x90] sm:$0xff]
        %v1503 = vld [vmem:[#allocation2 + $0x98] sm:$0xff]
        %v1504 = vld [vmem:[#allocation2 + $0xa0] sm:$0xff]
        %v1505 = vld [vmem:[#allocation2 + $0xa8] sm:$0xff]
        %v1506 = vld [vmem:[#allocation2 + $0xb0] sm:$0xff]
        %v1507 = vld [vmem:[#allocation2 + $0xb8] sm:$0xff]
        %v1508 = vadd.f32 %v1484, %v1390
        %v1509 = vadd.f32 %v1485, %v1393
        %v1510 = vadd.f32 %v1486, %v1398
        %v1511 = vadd.f32 %v1487, %v1401
        %v1512 = vadd.f32 %v1488, %v1406
        %v1513 = vadd.f32 %v1489, %v1409
        %v1514 = vadd.f32 %v1490, %v1414
        %v1515 = vadd.f32 %v1491, %v1417
        %v1516 = vadd.f32 %v1492, %v1422
        %v1517 = vadd.f32 %v1493, %v1425
        %v1518 = vadd.f32 %v1494, %v1430
        %v1519 = vadd.f32 %v1495, %v1433
        %v1520 = vadd.f32 %v1496, %v1438
        %v1521 = vadd.f32 %v1497, %v1441
        %v1522 = vadd.f32 %v1498, %v1446
        %v1523 = vadd.f32 %v1499, %v1449
        %v1524 = vadd.f32 %v1500, %v1454
        %v1525 = vadd.f32 %v1501, %v1457
        %v1526 = vadd.f32 %v1502, %v1462
        %v1527 = vadd.f32 %v1503, %v1465
        %v1528 = vadd.f32 %v1504, %v1470
        %v1529 = vadd.f32 %v1505, %v1473
        %v1530 = vadd.f32 %v1506, %v1478
        %v1531 = vadd.f32 %v1507, %v1481
        %1532 = vst [vmem:[#allocation2] sm:$0xff] %v1508
        %1533 = vst [vmem:[#allocation2 + $0x8] sm:$0xff] %v1509
        %1534 = vst [vmem:[#allocation2 + $0x10] sm:$0xff] %v1510
        %1535 = vst [vmem:[#allocation2 + $0x18] sm:$0xff] %v1511
        %1536 = vst [vmem:[#allocation2 + $0x20] sm:$0xff] %v1512
        %1537 = vst [vmem:[#allocation2 + $0x28] sm:$0xff] %v1513
        %1538 = vst [vmem:[#allocation2 + $0x30] sm:$0xff] %v1514
        %1539 = vst [vmem:[#allocation2 + $0x38] sm:$0xff] %v1515
        %1540 = vst [vmem:[#allocation2 + $0x40] sm:$0xff] %v1516
        %1541 = vst [vmem:[#allocation2 + $0x48] sm:$0xff] %v1517
        %1542 = vst [vmem:[#allocation2 + $0x50] sm:$0xff] %v1518
        %1543 = vst [vmem:[#allocation2 + $0x58] sm:$0xff] %v1519
        %1544 = vst [vmem:[#allocation2 + $0x60] sm:$0xff] %v1520
        %1545 = vst [vmem:[#allocation2 + $0x68] sm:$0xff] %v1521
        %1546 = vst [vmem:[#allocation2 + $0x70] sm:$0xff] %v1522
        %1547 = vst [vmem:[#allocation2 + $0x78] sm:$0xff] %v1523
        %1548 = vst [vmem:[#allocation2 + $0x80] sm:$0xff] %v1524
        %1549 = vst [vmem:[#allocation2 + $0x88] sm:$0xff] %v1525
        %1550 = vst [vmem:[#allocation2 + $0x90] sm:$0xff] %v1526
        %1551 = vst [vmem:[#allocation2 + $0x98] sm:$0xff] %v1527
        %1552 = vst [vmem:[#allocation2 + $0xa0] sm:$0xff] %v1528
        %1553 = vst [vmem:[#allocation2 + $0xa8] sm:$0xff] %v1529
        %1554 = vst [vmem:[#allocation2 + $0xb0] sm:$0xff] %v1530
        %1555 = vst [vmem:[#allocation2 + $0xb8] sm:$0xff] %v1531
        %v1556 = vld [vmem:[%s237 + $0x4] sm:$0x8]
        %v1557 = vld [vmem:[%s237 + $0x8] sm:$0xf]
        %v1558 = vld [vmem:[%s237 + $0xc] sm:$0xf]
        %v1559 = vld [vmem:[%s237 + $0x10] sm:$0xf]
        %v1560 = vld [vmem:[%s237 + $0x14] sm:$0xf]
        %v1561 = vld [vmem:[%s237 + $0x18] sm:$0xf]
        %v1562 = vld [vmem:[%s237 + $0x1c] sm:$0xf]
        %v1563 = vld [vmem:[%s237 + $0x20] sm:$0xf]
        %v1564 = vld [vmem:[%s237 + $0x24] sm:$0xf]
        %v1565 = vld [vmem:[%s237 + $0x34] sm:$0x8]
        %v1566 = vld [vmem:[%s237 + $0x38] sm:$0xf]
        %v1567 = vld [vmem:[%s237 + $0x3c] sm:$0xf]
        %v1568 = vld [vmem:[%s237 + $0x40] sm:$0xf]
        %v1569 = vld [vmem:[%s237 + $0x44] sm:$0xf]
        %v1570 = vld [vmem:[%s237 + $0x48] sm:$0xf]
        %v1571 = vld [vmem:[%s237 + $0x4c] sm:$0xf]
        %v1572 = vld [vmem:[%s237 + $0x50] sm:$0xf]
        %v1573 = vld [vmem:[%s237 + $0x54] sm:$0xf]
        %v1574 = vld [vmem:[%s237 + $0x64] sm:$0x8]
        %v1575 = vld [vmem:[%s237 + $0x68] sm:$0xf]
        %v1576 = vld [vmem:[%s237 + $0x6c] sm:$0xf]
        %v1577 = vld [vmem:[%s237 + $0x70] sm:$0xf]
        %v1578 = vld [vmem:[%s237 + $0x74] sm:$0xf]
        %v1579 = vld [vmem:[%s237 + $0x78] sm:$0xf]
        %v1580 = vld [vmem:[%s237 + $0x7c] sm:$0xf]
        %v1581 = vld [vmem:[%s237 + $0x80] sm:$0xf]
        %v1582 = vld [vmem:[%s237 + $0x84] sm:$0xf]
        %v1584 = vshrl.u32 %v1556, 16
        %v1586 = vrot.slane %v1584, 7
        %v1587 = vrot.slane %v1586, 4
        %v1589 = vshrl.u32 %v1557, 16
        %v1591 = vrot.slane %v1589, 7
        %v1592 = vshll.u32 %v1557, 16
        %v1594 = vor.u32 %v1591, %v1592
        %v1595 = vsel %vm667, %v1587, %v1594
        %v1596 = vrot.slane %v1591, 4
        %v1598 = vshrl.u32 %v1558, 16
        %v1600 = vrot.slane %v1598, 7
        %v1601 = vshll.u32 %v1558, 16
        %v1603 = vor.u32 %v1600, %v1601
        %v1604 = vsel %vm667, %v1596, %v1603
        %v1605 = vrot.slane %v1600, 4
        %v1607 = vshrl.u32 %v1559, 16
        %v1609 = vrot.slane %v1607, 7
        %v1610 = vshll.u32 %v1559, 16
        %v1612 = vor.u32 %v1609, %v1610
        %v1613 = vsel %vm667, %v1605, %v1612
        %v1614 = vrot.slane %v1609, 4
        %v1616 = vshrl.u32 %v1560, 16
        %v1618 = vrot.slane %v1616, 7
        %v1619 = vshll.u32 %v1560, 16
        %v1621 = vor.u32 %v1618, %v1619
        %v1622 = vsel %vm667, %v1614, %v1621
        %v1623 = vrot.slane %v1618, 4
        %v1625 = vshrl.u32 %v1561, 16
        %v1627 = vrot.slane %v1625, 7
        %v1628 = vshll.u32 %v1561, 16
        %v1630 = vor.u32 %v1627, %v1628
        %v1631 = vsel %vm667, %v1623, %v1630
        %v1632 = vrot.slane %v1627, 4
        %v1634 = vshrl.u32 %v1562, 16
        %v1636 = vrot.slane %v1634, 7
        %v1637 = vshll.u32 %v1562, 16
        %v1639 = vor.u32 %v1636, %v1637
        %v1640 = vsel %vm667, %v1632, %v1639
        %v1641 = vrot.slane %v1636, 4
        %v1643 = vshrl.u32 %v1563, 16
        %v1645 = vrot.slane %v1643, 7
        %v1646 = vshll.u32 %v1563, 16
        %v1648 = vor.u32 %v1645, %v1646
        %v1649 = vsel %vm667, %v1641, %v1648
        %v1650 = vrot.slane %v1645, 4
        %v1652 = vshrl.u32 %v1564, 16
        %v1654 = vrot.slane %v1652, 7
        %v1655 = vshll.u32 %v1564, 16
        %v1657 = vor.u32 %v1654, %v1655
        %v1658 = vsel %vm667, %v1650, %v1657
        %v1660 = vshrl.u32 %v1565, 16
        %v1662 = vrot.slane %v1660, 7
        %v1663 = vrot.slane %v1662, 4
        %v1665 = vshrl.u32 %v1566, 16
        %v1667 = vrot.slane %v1665, 7
        %v1668 = vshll.u32 %v1566, 16
        %v1670 = vor.u32 %v1667, %v1668
        %v1671 = vsel %vm667, %v1663, %v1670
        %v1672 = vrot.slane %v1667, 4
        %v1674 = vshrl.u32 %v1567, 16
        %v1676 = vrot.slane %v1674, 7
        %v1677 = vshll.u32 %v1567, 16
        %v1679 = vor.u32 %v1676, %v1677
        %v1680 = vsel %vm667, %v1672, %v1679
        %v1681 = vrot.slane %v1676, 4
        %v1683 = vshrl.u32 %v1568, 16
        %v1685 = vrot.slane %v1683, 7
        %v1686 = vshll.u32 %v1568, 16
        %v1688 = vor.u32 %v1685, %v1686
        %v1689 = vsel %vm667, %v1681, %v1688
        %v1690 = vrot.slane %v1685, 4
        %v1692 = vshrl.u32 %v1569, 16
        %v1694 = vrot.slane %v1692, 7
        %v1695 = vshll.u32 %v1569, 16
        %v1697 = vor.u32 %v1694, %v1695
        %v1698 = vsel %vm667, %v1690, %v1697
        %v1699 = vrot.slane %v1694, 4
        %v1701 = vshrl.u32 %v1570, 16
        %v1703 = vrot.slane %v1701, 7
        %v1704 = vshll.u32 %v1570, 16
        %v1706 = vor.u32 %v1703, %v1704
        %v1707 = vsel %vm667, %v1699, %v1706
        %v1708 = vrot.slane %v1703, 4
        %v1710 = vshrl.u32 %v1571, 16
        %v1712 = vrot.slane %v1710, 7
        %v1713 = vshll.u32 %v1571, 16
        %v1715 = vor.u32 %v1712, %v1713
        %v1716 = vsel %vm667, %v1708, %v1715
        %v1717 = vrot.slane %v1712, 4
        %v1719 = vshrl.u32 %v1572, 16
        %v1721 = vrot.slane %v1719, 7
        %v1722 = vshll.u32 %v1572, 16
        %v1724 = vor.u32 %v1721, %v1722
        %v1725 = vsel %vm667, %v1717, %v1724
        %v1726 = vrot.slane %v1721, 4
        %v1728 = vshrl.u32 %v1573, 16
        %v1730 = vrot.slane %v1728, 7
        %v1731 = vshll.u32 %v1573, 16
        %v1733 = vor.u32 %v1730, %v1731
        %v1734 = vsel %vm667, %v1726, %v1733
        %v1736 = vshrl.u32 %v1574, 16
        %v1738 = vrot.slane %v1736, 7
        %v1739 = vrot.slane %v1738, 4
        %v1741 = vshrl.u32 %v1575, 16
        %v1743 = vrot.slane %v1741, 7
        %v1744 = vshll.u32 %v1575, 16
        %v1746 = vor.u32 %v1743, %v1744
        %v1747 = vsel %vm667, %v1739, %v1746
        %v1748 = vrot.slane %v1743, 4
        %v1750 = vshrl.u32 %v1576, 16
        %v1752 = vrot.slane %v1750, 7
        %v1753 = vshll.u32 %v1576, 16
        %v1755 = vor.u32 %v1752, %v1753
        %v1756 = vsel %vm667, %v1748, %v1755
        %v1757 = vrot.slane %v1752, 4
        %v1759 = vshrl.u32 %v1577, 16
        %v1761 = vrot.slane %v1759, 7
        %v1762 = vshll.u32 %v1577, 16
        %v1764 = vor.u32 %v1761, %v1762
        %v1765 = vsel %vm667, %v1757, %v1764
        %v1766 = vrot.slane %v1761, 4
        %v1768 = vshrl.u32 %v1578, 16
        %v1770 = vrot.slane %v1768, 7
        %v1771 = vshll.u32 %v1578, 16
        %v1773 = vor.u32 %v1770, %v1771
        %v1774 = vsel %vm667, %v1766, %v1773
        %v1775 = vrot.slane %v1770, 4
        %v1777 = vshrl.u32 %v1579, 16
        %v1779 = vrot.slane %v1777, 7
        %v1780 = vshll.u32 %v1579, 16
        %v1782 = vor.u32 %v1779, %v1780
        %v1783 = vsel %vm667, %v1775, %v1782
        %v1784 = vrot.slane %v1779, 4
        %v1786 = vshrl.u32 %v1580, 16
        %v1788 = vrot.slane %v1786, 7
        %v1789 = vshll.u32 %v1580, 16
        %v1791 = vor.u32 %v1788, %v1789
        %v1792 = vsel %vm667, %v1784, %v1791
        %v1793 = vrot.slane %v1788, 4
        %v1795 = vshrl.u32 %v1581, 16
        %v1797 = vrot.slane %v1795, 7
        %v1798 = vshll.u32 %v1581, 16
        %v1800 = vor.u32 %v1797, %v1798
        %v1801 = vsel %vm667, %v1793, %v1800
        %v1802 = vrot.slane %v1797, 4
        %v1804 = vshrl.u32 %v1582, 16
        %v1806 = vrot.slane %v1804, 7
        %v1807 = vshll.u32 %v1582, 16
        %v1809 = vor.u32 %v1806, %v1807
        %v1810 = vsel %vm667, %v1802, %v1809
        %s1811 = scalar_lea.vmem %s242, 96
        %v1812 = vld [vmem:[%s1811] sm:$0xf]
        %v1813 = vld [vmem:[%s1811 + $0x4] sm:$0xf]
        %v1814 = vld [vmem:[%s1811 + $0x8] sm:$0xf]
        %v1815 = vld [vmem:[%s1811 + $0xc] sm:$0xf]
        %v1816 = vld [vmem:[%s1811 + $0x10] sm:$0xf]
        %v1817 = vld [vmem:[%s1811 + $0x14] sm:$0xf]
        %v1818 = vld [vmem:[%s1811 + $0x18] sm:$0xf]
        %v1819 = vld [vmem:[%s1811 + $0x1c] sm:$0xf]
        %v1820 = vunpack.c.l.b16 %v1595
        %v1821 = vunpack.c.l.b16 %v1604
        %v1822 = vunpack.c.l.b16 %v1613
        %v1823 = vunpack.c.l.b16 %v1622
        %v1824 = vunpack.c.l.b16 %v1631
        %v1825 = vunpack.c.l.b16 %v1640
        %v1826 = vunpack.c.l.b16 %v1649
        %v1827 = vunpack.c.l.b16 %v1658
        %v1828 = vunpack.c.l.b16 %v1671
        %v1829 = vunpack.c.l.b16 %v1680
        %v1830 = vunpack.c.l.b16 %v1689
        %v1831 = vunpack.c.l.b16 %v1698
        %v1832 = vunpack.c.l.b16 %v1707
        %v1833 = vunpack.c.l.b16 %v1716
        %v1834 = vunpack.c.l.b16 %v1725
        %v1835 = vunpack.c.l.b16 %v1734
        %v1836 = vunpack.c.l.b16 %v1747
        %v1837 = vunpack.c.l.b16 %v1756
        %v1838 = vunpack.c.l.b16 %v1765
        %v1839 = vunpack.c.l.b16 %v1774
        %v1840 = vunpack.c.l.b16 %v1783
        %v1841 = vunpack.c.l.b16 %v1792
        %v1842 = vunpack.c.l.b16 %v1801
        %v1843 = vunpack.c.l.b16 %v1810
        %v1844 = vpack.c.b16 %v1821, %v1820
        %v1845 = vpack.c.b16 %v1823, %v1822
        %v1846 = vpack.c.b16 %v1825, %v1824
        %v1847 = vpack.c.b16 %v1827, %v1826
        %v1848 = vpack.c.b16 %v1829, %v1828
        %v1849 = vpack.c.b16 %v1831, %v1830
        %v1850 = vpack.c.b16 %v1833, %v1832
        %v1851 = vpack.c.b16 %v1835, %v1834
        %v1852 = vpack.c.b16 %v1837, %v1836
        %v1853 = vpack.c.b16 %v1839, %v1838
        %v1854 = vpack.c.b16 %v1841, %v1840
        %v1855 = vpack.c.b16 %v1843, %v1842
        %v1864 = vunpack.c.l.b16 %v1812
        %v1865 = vunpack.c.l.b16 %v1813
        %v1866 = vunpack.c.l.b16 %v1814
        %v1867 = vunpack.c.l.b16 %v1815
        %v1868 = vunpack.c.l.b16 %v1816
        %v1869 = vunpack.c.l.b16 %v1817
        %v1870 = vunpack.c.l.b16 %v1818
        %v1871 = vunpack.c.l.b16 %v1819
        %v1872 = vpack.c.b16 %v1865, %v1864
        %v1873 = vpack.c.b16 %v1867, %v1866
        %v1874 = vpack.c.b16 %v1869, %v1868
        %v1875 = vpack.c.b16 %v1871, %v1870
        %v1881 = vsel %vm448, %v1844, 0
        %v1884 = vsel %vm448, %v1845, 0
        %v1887 = vsel %vm448, %v1846, 0
        %v1890 = vsel %vm448, %v1847, 0
        %v1893 = vsel %vm448, %v1848, 0
        %v1896 = vsel %vm448, %v1849, 0
        %v1899 = vsel %vm448, %v1850, 0
        %v1902 = vsel %vm448, %v1851, 0
        %v1905 = vsel %vm448, %v1852, 0
        %v1908 = vsel %vm448, %v1853, 0
        %v1911 = vsel %vm448, %v1854, 0
        %v1914 = vsel %vm448, %v1855, 0
        %1916 = vmatprep.subr.bf16.mxu0 0
        %1917 = vmatpush1.bf16.msra.mxu0 %v1872
        %1918 = vmatprep.subr.bf16.mxu0 0
        %1919 = vmatpush1.bf16.msra.mxu0 %v1873
        %1920 = vmatprep.subr.bf16.mxu0 0
        %1921 = vmatpush1.bf16.msra.mxu0 %v1874
        %1922 = vmatprep.subr.bf16.mxu0 0
        %1923 = vmatpush1.bf16.msra.mxu0 %v1875
        %1924 = vmatprep.subr.bf16.mxu0 0
        %1925 = vmatpush1.bf16.msra.mxu0 0
        %1926 = vmatprep.subr.bf16.mxu0 0
        %1927 = vmatpush1.bf16.msra.mxu0 0
        %1928 = vmatprep.subr.bf16.mxu0 0
        %1929 = vmatpush1.bf16.msra.mxu0 0
        %1930 = vmatprep.subr.bf16.mxu0 0
        %1931 = vmatpush1.bf16.msra.mxu0 0
        %1932 = vmatprep.subr.bf16.mxu0 0
        %1933 = vmatpush1.bf16.msra.mxu0 0
        %1934 = vmatprep.subr.bf16.mxu0 0
        %1935 = vmatpush1.bf16.msra.mxu0 0
        %1936 = vmatprep.subr.bf16.mxu0 0
        %1937 = vmatpush1.bf16.msra.mxu0 0
        %1938 = vmatprep.subr.bf16.mxu0 0
        %1939 = vmatpush1.bf16.msra.mxu0 0
        %1940 = vmatprep.subr.bf16.mxu0 0
        %1941 = vmatpush1.bf16.msra.mxu0 0
        %1942 = vmatprep.subr.bf16.mxu0 0
        %1943 = vmatpush1.bf16.msra.mxu0 0
        %1944 = vmatprep.subr.bf16.mxu0 0
        %1945 = vmatpush1.bf16.msra.mxu0 0
        %1946 = vmatprep.subr.bf16.mxu0 0
        %1947 = vmatpush1.bf16.msra.mxu0 0
        %1948 = vmatprep.mubr.bf16.mxu0 0
        %1949 = vmatmul.mubr.bf16.gmra.mrb[0].mxu0 %v1881
        %v1950 = vpop.f32.mrb[0].mxu0
        %v1951 = vadd.f32 0.0, %v1950
        %v1952 = vpop.f32.mrb[0].mxu0
        %v1953 = vpop.f32.mrb[0].mxu0
        %v1954 = vadd.f32 0.0, %v1953
        %v1955 = vpop.f32.mrb[0].mxu0
        %1956 = vmatprep.mubr.bf16.mxu0 0
        %1957 = vmatmul.mubr.bf16.gmra.mrb[0].mxu0 %v1884
        %v1958 = vpop.f32.mrb[0].mxu0
        %v1959 = vadd.f32 0.0, %v1958
        %v1960 = vpop.f32.mrb[0].mxu0
        %v1961 = vpop.f32.mrb[0].mxu0
        %v1962 = vadd.f32 0.0, %v1961
        %v1963 = vpop.f32.mrb[0].mxu0
        %1964 = vmatprep.mubr.bf16.mxu0 0
        %1965 = vmatmul.mubr.bf16.gmra.mrb[0].mxu0 %v1887
        %v1966 = vpop.f32.mrb[0].mxu0
        %v1967 = vadd.f32 0.0, %v1966
        %v1968 = vpop.f32.mrb[0].mxu0
        %v1969 = vpop.f32.mrb[0].mxu0
        %v1970 = vadd.f32 0.0, %v1969
        %v1971 = vpop.f32.mrb[0].mxu0
        %1972 = vmatprep.mubr.bf16.mxu0 0
        %1973 = vmatmul.mubr.bf16.gmra.mrb[0].mxu0 %v1890
        %v1974 = vpop.f32.mrb[0].mxu0
        %v1975 = vadd.f32 0.0, %v1974
        %v1976 = vpop.f32.mrb[0].mxu0
        %v1977 = vpop.f32.mrb[0].mxu0
        %v1978 = vadd.f32 0.0, %v1977
        %v1979 = vpop.f32.mrb[0].mxu0
        %1980 = vmatprep.mubr.bf16.mxu0 0
        %1981 = vmatmul.mubr.bf16.gmra.mrb[0].mxu0 %v1893
        %v1982 = vpop.f32.mrb[0].mxu0
        %v1983 = vadd.f32 0.0, %v1982
        %v1984 = vpop.f32.mrb[0].mxu0
        %v1985 = vpop.f32.mrb[0].mxu0
        %v1986 = vadd.f32 0.0, %v1985
        %v1987 = vpop.f32.mrb[0].mxu0
        %1988 = vmatprep.mubr.bf16.mxu0 0
        %1989 = vmatmul.mubr.bf16.gmra.mrb[0].mxu0 %v1896
        %v1990 = vpop.f32.mrb[0].mxu0
        %v1991 = vadd.f32 0.0, %v1990
        %v1992 = vpop.f32.mrb[0].mxu0
        %v1993 = vpop.f32.mrb[0].mxu0
        %v1994 = vadd.f32 0.0, %v1993
        %v1995 = vpop.f32.mrb[0].mxu0
        %1996 = vmatprep.mubr.bf16.mxu0 0
        %1997 = vmatmul.mubr.bf16.gmra.mrb[0].mxu0 %v1899
        %v1998 = vpop.f32.mrb[0].mxu0
        %v1999 = vadd.f32 0.0, %v1998
        %v2000 = vpop.f32.mrb[0].mxu0
        %v2001 = vpop.f32.mrb[0].mxu0
        %v2002 = vadd.f32 0.0, %v2001
        %v2003 = vpop.f32.mrb[0].mxu0
        %2004 = vmatprep.mubr.bf16.mxu0 0
        %2005 = vmatmul.mubr.bf16.gmra.mrb[0].mxu0 %v1902
        %v2006 = vpop.f32.mrb[0].mxu0
        %v2007 = vadd.f32 0.0, %v2006
        %v2008 = vpop.f32.mrb[0].mxu0
        %v2009 = vpop.f32.mrb[0].mxu0
        %v2010 = vadd.f32 0.0, %v2009
        %v2011 = vpop.f32.mrb[0].mxu0
        %2012 = vmatprep.mubr.bf16.mxu0 0
        %2013 = vmatmul.mubr.bf16.gmra.mrb[0].mxu0 %v1905
        %v2014 = vpop.f32.mrb[0].mxu0
        %v2015 = vadd.f32 0.0, %v2014
        %v2016 = vpop.f32.mrb[0].mxu0
        %v2017 = vpop.f32.mrb[0].mxu0
        %v2018 = vadd.f32 0.0, %v2017
        %v2019 = vpop.f32.mrb[0].mxu0
        %2020 = vmatprep.mubr.bf16.mxu0 0
        %2021 = vmatmul.mubr.bf16.gmra.mrb[0].mxu0 %v1908
        %v2022 = vpop.f32.mrb[0].mxu0
        %v2023 = vadd.f32 0.0, %v2022
        %v2024 = vpop.f32.mrb[0].mxu0
        %v2025 = vpop.f32.mrb[0].mxu0
        %v2026 = vadd.f32 0.0, %v2025
        %v2027 = vpop.f32.mrb[0].mxu0
        %2028 = vmatprep.mubr.bf16.mxu0 0
        %2029 = vmatmul.mubr.bf16.gmra.mrb[0].mxu0 %v1911
        %v2030 = vpop.f32.mrb[0].mxu0
        %v2031 = vadd.f32 0.0, %v2030
        %v2032 = vpop.f32.mrb[0].mxu0
        %v2033 = vpop.f32.mrb[0].mxu0
        %v2034 = vadd.f32 0.0, %v2033
        %v2035 = vpop.f32.mrb[0].mxu0
        %2036 = vmatprep.mubr.bf16.mxu0 0
        %2037 = vmatmul.mubr.bf16.gmra.mrb[0].mxu0 %v1914
        %v2038 = vpop.f32.mrb[0].mxu0
        %v2039 = vadd.f32 0.0, %v2038
        %v2040 = vpop.f32.mrb[0].mxu0
        %v2041 = vpop.f32.mrb[0].mxu0
        %v2042 = vadd.f32 0.0, %v2041
        %v2043 = vpop.f32.mrb[0].mxu0
        %2044 = vdwg.mxu0
        %v2045 = vld [vmem:[#allocation2] sm:$0xff]
        %v2046 = vld [vmem:[#allocation2 + $0x8] sm:$0xff]
        %v2047 = vld [vmem:[#allocation2 + $0x10] sm:$0xff]
        %v2048 = vld [vmem:[#allocation2 + $0x18] sm:$0xff]
        %v2049 = vld [vmem:[#allocation2 + $0x20] sm:$0xff]
        %v2050 = vld [vmem:[#allocation2 + $0x28] sm:$0xff]
        %v2051 = vld [vmem:[#allocation2 + $0x30] sm:$0xff]
        %v2052 = vld [vmem:[#allocation2 + $0x38] sm:$0xff]
        %v2053 = vld [vmem:[#allocation2 + $0x40] sm:$0xff]
        %v2054 = vld [vmem:[#allocation2 + $0x48] sm:$0xff]
        %v2055 = vld [vmem:[#allocation2 + $0x50] sm:$0xff]
        %v2056 = vld [vmem:[#allocation2 + $0x58] sm:$0xff]
        %v2057 = vld [vmem:[#allocation2 + $0x60] sm:$0xff]
        %v2058 = vld [vmem:[#allocation2 + $0x68] sm:$0xff]
        %v2059 = vld [vmem:[#allocation2 + $0x70] sm:$0xff]
        %v2060 = vld [vmem:[#allocation2 + $0x78] sm:$0xff]
        %v2061 = vld [vmem:[#allocation2 + $0x80] sm:$0xff]
        %v2062 = vld [vmem:[#allocation2 + $0x88] sm:$0xff]
        %v2063 = vld [vmem:[#allocation2 + $0x90] sm:$0xff]
        %v2064 = vld [vmem:[#allocation2 + $0x98] sm:$0xff]
        %v2065 = vld [vmem:[#allocation2 + $0xa0] sm:$0xff]
        %v2066 = vld [vmem:[#allocation2 + $0xa8] sm:$0xff]
        %v2067 = vld [vmem:[#allocation2 + $0xb0] sm:$0xff]
        %v2068 = vld [vmem:[#allocation2 + $0xb8] sm:$0xff]
        %v2069 = vadd.f32 %v2045, %v1951
        %v2070 = vadd.f32 %v2046, %v1954
        %v2071 = vadd.f32 %v2047, %v1959
        %v2072 = vadd.f32 %v2048, %v1962
        %v2073 = vadd.f32 %v2049, %v1967
        %v2074 = vadd.f32 %v2050, %v1970
        %v2075 = vadd.f32 %v2051, %v1975
        %v2076 = vadd.f32 %v2052, %v1978
        %v2077 = vadd.f32 %v2053, %v1983
        %v2078 = vadd.f32 %v2054, %v1986
        %v2079 = vadd.f32 %v2055, %v1991
        %v2080 = vadd.f32 %v2056, %v1994
        %v2081 = vadd.f32 %v2057, %v1999
        %v2082 = vadd.f32 %v2058, %v2002
        %v2083 = vadd.f32 %v2059, %v2007
        %v2084 = vadd.f32 %v2060, %v2010
        %v2085 = vadd.f32 %v2061, %v2015
        %v2086 = vadd.f32 %v2062, %v2018
        %v2087 = vadd.f32 %v2063, %v2023
        %v2088 = vadd.f32 %v2064, %v2026
        %v2089 = vadd.f32 %v2065, %v2031
        %v2090 = vadd.f32 %v2066, %v2034
        %v2091 = vadd.f32 %v2067, %v2039
        %v2092 = vadd.f32 %v2068, %v2042
        %2093 = vst [vmem:[#allocation2] sm:$0xff] %v2069
        %2094 = vst [vmem:[#allocation2 + $0x8] sm:$0xff] %v2070
        %2095 = vst [vmem:[#allocation2 + $0x10] sm:$0xff] %v2071
        %2096 = vst [vmem:[#allocation2 + $0x18] sm:$0xff] %v2072
        %2097 = vst [vmem:[#allocation2 + $0x20] sm:$0xff] %v2073
        %2098 = vst [vmem:[#allocation2 + $0x28] sm:$0xff] %v2074
        %2099 = vst [vmem:[#allocation2 + $0x30] sm:$0xff] %v2075
        %2100 = vst [vmem:[#allocation2 + $0x38] sm:$0xff] %v2076
        %2101 = vst [vmem:[#allocation2 + $0x40] sm:$0xff] %v2077
        %2102 = vst [vmem:[#allocation2 + $0x48] sm:$0xff] %v2078
        %2103 = vst [vmem:[#allocation2 + $0x50] sm:$0xff] %v2079
        %2104 = vst [vmem:[#allocation2 + $0x58] sm:$0xff] %v2080
        %2105 = vst [vmem:[#allocation2 + $0x60] sm:$0xff] %v2081
        %2106 = vst [vmem:[#allocation2 + $0x68] sm:$0xff] %v2082
        %2107 = vst [vmem:[#allocation2 + $0x70] sm:$0xff] %v2083
        %2108 = vst [vmem:[#allocation2 + $0x78] sm:$0xff] %v2084
        %2109 = vst [vmem:[#allocation2 + $0x80] sm:$0xff] %v2085
        %2110 = vst [vmem:[#allocation2 + $0x88] sm:$0xff] %v2086
        %2111 = vst [vmem:[#allocation2 + $0x90] sm:$0xff] %v2087
        %2112 = vst [vmem:[#allocation2 + $0x98] sm:$0xff] %v2088
        %2113 = vst [vmem:[#allocation2 + $0xa0] sm:$0xff] %v2089
        %2114 = vst [vmem:[#allocation2 + $0xa8] sm:$0xff] %v2090
        %2115 = vst [vmem:[#allocation2 + $0xb0] sm:$0xff] %v2091
        %2116 = vst [vmem:[#allocation2 + $0xb8] sm:$0xff] %v2092
        %v2117 = vld [vmem:[%s237 + $0x8] sm:$0xf]
        %v2118 = vld [vmem:[%s237 + $0xc] sm:$0xf]
        %v2119 = vld [vmem:[%s237 + $0x10] sm:$0xf]
        %v2120 = vld [vmem:[%s237 + $0x14] sm:$0xf]
        %v2121 = vld [vmem:[%s237 + $0x18] sm:$0xf]
        %v2122 = vld [vmem:[%s237 + $0x1c] sm:$0xf]
        %v2123 = vld [vmem:[%s237 + $0x20] sm:$0xf]
        %v2124 = vld [vmem:[%s237 + $0x24] sm:$0xf]
        %v2125 = vld [vmem:[%s237 + $0x38] sm:$0xf]
        %v2126 = vld [vmem:[%s237 + $0x3c] sm:$0xf]
        %v2127 = vld [vmem:[%s237 + $0x40] sm:$0xf]
        %v2128 = vld [vmem:[%s237 + $0x44] sm:$0xf]
        %v2129 = vld [vmem:[%s237 + $0x48] sm:$0xf]
        %v2130 = vld [vmem:[%s237 + $0x4c] sm:$0xf]
        %v2131 = vld [vmem:[%s237 + $0x50] sm:$0xf]
        %v2132 = vld [vmem:[%s237 + $0x54] sm:$0xf]
        %v2133 = vld [vmem:[%s237 + $0x68] sm:$0xf]
        %v2134 = vld [vmem:[%s237 + $0x6c] sm:$0xf]
        %v2135 = vld [vmem:[%s237 + $0x70] sm:$0xf]
        %v2136 = vld [vmem:[%s237 + $0x74] sm:$0xf]
        %v2137 = vld [vmem:[%s237 + $0x78] sm:$0xf]
        %v2138 = vld [vmem:[%s237 + $0x7c] sm:$0xf]
        %v2139 = vld [vmem:[%s237 + $0x80] sm:$0xf]
        %v2140 = vld [vmem:[%s237 + $0x84] sm:$0xf]
        %s2141 = scalar_lea.vmem %s242, 128
        %v2142 = vld [vmem:[%s2141] sm:$0xf]
        %v2143 = vld [vmem:[%s2141 + $0x4] sm:$0xf]
        %v2144 = vld [vmem:[%s2141 + $0x8] sm:$0xf]
        %v2145 = vld [vmem:[%s2141 + $0xc] sm:$0xf]
        %v2146 = vld [vmem:[%s2141 + $0x10] sm:$0xf]
        %v2147 = vld [vmem:[%s2141 + $0x14] sm:$0xf]
        %v2148 = vld [vmem:[%s2141 + $0x18] sm:$0xf]
        %v2149 = vld [vmem:[%s2141 + $0x1c] sm:$0xf]
        %v2174 = vunpack.c.l.b16 %v2117
        %v2175 = vunpack.c.l.b16 %v2118
        %v2176 = vunpack.c.l.b16 %v2119
        %v2177 = vunpack.c.l.b16 %v2120
        %v2178 = vunpack.c.l.b16 %v2121
        %v2179 = vunpack.c.l.b16 %v2122
        %v2180 = vunpack.c.l.b16 %v2123
        %v2181 = vunpack.c.l.b16 %v2124
        %v2182 = vunpack.c.l.b16 %v2125
        %v2183 = vunpack.c.l.b16 %v2126
        %v2184 = vunpack.c.l.b16 %v2127
        %v2185 = vunpack.c.l.b16 %v2128
        %v2186 = vunpack.c.l.b16 %v2129
        %v2187 = vunpack.c.l.b16 %v2130
        %v2188 = vunpack.c.l.b16 %v2131
        %v2189 = vunpack.c.l.b16 %v2132
        %v2190 = vunpack.c.l.b16 %v2133
        %v2191 = vunpack.c.l.b16 %v2134
        %v2192 = vunpack.c.l.b16 %v2135
        %v2193 = vunpack.c.l.b16 %v2136
        %v2194 = vunpack.c.l.b16 %v2137
        %v2195 = vunpack.c.l.b16 %v2138
        %v2196 = vunpack.c.l.b16 %v2139
        %v2197 = vunpack.c.l.b16 %v2140
        %v2198 = vpack.c.b16 %v2175, %v2174
        %v2199 = vpack.c.b16 %v2177, %v2176
        %v2200 = vpack.c.b16 %v2179, %v2178
        %v2201 = vpack.c.b16 %v2181, %v2180
        %v2202 = vpack.c.b16 %v2183, %v2182
        %v2203 = vpack.c.b16 %v2185, %v2184
        %v2204 = vpack.c.b16 %v2187, %v2186
        %v2205 = vpack.c.b16 %v2189, %v2188
        %v2206 = vpack.c.b16 %v2191, %v2190
        %v2207 = vpack.c.b16 %v2193, %v2192
        %v2208 = vpack.c.b16 %v2195, %v2194
        %v2209 = vpack.c.b16 %v2197, %v2196
        %v2218 = vunpack.c.l.b16 %v2142
        %v2219 = vunpack.c.l.b16 %v2143
        %v2220 = vunpack.c.l.b16 %v2144
        %v2221 = vunpack.c.l.b16 %v2145
        %v2222 = vunpack.c.l.b16 %v2146
        %v2223 = vunpack.c.l.b16 %v2147
        %v2224 = vunpack.c.l.b16 %v2148
        %v2225 = vunpack.c.l.b16 %v2149
        %v2226 = vpack.c.b16 %v2219, %v2218
        %v2227 = vpack.c.b16 %v2221, %v2220
        %v2228 = vpack.c.b16 %v2223, %v2222
        %v2229 = vpack.c.b16 %v2225, %v2224
        %v2235 = vsel %vm448, %v2198, 0
        %v2238 = vsel %vm448, %v2199, 0
        %v2241 = vsel %vm448, %v2200, 0
        %v2244 = vsel %vm448, %v2201, 0
        %v2247 = vsel %vm448, %v2202, 0
        %v2250 = vsel %vm448, %v2203, 0
        %v2253 = vsel %vm448, %v2204, 0
        %v2256 = vsel %vm448, %v2205, 0
        %v2259 = vsel %vm448, %v2206, 0
        %v2262 = vsel %vm448, %v2207, 0
        %v2265 = vsel %vm448, %v2208, 0
        %v2268 = vsel %vm448, %v2209, 0
        %2270 = vmatprep.subr.bf16.mxu0 0
        %2271 = vmatpush1.bf16.msra.mxu0 %v2226
        %2272 = vmatprep.subr.bf16.mxu0 0
        %2273 = vmatpush1.bf16.msra.mxu0 %v2227
        %2274 = vmatprep.subr.bf16.mxu0 0
        %2275 = vmatpush1.bf16.msra.mxu0 %v2228
        %2276 = vmatprep.subr.bf16.mxu0 0
        %2277 = vmatpush1.bf16.msra.mxu0 %v2229
        %2278 = vmatprep.subr.bf16.mxu0 0
        %2279 = vmatpush1.bf16.msra.mxu0 0
        %2280 = vmatprep.subr.bf16.mxu0 0
        %2281 = vmatpush1.bf16.msra.mxu0 0
        %2282 = vmatprep.subr.bf16.mxu0 0
        %2283 = vmatpush1.bf16.msra.mxu0 0
        %2284 = vmatprep.subr.bf16.mxu0 0
        %2285 = vmatpush1.bf16.msra.mxu0 0
        %2286 = vmatprep.subr.bf16.mxu0 0
        %2287 = vmatpush1.bf16.msra.mxu0 0
        %2288 = vmatprep.subr.bf16.mxu0 0
        %2289 = vmatpush1.bf16.msra.mxu0 0
        %2290 = vmatprep.subr.bf16.mxu0 0
        %2291 = vmatpush1.bf16.msra.mxu0 0
        %2292 = vmatprep.subr.bf16.mxu0 0
        %2293 = vmatpush1.bf16.msra.mxu0 0
        %2294 = vmatprep.subr.bf16.mxu0 0
        %2295 = vmatpush1.bf16.msra.mxu0 0
        %2296 = vmatprep.subr.bf16.mxu0 0
        %2297 = vmatpush1.bf16.msra.mxu0 0
        %2298 = vmatprep.subr.bf16.mxu0 0
        %2299 = vmatpush1.bf16.msra.mxu0 0
        %2300 = vmatprep.subr.bf16.mxu0 0
        %2301 = vmatpush1.bf16.msra.mxu0 0
        %2302 = vmatprep.mubr.bf16.mxu0 0
        %2303 = vmatmul.mubr.bf16.gmra.mrb[0].mxu0 %v2235
        %v2304 = vpop.f32.mrb[0].mxu0
        %v2305 = vadd.f32 0.0, %v2304
        %v2306 = vpop.f32.mrb[0].mxu0
        %v2307 = vpop.f32.mrb[0].mxu0
        %v2308 = vadd.f32 0.0, %v2307
        %v2309 = vpop.f32.mrb[0].mxu0
        %2310 = vmatprep.mubr.bf16.mxu0 0
        %2311 = vmatmul.mubr.bf16.gmra.mrb[0].mxu0 %v2238
        %v2312 = vpop.f32.mrb[0].mxu0
        %v2313 = vadd.f32 0.0, %v2312
        %v2314 = vpop.f32.mrb[0].mxu0
        %v2315 = vpop.f32.mrb[0].mxu0
        %v2316 = vadd.f32 0.0, %v2315
        %v2317 = vpop.f32.mrb[0].mxu0
        %2318 = vmatprep.mubr.bf16.mxu0 0
        %2319 = vmatmul.mubr.bf16.gmra.mrb[0].mxu0 %v2241
        %v2320 = vpop.f32.mrb[0].mxu0
        %v2321 = vadd.f32 0.0, %v2320
        %v2322 = vpop.f32.mrb[0].mxu0
        %v2323 = vpop.f32.mrb[0].mxu0
        %v2324 = vadd.f32 0.0, %v2323
        %v2325 = vpop.f32.mrb[0].mxu0
        %2326 = vmatprep.mubr.bf16.mxu0 0
        %2327 = vmatmul.mubr.bf16.gmra.mrb[0].mxu0 %v2244
        %v2328 = vpop.f32.mrb[0].mxu0
        %v2329 = vadd.f32 0.0, %v2328
        %v2330 = vpop.f32.mrb[0].mxu0
        %v2331 = vpop.f32.mrb[0].mxu0
        %v2332 = vadd.f32 0.0, %v2331
        %v2333 = vpop.f32.mrb[0].mxu0
        %2334 = vmatprep.mubr.bf16.mxu0 0
        %2335 = vmatmul.mubr.bf16.gmra.mrb[0].mxu0 %v2247
        %v2336 = vpop.f32.mrb[0].mxu0
        %v2337 = vadd.f32 0.0, %v2336
        %v2338 = vpop.f32.mrb[0].mxu0
        %v2339 = vpop.f32.mrb[0].mxu0
        %v2340 = vadd.f32 0.0, %v2339
        %v2341 = vpop.f32.mrb[0].mxu0
        %2342 = vmatprep.mubr.bf16.mxu0 0
        %2343 = vmatmul.mubr.bf16.gmra.mrb[0].mxu0 %v2250
        %v2344 = vpop.f32.mrb[0].mxu0
        %v2345 = vadd.f32 0.0, %v2344
        %v2346 = vpop.f32.mrb[0].mxu0
        %v2347 = vpop.f32.mrb[0].mxu0
        %v2348 = vadd.f32 0.0, %v2347
        %v2349 = vpop.f32.mrb[0].mxu0
        %2350 = vmatprep.mubr.bf16.mxu0 0
        %2351 = vmatmul.mubr.bf16.gmra.mrb[0].mxu0 %v2253
        %v2352 = vpop.f32.mrb[0].mxu0
        %v2353 = vadd.f32 0.0, %v2352
        %v2354 = vpop.f32.mrb[0].mxu0
        %v2355 = vpop.f32.mrb[0].mxu0
        %v2356 = vadd.f32 0.0, %v2355
        %v2357 = vpop.f32.mrb[0].mxu0
        %2358 = vmatprep.mubr.bf16.mxu0 0
        %2359 = vmatmul.mubr.bf16.gmra.mrb[0].mxu0 %v2256
        %v2360 = vpop.f32.mrb[0].mxu0
        %v2361 = vadd.f32 0.0, %v2360
        %v2362 = vpop.f32.mrb[0].mxu0
        %v2363 = vpop.f32.mrb[0].mxu0
        %v2364 = vadd.f32 0.0, %v2363
        %v2365 = vpop.f32.mrb[0].mxu0
        %2366 = vmatprep.mubr.bf16.mxu0 0
        %2367 = vmatmul.mubr.bf16.gmra.mrb[0].mxu0 %v2259
        %v2368 = vpop.f32.mrb[0].mxu0
        %v2369 = vadd.f32 0.0, %v2368
        %v2370 = vpop.f32.mrb[0].mxu0
        %v2371 = vpop.f32.mrb[0].mxu0
        %v2372 = vadd.f32 0.0, %v2371
        %v2373 = vpop.f32.mrb[0].mxu0
        %2374 = vmatprep.mubr.bf16.mxu0 0
        %2375 = vmatmul.mubr.bf16.gmra.mrb[0].mxu0 %v2262
        %v2376 = vpop.f32.mrb[0].mxu0
        %v2377 = vadd.f32 0.0, %v2376
        %v2378 = vpop.f32.mrb[0].mxu0
        %v2379 = vpop.f32.mrb[0].mxu0
        %v2380 = vadd.f32 0.0, %v2379
        %v2381 = vpop.f32.mrb[0].mxu0
        %2382 = vmatprep.mubr.bf16.mxu0 0
        %2383 = vmatmul.mubr.bf16.gmra.mrb[0].mxu0 %v2265
        %v2384 = vpop.f32.mrb[0].mxu0
        %v2385 = vadd.f32 0.0, %v2384
        %v2386 = vpop.f32.mrb[0].mxu0
        %v2387 = vpop.f32.mrb[0].mxu0
        %v2388 = vadd.f32 0.0, %v2387
        %v2389 = vpop.f32.mrb[0].mxu0
        %2390 = vmatprep.mubr.bf16.mxu0 0
        %2391 = vmatmul.mubr.bf16.gmra.mrb[0].mxu0 %v2268
        %v2392 = vpop.f32.mrb[0].mxu0
        %v2393 = vadd.f32 0.0, %v2392
        %v2394 = vpop.f32.mrb[0].mxu0
        %v2395 = vpop.f32.mrb[0].mxu0
        %v2396 = vadd.f32 0.0, %v2395
        %v2397 = vpop.f32.mrb[0].mxu0
        %2398 = vdwg.mxu0
        %v2399 = vld [vmem:[#allocation2] sm:$0xff]
        %v2400 = vld [vmem:[#allocation2 + $0x8] sm:$0xff]
        %v2401 = vld [vmem:[#allocation2 + $0x10] sm:$0xff]
        %v2402 = vld [vmem:[#allocation2 + $0x18] sm:$0xff]
        %v2403 = vld [vmem:[#allocation2 + $0x20] sm:$0xff]
        %v2404 = vld [vmem:[#allocation2 + $0x28] sm:$0xff]
        %v2405 = vld [vmem:[#allocation2 + $0x30] sm:$0xff]
        %v2406 = vld [vmem:[#allocation2 + $0x38] sm:$0xff]
        %v2407 = vld [vmem:[#allocation2 + $0x40] sm:$0xff]
        %v2408 = vld [vmem:[#allocation2 + $0x48] sm:$0xff]
        %v2409 = vld [vmem:[#allocation2 + $0x50] sm:$0xff]
        %v2410 = vld [vmem:[#allocation2 + $0x58] sm:$0xff]
        %v2411 = vld [vmem:[#allocation2 + $0x60] sm:$0xff]
        %v2412 = vld [vmem:[#allocation2 + $0x68] sm:$0xff]
        %v2413 = vld [vmem:[#allocation2 + $0x70] sm:$0xff]
        %v2414 = vld [vmem:[#allocation2 + $0x78] sm:$0xff]
        %v2415 = vld [vmem:[#allocation2 + $0x80] sm:$0xff]
        %v2416 = vld [vmem:[#allocation2 + $0x88] sm:$0xff]
        %v2417 = vld [vmem:[#allocation2 + $0x90] sm:$0xff]
        %v2418 = vld [vmem:[#allocation2 + $0x98] sm:$0xff]
        %v2419 = vld [vmem:[#allocation2 + $0xa0] sm:$0xff]
        %v2420 = vld [vmem:[#allocation2 + $0xa8] sm:$0xff]
        %v2421 = vld [vmem:[#allocation2 + $0xb0] sm:$0xff]
        %v2422 = vld [vmem:[#allocation2 + $0xb8] sm:$0xff]
        %v2423 = vadd.f32 %v2399, %v2305
        %v2424 = vadd.f32 %v2400, %v2308
        %v2425 = vadd.f32 %v2401, %v2313
        %v2426 = vadd.f32 %v2402, %v2316
        %v2427 = vadd.f32 %v2403, %v2321
        %v2428 = vadd.f32 %v2404, %v2324
        %v2429 = vadd.f32 %v2405, %v2329
        %v2430 = vadd.f32 %v2406, %v2332
        %v2431 = vadd.f32 %v2407, %v2337
        %v2432 = vadd.f32 %v2408, %v2340
        %v2433 = vadd.f32 %v2409, %v2345
        %v2434 = vadd.f32 %v2410, %v2348
        %v2435 = vadd.f32 %v2411, %v2353
        %v2436 = vadd.f32 %v2412, %v2356
        %v2437 = vadd.f32 %v2413, %v2361
        %v2438 = vadd.f32 %v2414, %v2364
        %v2439 = vadd.f32 %v2415, %v2369
        %v2440 = vadd.f32 %v2416, %v2372
        %v2441 = vadd.f32 %v2417, %v2377
        %v2442 = vadd.f32 %v2418, %v2380
        %v2443 = vadd.f32 %v2419, %v2385
        %v2444 = vadd.f32 %v2420, %v2388
        %v2445 = vadd.f32 %v2421, %v2393
        %v2446 = vadd.f32 %v2422, %v2396
        %2447 = vst [vmem:[#allocation2] sm:$0xff] %v2423
        %2448 = vst [vmem:[#allocation2 + $0x8] sm:$0xff] %v2424
        %2449 = vst [vmem:[#allocation2 + $0x10] sm:$0xff] %v2425
        %2450 = vst [vmem:[#allocation2 + $0x18] sm:$0xff] %v2426
        %2451 = vst [vmem:[#allocation2 + $0x20] sm:$0xff] %v2427
        %2452 = vst [vmem:[#allocation2 + $0x28] sm:$0xff] %v2428
        %2453 = vst [vmem:[#allocation2 + $0x30] sm:$0xff] %v2429
        %2454 = vst [vmem:[#allocation2 + $0x38] sm:$0xff] %v2430
        %2455 = vst [vmem:[#allocation2 + $0x40] sm:$0xff] %v2431
        %2456 = vst [vmem:[#allocation2 + $0x48] sm:$0xff] %v2432
        %2457 = vst [vmem:[#allocation2 + $0x50] sm:$0xff] %v2433
        %2458 = vst [vmem:[#allocation2 + $0x58] sm:$0xff] %v2434
        %2459 = vst [vmem:[#allocation2 + $0x60] sm:$0xff] %v2435
        %2460 = vst [vmem:[#allocation2 + $0x68] sm:$0xff] %v2436
        %2461 = vst [vmem:[#allocation2 + $0x70] sm:$0xff] %v2437
        %2462 = vst [vmem:[#allocation2 + $0x78] sm:$0xff] %v2438
        %2463 = vst [vmem:[#allocation2 + $0x80] sm:$0xff] %v2439
        %2464 = vst [vmem:[#allocation2 + $0x88] sm:$0xff] %v2440
        %2465 = vst [vmem:[#allocation2 + $0x90] sm:$0xff] %v2441
        %2466 = vst [vmem:[#allocation2 + $0x98] sm:$0xff] %v2442
        %2467 = vst [vmem:[#allocation2 + $0xa0] sm:$0xff] %v2443
        %2468 = vst [vmem:[#allocation2 + $0xa8] sm:$0xff] %v2444
        %2469 = vst [vmem:[#allocation2 + $0xb0] sm:$0xff] %v2445
        %2470 = vst [vmem:[#allocation2 + $0xb8] sm:$0xff] %v2446
        %v2471 = vld [vmem:[%s237 + $0x8] sm:$0xf]
        %v2472 = vld [vmem:[%s237 + $0xc] sm:$0xf]
        %v2473 = vld [vmem:[%s237 + $0x10] sm:$0xf]
        %v2474 = vld [vmem:[%s237 + $0x14] sm:$0xf]
        %v2475 = vld [vmem:[%s237 + $0x18] sm:$0xf]
        %v2476 = vld [vmem:[%s237 + $0x1c] sm:$0xf]
        %v2477 = vld [vmem:[%s237 + $0x20] sm:$0xf]
        %v2478 = vld [vmem:[%s237 + $0x24] sm:$0xf]
        %v2479 = vld [vmem:[%s237 + $0x28] sm:$0x1]
        %v2480 = vld [vmem:[%s237 + $0x38] sm:$0xf]
        %v2481 = vld [vmem:[%s237 + $0x3c] sm:$0xf]
        %v2482 = vld [vmem:[%s237 + $0x40] sm:$0xf]
        %v2483 = vld [vmem:[%s237 + $0x44] sm:$0xf]
        %v2484 = vld [vmem:[%s237 + $0x48] sm:$0xf]
        %v2485 = vld [vmem:[%s237 + $0x4c] sm:$0xf]
        %v2486 = vld [vmem:[%s237 + $0x50] sm:$0xf]
        %v2487 = vld [vmem:[%s237 + $0x54] sm:$0xf]
        %v2488 = vld [vmem:[%s237 + $0x58] sm:$0x1]
        %v2489 = vld [vmem:[%s237 + $0x68] sm:$0xf]
        %v2490 = vld [vmem:[%s237 + $0x6c] sm:$0xf]
        %v2491 = vld [vmem:[%s237 + $0x70] sm:$0xf]
        %v2492 = vld [vmem:[%s237 + $0x74] sm:$0xf]
        %v2493 = vld [vmem:[%s237 + $0x78] sm:$0xf]
        %v2494 = vld [vmem:[%s237 + $0x7c] sm:$0xf]
        %v2495 = vld [vmem:[%s237 + $0x80] sm:$0xf]
        %v2496 = vld [vmem:[%s237 + $0x84] sm:$0xf]
        %v2497 = vld [vmem:[%s237 + $0x88] sm:$0x1]
        %vm2498 = vsmask.f32 3328
        %vm2499 = vsmask.f32 7440
        %vm2500 = vmor %vm2498, %vm2499
        %v2502 = vshrl.u32 %v2471, 16
        %v2504 = vrot.slane %v2502, 4
        %v2505 = vshll.u32 %v2471, 16
        %v2507 = vrot.slane %v2505, 5
        %v2508 = vor.u32 %v2504, %v2507
        %v2509 = vrot.slane %v2508, 4
        %v2511 = vshll.u32 %v2472, 16
        %v2513 = vrot.slane %v2511, 5
        %v2514 = vsel %vm2500, %v2509, %v2513
        %v2515 = vshrl.u32 %v2472, 16
        %v2517 = vrot.slane %v2515, 4
        %v2518 = vor.u32 %v2517, %v2513
        %v2519 = vrot.slane %v2518, 4
        %v2521 = vshll.u32 %v2473, 16
        %v2523 = vrot.slane %v2521, 5
        %v2524 = vsel %vm2500, %v2519, %v2523
        %v2525 = vshrl.u32 %v2473, 16
        %v2527 = vrot.slane %v2525, 4
        %v2528 = vor.u32 %v2527, %v2523
        %v2529 = vrot.slane %v2528, 4
        %v2531 = vshll.u32 %v2474, 16
        %v2533 = vrot.slane %v2531, 5
        %v2534 = vsel %vm2500, %v2529, %v2533
        %v2535 = vshrl.u32 %v2474, 16
        %v2537 = vrot.slane %v2535, 4
        %v2538 = vor.u32 %v2537, %v2533
        %v2539 = vrot.slane %v2538, 4
        %v2541 = vshll.u32 %v2475, 16
        %v2543 = vrot.slane %v2541, 5
        %v2544 = vsel %vm2500, %v2539, %v2543
        %v2545 = vshrl.u32 %v2475, 16
        %v2547 = vrot.slane %v2545, 4
        %v2548 = vor.u32 %v2547, %v2543
        %v2549 = vrot.slane %v2548, 4
        %v2551 = vshll.u32 %v2476, 16
        %v2553 = vrot.slane %v2551, 5
        %v2554 = vsel %vm2500, %v2549, %v2553
        %v2555 = vshrl.u32 %v2476, 16
        %v2557 = vrot.slane %v2555, 4
        %v2558 = vor.u32 %v2557, %v2553
        %v2559 = vrot.slane %v2558, 4
        %v2561 = vshll.u32 %v2477, 16
        %v2563 = vrot.slane %v2561, 5
        %v2564 = vsel %vm2500, %v2559, %v2563
        %v2565 = vshrl.u32 %v2477, 16
        %v2567 = vrot.slane %v2565, 4
        %v2568 = vor.u32 %v2567, %v2563
        %v2569 = vrot.slane %v2568, 4
        %v2571 = vshll.u32 %v2478, 16
        %v2573 = vrot.slane %v2571, 5
        %v2574 = vsel %vm2500, %v2569, %v2573
        %v2575 = vshrl.u32 %v2478, 16
        %v2577 = vrot.slane %v2575, 4
        %v2578 = vor.u32 %v2577, %v2573
        %v2579 = vrot.slane %v2578, 4
        %v2581 = vshll.u32 %v2479, 16
        %v2583 = vrot.slane %v2581, 5
        %v2584 = vsel %vm2500, %v2579, %v2583
        %v2586 = vshrl.u32 %v2480, 16
        %v2588 = vrot.slane %v2586, 4
        %v2589 = vshll.u32 %v2480, 16
        %v2591 = vrot.slane %v2589, 5
        %v2592 = vor.u32 %v2588, %v2591
        %v2593 = vrot.slane %v2592, 4
        %v2595 = vshll.u32 %v2481, 16
        %v2597 = vrot.slane %v2595, 5
        %v2598 = vsel %vm2500, %v2593, %v2597
        %v2599 = vshrl.u32 %v2481, 16
        %v2601 = vrot.slane %v2599, 4
        %v2602 = vor.u32 %v2601, %v2597
        %v2603 = vrot.slane %v2602, 4
        %v2605 = vshll.u32 %v2482, 16
        %v2607 = vrot.slane %v2605, 5
        %v2608 = vsel %vm2500, %v2603, %v2607
        %v2609 = vshrl.u32 %v2482, 16
        %v2611 = vrot.slane %v2609, 4
        %v2612 = vor.u32 %v2611, %v2607
        %v2613 = vrot.slane %v2612, 4
        %v2615 = vshll.u32 %v2483, 16
        %v2617 = vrot.slane %v2615, 5
        %v2618 = vsel %vm2500, %v2613, %v2617
        %v2619 = vshrl.u32 %v2483, 16
        %v2621 = vrot.slane %v2619, 4
        %v2622 = vor.u32 %v2621, %v2617
        %v2623 = vrot.slane %v2622, 4
        %v2625 = vshll.u32 %v2484, 16
        %v2627 = vrot.slane %v2625, 5
        %v2628 = vsel %vm2500, %v2623, %v2627
        %v2629 = vshrl.u32 %v2484, 16
        %v2631 = vrot.slane %v2629, 4
        %v2632 = vor.u32 %v2631, %v2627
        %v2633 = vrot.slane %v2632, 4
        %v2635 = vshll.u32 %v2485, 16
        %v2637 = vrot.slane %v2635, 5
        %v2638 = vsel %vm2500, %v2633, %v2637
        %v2639 = vshrl.u32 %v2485, 16
        %v2641 = vrot.slane %v2639, 4
        %v2642 = vor.u32 %v2641, %v2637
        %v2643 = vrot.slane %v2642, 4
        %v2645 = vshll.u32 %v2486, 16
        %v2647 = vrot.slane %v2645, 5
        %v2648 = vsel %vm2500, %v2643, %v2647
        %v2649 = vshrl.u32 %v2486, 16
        %v2651 = vrot.slane %v2649, 4
        %v2652 = vor.u32 %v2651, %v2647
        %v2653 = vrot.slane %v2652, 4
        %v2655 = vshll.u32 %v2487, 16
        %v2657 = vrot.slane %v2655, 5
        %v2658 = vsel %vm2500, %v2653, %v2657
        %v2659 = vshrl.u32 %v2487, 16
        %v2661 = vrot.slane %v2659, 4
        %v2662 = vor.u32 %v2661, %v2657
        %v2663 = vrot.slane %v2662, 4
        %v2665 = vshll.u32 %v2488, 16
        %v2667 = vrot.slane %v2665, 5
        %v2668 = vsel %vm2500, %v2663, %v2667
        %v2670 = vshrl.u32 %v2489, 16
        %v2672 = vrot.slane %v2670, 4
        %v2673 = vshll.u32 %v2489, 16
        %v2675 = vrot.slane %v2673, 5
        %v2676 = vor.u32 %v2672, %v2675
        %v2677 = vrot.slane %v2676, 4
        %v2679 = vshll.u32 %v2490, 16
        %v2681 = vrot.slane %v2679, 5
        %v2682 = vsel %vm2500, %v2677, %v2681
        %v2683 = vshrl.u32 %v2490, 16
        %v2685 = vrot.slane %v2683, 4
        %v2686 = vor.u32 %v2685, %v2681
        %v2687 = vrot.slane %v2686, 4
        %v2689 = vshll.u32 %v2491, 16
        %v2691 = vrot.slane %v2689, 5
        %v2692 = vsel %vm2500, %v2687, %v2691
        %v2693 = vshrl.u32 %v2491, 16
        %v2695 = vrot.slane %v2693, 4
        %v2696 = vor.u32 %v2695, %v2691
        %v2697 = vrot.slane %v2696, 4
        %v2699 = vshll.u32 %v2492, 16
        %v2701 = vrot.slane %v2699, 5
        %v2702 = vsel %vm2500, %v2697, %v2701
        %v2703 = vshrl.u32 %v2492, 16
        %v2705 = vrot.slane %v2703, 4
        %v2706 = vor.u32 %v2705, %v2701
        %v2707 = vrot.slane %v2706, 4
        %v2709 = vshll.u32 %v2493, 16
        %v2711 = vrot.slane %v2709, 5
        %v2712 = vsel %vm2500, %v2707, %v2711
        %v2713 = vshrl.u32 %v2493, 16
        %v2715 = vrot.slane %v2713, 4
        %v2716 = vor.u32 %v2715, %v2711
        %v2717 = vrot.slane %v2716, 4
        %v2719 = vshll.u32 %v2494, 16
        %v2721 = vrot.slane %v2719, 5
        %v2722 = vsel %vm2500, %v2717, %v2721
        %v2723 = vshrl.u32 %v2494, 16
        %v2725 = vrot.slane %v2723, 4
        %v2726 = vor.u32 %v2725, %v2721
        %v2727 = vrot.slane %v2726, 4
        %v2729 = vshll.u32 %v2495, 16
        %v2731 = vrot.slane %v2729, 5
        %v2732 = vsel %vm2500, %v2727, %v2731
        %v2733 = vshrl.u32 %v2495, 16
        %v2735 = vrot.slane %v2733, 4
        %v2736 = vor.u32 %v2735, %v2731
        %v2737 = vrot.slane %v2736, 4
        %v2739 = vshll.u32 %v2496, 16
        %v2741 = vrot.slane %v2739, 5
        %v2742 = vsel %vm2500, %v2737, %v2741
        %v2743 = vshrl.u32 %v2496, 16
        %v2745 = vrot.slane %v2743, 4
        %v2746 = vor.u32 %v2745, %v2741
        %v2747 = vrot.slane %v2746, 4
        %v2749 = vshll.u32 %v2497, 16
        %v2751 = vrot.slane %v2749, 5
        %v2752 = vsel %vm2500, %v2747, %v2751
        %s2753 = scalar_lea.vmem %s242, 160
        %v2754 = vld [vmem:[%s2753] sm:$0xf]
        %v2755 = vld [vmem:[%s2753 + $0x4] sm:$0xf]
        %v2756 = vld [vmem:[%s2753 + $0x8] sm:$0xf]
        %v2757 = vld [vmem:[%s2753 + $0xc] sm:$0xf]
        %v2758 = vld [vmem:[%s2753 + $0x10] sm:$0xf]
        %v2759 = vld [vmem:[%s2753 + $0x14] sm:$0xf]
        %v2760 = vld [vmem:[%s2753 + $0x18] sm:$0xf]
        %v2761 = vld [vmem:[%s2753 + $0x1c] sm:$0xf]
        %v2762 = vunpack.c.l.b16 %v2514
        %v2763 = vunpack.c.l.b16 %v2524
        %v2764 = vunpack.c.l.b16 %v2534
        %v2765 = vunpack.c.l.b16 %v2544
        %v2766 = vunpack.c.l.b16 %v2554
        %v2767 = vunpack.c.l.b16 %v2564
        %v2768 = vunpack.c.l.b16 %v2574
        %v2769 = vunpack.c.l.b16 %v2584
        %v2770 = vunpack.c.l.b16 %v2598
        %v2771 = vunpack.c.l.b16 %v2608
        %v2772 = vunpack.c.l.b16 %v2618
        %v2773 = vunpack.c.l.b16 %v2628
        %v2774 = vunpack.c.l.b16 %v2638
        %v2775 = vunpack.c.l.b16 %v2648
        %v2776 = vunpack.c.l.b16 %v2658
        %v2777 = vunpack.c.l.b16 %v2668
        %v2778 = vunpack.c.l.b16 %v2682
        %v2779 = vunpack.c.l.b16 %v2692
        %v2780 = vunpack.c.l.b16 %v2702
        %v2781 = vunpack.c.l.b16 %v2712
        %v2782 = vunpack.c.l.b16 %v2722
        %v2783 = vunpack.c.l.b16 %v2732
        %v2784 = vunpack.c.l.b16 %v2742
        %v2785 = vunpack.c.l.b16 %v2752
        %v2786 = vpack.c.b16 %v2763, %v2762
        %v2787 = vpack.c.b16 %v2765, %v2764
        %v2788 = vpack.c.b16 %v2767, %v2766
        %v2789 = vpack.c.b16 %v2769, %v2768
        %v2790 = vpack.c.b16 %v2771, %v2770
        %v2791 = vpack.c.b16 %v2773, %v2772
        %v2792 = vpack.c.b16 %v2775, %v2774
        %v2793 = vpack.c.b16 %v2777, %v2776
        %v2794 = vpack.c.b16 %v2779, %v2778
        %v2795 = vpack.c.b16 %v2781, %v2780
        %v2796 = vpack.c.b16 %v2783, %v2782
        %v2797 = vpack.c.b16 %v2785, %v2784
        %v2806 = vunpack.c.l.b16 %v2754
        %v2807 = vunpack.c.l.b16 %v2755
        %v2808 = vunpack.c.l.b16 %v2756
        %v2809 = vunpack.c.l.b16 %v2757
        %v2810 = vunpack.c.l.b16 %v2758
        %v2811 = vunpack.c.l.b16 %v2759
        %v2812 = vunpack.c.l.b16 %v2760
        %v2813 = vunpack.c.l.b16 %v2761
        %v2814 = vpack.c.b16 %v2807, %v2806
        %v2815 = vpack.c.b16 %v2809, %v2808
        %v2816 = vpack.c.b16 %v2811, %v2810
        %v2817 = vpack.c.b16 %v2813, %v2812
        %v2823 = vsel %vm448, %v2786, 0
        %v2826 = vsel %vm448, %v2787, 0
        %v2829 = vsel %vm448, %v2788, 0
        %v2832 = vsel %vm448, %v2789, 0
        %v2835 = vsel %vm448, %v2790, 0
        %v2838 = vsel %vm448, %v2791, 0
        %v2841 = vsel %vm448, %v2792, 0
        %v2844 = vsel %vm448, %v2793, 0
        %v2847 = vsel %vm448, %v2794, 0
        %v2850 = vsel %vm448, %v2795, 0
        %v2853 = vsel %vm448, %v2796, 0
        %v2856 = vsel %vm448, %v2797, 0
        %2858 = vmatprep.subr.bf16.mxu0 0
        %2859 = vmatpush1.bf16.msra.mxu0 %v2814
        %2860 = vmatprep.subr.bf16.mxu0 0
        %2861 = vmatpush1.bf16.msra.mxu0 %v2815
        %2862 = vmatprep.subr.bf16.mxu0 0
        %2863 = vmatpush1.bf16.msra.mxu0 %v2816
        %2864 = vmatprep.subr.bf16.mxu0 0
        %2865 = vmatpush1.bf16.msra.mxu0 %v2817
        %2866 = vmatprep.subr.bf16.mxu0 0
        %2867 = vmatpush1.bf16.msra.mxu0 0
        %2868 = vmatprep.subr.bf16.mxu0 0
        %2869 = vmatpush1.bf16.msra.mxu0 0
        %2870 = vmatprep.subr.bf16.mxu0 0
        %2871 = vmatpush1.bf16.msra.mxu0 0
        %2872 = vmatprep.subr.bf16.mxu0 0
        %2873 = vmatpush1.bf16.msra.mxu0 0
        %2874 = vmatprep.subr.bf16.mxu0 0
        %2875 = vmatpush1.bf16.msra.mxu0 0
        %2876 = vmatprep.subr.bf16.mxu0 0
        %2877 = vmatpush1.bf16.msra.mxu0 0
        %2878 = vmatprep.subr.bf16.mxu0 0
        %2879 = vmatpush1.bf16.msra.mxu0 0
        %2880 = vmatprep.subr.bf16.mxu0 0
        %2881 = vmatpush1.bf16.msra.mxu0 0
        %2882 = vmatprep.subr.bf16.mxu0 0
        %2883 = vmatpush1.bf16.msra.mxu0 0
        %2884 = vmatprep.subr.bf16.mxu0 0
        %2885 = vmatpush1.bf16.msra.mxu0 0
        %2886 = vmatprep.subr.bf16.mxu0 0
        %2887 = vmatpush1.bf16.msra.mxu0 0
        %2888 = vmatprep.subr.bf16.mxu0 0
        %2889 = vmatpush1.bf16.msra.mxu0 0
        %2890 = vmatprep.mubr.bf16.mxu0 0
        %2891 = vmatmul.mubr.bf16.gmra.mrb[0].mxu0 %v2823
        %v2892 = vpop.f32.mrb[0].mxu0
        %v2893 = vadd.f32 0.0, %v2892
        %v2894 = vpop.f32.mrb[0].mxu0
        %v2895 = vpop.f32.mrb[0].mxu0
        %v2896 = vadd.f32 0.0, %v2895
        %v2897 = vpop.f32.mrb[0].mxu0
        %2898 = vmatprep.mubr.bf16.mxu0 0
        %2899 = vmatmul.mubr.bf16.gmra.mrb[0].mxu0 %v2826
        %v2900 = vpop.f32.mrb[0].mxu0
        %v2901 = vadd.f32 0.0, %v2900
        %v2902 = vpop.f32.mrb[0].mxu0
        %v2903 = vpop.f32.mrb[0].mxu0
        %v2904 = vadd.f32 0.0, %v2903
        %v2905 = vpop.f32.mrb[0].mxu0
        %2906 = vmatprep.mubr.bf16.mxu0 0
        %2907 = vmatmul.mubr.bf16.gmra.mrb[0].mxu0 %v2829
        %v2908 = vpop.f32.mrb[0].mxu0
        %v2909 = vadd.f32 0.0, %v2908
        %v2910 = vpop.f32.mrb[0].mxu0
        %v2911 = vpop.f32.mrb[0].mxu0
        %v2912 = vadd.f32 0.0, %v2911
        %v2913 = vpop.f32.mrb[0].mxu0
        %2914 = vmatprep.mubr.bf16.mxu0 0
        %2915 = vmatmul.mubr.bf16.gmra.mrb[0].mxu0 %v2832
        %v2916 = vpop.f32.mrb[0].mxu0
        %v2917 = vadd.f32 0.0, %v2916
        %v2918 = vpop.f32.mrb[0].mxu0
        %v2919 = vpop.f32.mrb[0].mxu0
        %v2920 = vadd.f32 0.0, %v2919
        %v2921 = vpop.f32.mrb[0].mxu0
        %2922 = vmatprep.mubr.bf16.mxu0 0
        %2923 = vmatmul.mubr.bf16.gmra.mrb[0].mxu0 %v2835
        %v2924 = vpop.f32.mrb[0].mxu0
        %v2925 = vadd.f32 0.0, %v2924
        %v2926 = vpop.f32.mrb[0].mxu0
        %v2927 = vpop.f32.mrb[0].mxu0
        %v2928 = vadd.f32 0.0, %v2927
        %v2929 = vpop.f32.mrb[0].mxu0
        %2930 = vmatprep.mubr.bf16.mxu0 0
        %2931 = vmatmul.mubr.bf16.gmra.mrb[0].mxu0 %v2838
        %v2932 = vpop.f32.mrb[0].mxu0
        %v2933 = vadd.f32 0.0, %v2932
        %v2934 = vpop.f32.mrb[0].mxu0
        %v2935 = vpop.f32.mrb[0].mxu0
        %v2936 = vadd.f32 0.0, %v2935
        %v2937 = vpop.f32.mrb[0].mxu0
        %2938 = vmatprep.mubr.bf16.mxu0 0
        %2939 = vmatmul.mubr.bf16.gmra.mrb[0].mxu0 %v2841
        %v2940 = vpop.f32.mrb[0].mxu0
        %v2941 = vadd.f32 0.0, %v2940
        %v2942 = vpop.f32.mrb[0].mxu0
        %v2943 = vpop.f32.mrb[0].mxu0
        %v2944 = vadd.f32 0.0, %v2943
        %v2945 = vpop.f32.mrb[0].mxu0
        %2946 = vmatprep.mubr.bf16.mxu0 0
        %2947 = vmatmul.mubr.bf16.gmra.mrb[0].mxu0 %v2844
        %v2948 = vpop.f32.mrb[0].mxu0
        %v2949 = vadd.f32 0.0, %v2948
        %v2950 = vpop.f32.mrb[0].mxu0
        %v2951 = vpop.f32.mrb[0].mxu0
        %v2952 = vadd.f32 0.0, %v2951
        %v2953 = vpop.f32.mrb[0].mxu0
        %2954 = vmatprep.mubr.bf16.mxu0 0
        %2955 = vmatmul.mubr.bf16.gmra.mrb[0].mxu0 %v2847
        %v2956 = vpop.f32.mrb[0].mxu0
        %v2957 = vadd.f32 0.0, %v2956
        %v2958 = vpop.f32.mrb[0].mxu0
        %v2959 = vpop.f32.mrb[0].mxu0
        %v2960 = vadd.f32 0.0, %v2959
        %v2961 = vpop.f32.mrb[0].mxu0
        %2962 = vmatprep.mubr.bf16.mxu0 0
        %2963 = vmatmul.mubr.bf16.gmra.mrb[0].mxu0 %v2850
        %v2964 = vpop.f32.mrb[0].mxu0
        %v2965 = vadd.f32 0.0, %v2964
        %v2966 = vpop.f32.mrb[0].mxu0
        %v2967 = vpop.f32.mrb[0].mxu0
        %v2968 = vadd.f32 0.0, %v2967
        %v2969 = vpop.f32.mrb[0].mxu0
        %2970 = vmatprep.mubr.bf16.mxu0 0
        %2971 = vmatmul.mubr.bf16.gmra.mrb[0].mxu0 %v2853
        %v2972 = vpop.f32.mrb[0].mxu0
        %v2973 = vadd.f32 0.0, %v2972
        %v2974 = vpop.f32.mrb[0].mxu0
        %v2975 = vpop.f32.mrb[0].mxu0
        %v2976 = vadd.f32 0.0, %v2975
        %v2977 = vpop.f32.mrb[0].mxu0
        %2978 = vmatprep.mubr.bf16.mxu0 0
        %2979 = vmatmul.mubr.bf16.gmra.mrb[0].mxu0 %v2856
        %v2980 = vpop.f32.mrb[0].mxu0
        %v2981 = vadd.f32 0.0, %v2980
        %v2982 = vpop.f32.mrb[0].mxu0
        %v2983 = vpop.f32.mrb[0].mxu0
        %v2984 = vadd.f32 0.0, %v2983
        %v2985 = vpop.f32.mrb[0].mxu0
        %2986 = vdwg.mxu0
        %v2987 = vld [vmem:[#allocation2] sm:$0xff]
        %v2988 = vld [vmem:[#allocation2 + $0x8] sm:$0xff]
        %v2989 = vld [vmem:[#allocation2 + $0x10] sm:$0xff]
        %v2990 = vld [vmem:[#allocation2 + $0x18] sm:$0xff]
        %v2991 = vld [vmem:[#allocation2 + $0x20] sm:$0xff]
        %v2992 = vld [vmem:[#allocation2 + $0x28] sm:$0xff]
        %v2993 = vld [vmem:[#allocation2 + $0x30] sm:$0xff]
        %v2994 = vld [vmem:[#allocation2 + $0x38] sm:$0xff]
        %v2995 = vld [vmem:[#allocation2 + $0x40] sm:$0xff]
        %v2996 = vld [vmem:[#allocation2 + $0x48] sm:$0xff]
        %v2997 = vld [vmem:[#allocation2 + $0x50] sm:$0xff]
        %v2998 = vld [vmem:[#allocation2 + $0x58] sm:$0xff]
        %v2999 = vld [vmem:[#allocation2 + $0x60] sm:$0xff]
        %v3000 = vld [vmem:[#allocation2 + $0x68] sm:$0xff]
        %v3001 = vld [vmem:[#allocation2 + $0x70] sm:$0xff]
        %v3002 = vld [vmem:[#allocation2 + $0x78] sm:$0xff]
        %v3003 = vld [vmem:[#allocation2 + $0x80] sm:$0xff]
        %v3004 = vld [vmem:[#allocation2 + $0x88] sm:$0xff]
        %v3005 = vld [vmem:[#allocation2 + $0x90] sm:$0xff]
        %v3006 = vld [vmem:[#allocation2 + $0x98] sm:$0xff]
        %v3007 = vld [vmem:[#allocation2 + $0xa0] sm:$0xff]
        %v3008 = vld [vmem:[#allocation2 + $0xa8] sm:$0xff]
        %v3009 = vld [vmem:[#allocation2 + $0xb0] sm:$0xff]
        %v3010 = vld [vmem:[#allocation2 + $0xb8] sm:$0xff]
        %v3011 = vadd.f32 %v2987, %v2893
        %v3012 = vadd.f32 %v2988, %v2896
        %v3013 = vadd.f32 %v2989, %v2901
        %v3014 = vadd.f32 %v2990, %v2904
        %v3015 = vadd.f32 %v2991, %v2909
        %v3016 = vadd.f32 %v2992, %v2912
        %v3017 = vadd.f32 %v2993, %v2917
        %v3018 = vadd.f32 %v2994, %v2920
        %v3019 = vadd.f32 %v2995, %v2925
        %v3020 = vadd.f32 %v2996, %v2928
        %v3021 = vadd.f32 %v2997, %v2933
        %v3022 = vadd.f32 %v2998, %v2936
        %v3023 = vadd.f32 %v2999, %v2941
        %v3024 = vadd.f32 %v3000, %v2944
        %v3025 = vadd.f32 %v3001, %v2949
        %v3026 = vadd.f32 %v3002, %v2952
        %v3027 = vadd.f32 %v3003, %v2957
        %v3028 = vadd.f32 %v3004, %v2960
        %v3029 = vadd.f32 %v3005, %v2965
        %v3030 = vadd.f32 %v3006, %v2968
        %v3031 = vadd.f32 %v3007, %v2973
        %v3032 = vadd.f32 %v3008, %v2976
        %v3033 = vadd.f32 %v3009, %v2981
        %v3034 = vadd.f32 %v3010, %v2984
        %3035 = vst [vmem:[#allocation2] sm:$0xff] %v3011
        %3036 = vst [vmem:[#allocation2 + $0x8] sm:$0xff] %v3012
        %3037 = vst [vmem:[#allocation2 + $0x10] sm:$0xff] %v3013
        %3038 = vst [vmem:[#allocation2 + $0x18] sm:$0xff] %v3014
        %3039 = vst [vmem:[#allocation2 + $0x20] sm:$0xff] %v3015
        %3040 = vst [vmem:[#allocation2 + $0x28] sm:$0xff] %v3016
        %3041 = vst [vmem:[#allocation2 + $0x30] sm:$0xff] %v3017
        %3042 = vst [vmem:[#allocation2 + $0x38] sm:$0xff] %v3018
        %3043 = vst [vmem:[#allocation2 + $0x40] sm:$0xff] %v3019
        %3044 = vst [vmem:[#allocation2 + $0x48] sm:$0xff] %v3020
        %3045 = vst [vmem:[#allocation2 + $0x50] sm:$0xff] %v3021
        %3046 = vst [vmem:[#allocation2 + $0x58] sm:$0xff] %v3022
        %3047 = vst [vmem:[#allocation2 + $0x60] sm:$0xff] %v3023
        %3048 = vst [vmem:[#allocation2 + $0x68] sm:$0xff] %v3024
        %3049 = vst [vmem:[#allocation2 + $0x70] sm:$0xff] %v3025
        %3050 = vst [vmem:[#allocation2 + $0x78] sm:$0xff] %v3026
        %3051 = vst [vmem:[#allocation2 + $0x80] sm:$0xff] %v3027
        %3052 = vst [vmem:[#allocation2 + $0x88] sm:$0xff] %v3028
        %3053 = vst [vmem:[#allocation2 + $0x90] sm:$0xff] %v3029
        %3054 = vst [vmem:[#allocation2 + $0x98] sm:$0xff] %v3030
        %3055 = vst [vmem:[#allocation2 + $0xa0] sm:$0xff] %v3031
        %3056 = vst [vmem:[#allocation2 + $0xa8] sm:$0xff] %v3032
        %3057 = vst [vmem:[#allocation2 + $0xb0] sm:$0xff] %v3033
        %3058 = vst [vmem:[#allocation2 + $0xb8] sm:$0xff] %v3034
        %v3059 = vld [vmem:[%s237 + $0xc] sm:$0xf]
        %v3060 = vld [vmem:[%s237 + $0x10] sm:$0xf]
        %v3061 = vld [vmem:[%s237 + $0x14] sm:$0xf]
        %v3062 = vld [vmem:[%s237 + $0x18] sm:$0xf]
        %v3063 = vld [vmem:[%s237 + $0x1c] sm:$0xf]
        %v3064 = vld [vmem:[%s237 + $0x20] sm:$0xf]
        %v3065 = vld [vmem:[%s237 + $0x24] sm:$0xf]
        %v3066 = vld [vmem:[%s237 + $0x28] sm:$0xf]
        %v3067 = vld [vmem:[%s237 + $0x3c] sm:$0xf]
        %v3068 = vld [vmem:[%s237 + $0x40] sm:$0xf]
        %v3069 = vld [vmem:[%s237 + $0x44] sm:$0xf]
        %v3070 = vld [vmem:[%s237 + $0x48] sm:$0xf]
        %v3071 = vld [vmem:[%s237 + $0x4c] sm:$0xf]
        %v3072 = vld [vmem:[%s237 + $0x50] sm:$0xf]
        %v3073 = vld [vmem:[%s237 + $0x54] sm:$0xf]
        %v3074 = vld [vmem:[%s237 + $0x58] sm:$0xf]
        %v3075 = vld [vmem:[%s237 + $0x6c] sm:$0xf]
        %v3076 = vld [vmem:[%s237 + $0x70] sm:$0xf]
        %v3077 = vld [vmem:[%s237 + $0x74] sm:$0xf]
        %v3078 = vld [vmem:[%s237 + $0x78] sm:$0xf]
        %v3079 = vld [vmem:[%s237 + $0x7c] sm:$0xf]
        %v3080 = vld [vmem:[%s237 + $0x80] sm:$0xf]
        %v3081 = vld [vmem:[%s237 + $0x84] sm:$0xf]
        %v3082 = vld [vmem:[%s237 + $0x88] sm:$0xf]
        %s3083 = scalar_lea.vmem %s242, 192
        %v3084 = vld [vmem:[%s3083] sm:$0xf]
        %v3085 = vld [vmem:[%s3083 + $0x4] sm:$0xf]
        %v3086 = vld [vmem:[%s3083 + $0x8] sm:$0xf]
        %v3087 = vld [vmem:[%s3083 + $0xc] sm:$0xf]
        %v3088 = vld [vmem:[%s3083 + $0x10] sm:$0xf]
        %v3089 = vld [vmem:[%s3083 + $0x14] sm:$0xf]
        %v3090 = vld [vmem:[%s3083 + $0x18] sm:$0xf]
        %v3091 = vld [vmem:[%s3083 + $0x1c] sm:$0xf]
        %v3116 = vunpack.c.l.b16 %v3059
        %v3117 = vunpack.c.l.b16 %v3060
        %v3118 = vunpack.c.l.b16 %v3061
        %v3119 = vunpack.c.l.b16 %v3062
        %v3120 = vunpack.c.l.b16 %v3063
        %v3121 = vunpack.c.l.b16 %v3064
        %v3122 = vunpack.c.l.b16 %v3065
        %v3123 = vunpack.c.l.b16 %v3066
        %v3124 = vunpack.c.l.b16 %v3067
        %v3125 = vunpack.c.l.b16 %v3068
        %v3126 = vunpack.c.l.b16 %v3069
        %v3127 = vunpack.c.l.b16 %v3070
        %v3128 = vunpack.c.l.b16 %v3071
        %v3129 = vunpack.c.l.b16 %v3072
        %v3130 = vunpack.c.l.b16 %v3073
        %v3131 = vunpack.c.l.b16 %v3074
        %v3132 = vunpack.c.l.b16 %v3075
        %v3133 = vunpack.c.l.b16 %v3076
        %v3134 = vunpack.c.l.b16 %v3077
        %v3135 = vunpack.c.l.b16 %v3078
        %v3136 = vunpack.c.l.b16 %v3079
        %v3137 = vunpack.c.l.b16 %v3080
        %v3138 = vunpack.c.l.b16 %v3081
        %v3139 = vunpack.c.l.b16 %v3082
        %v3140 = vpack.c.b16 %v3117, %v3116
        %v3141 = vpack.c.b16 %v3119, %v3118
        %v3142 = vpack.c.b16 %v3121, %v3120
        %v3143 = vpack.c.b16 %v3123, %v3122
        %v3144 = vpack.c.b16 %v3125, %v3124
        %v3145 = vpack.c.b16 %v3127, %v3126
        %v3146 = vpack.c.b16 %v3129, %v3128
        %v3147 = vpack.c.b16 %v3131, %v3130
        %v3148 = vpack.c.b16 %v3133, %v3132
        %v3149 = vpack.c.b16 %v3135, %v3134
        %v3150 = vpack.c.b16 %v3137, %v3136
        %v3151 = vpack.c.b16 %v3139, %v3138
        %v3160 = vunpack.c.l.b16 %v3084
        %v3161 = vunpack.c.l.b16 %v3085
        %v3162 = vunpack.c.l.b16 %v3086
        %v3163 = vunpack.c.l.b16 %v3087
        %v3164 = vunpack.c.l.b16 %v3088
        %v3165 = vunpack.c.l.b16 %v3089
        %v3166 = vunpack.c.l.b16 %v3090
        %v3167 = vunpack.c.l.b16 %v3091
        %v3168 = vpack.c.b16 %v3161, %v3160
        %v3169 = vpack.c.b16 %v3163, %v3162
        %v3170 = vpack.c.b16 %v3165, %v3164
        %v3171 = vpack.c.b16 %v3167, %v3166
        %v3177 = vsel %vm448, %v3140, 0
        %v3180 = vsel %vm448, %v3141, 0
        %v3183 = vsel %vm448, %v3142, 0
        %v3186 = vsel %vm448, %v3143, 0
        %v3189 = vsel %vm448, %v3144, 0
        %v3192 = vsel %vm448, %v3145, 0
        %v3195 = vsel %vm448, %v3146, 0
        %v3198 = vsel %vm448, %v3147, 0
        %v3201 = vsel %vm448, %v3148, 0
        %v3204 = vsel %vm448, %v3149, 0
        %v3207 = vsel %vm448, %v3150, 0
        %v3210 = vsel %vm448, %v3151, 0
        %3212 = vmatprep.subr.bf16.mxu0 0
        %3213 = vmatpush1.bf16.msra.mxu0 %v3168
        %3214 = vmatprep.subr.bf16.mxu0 0
        %3215 = vmatpush1.bf16.msra.mxu0 %v3169
        %3216 = vmatprep.subr.bf16.mxu0 0
        %3217 = vmatpush1.bf16.msra.mxu0 %v3170
        %3218 = vmatprep.subr.bf16.mxu0 0
        %3219 = vmatpush1.bf16.msra.mxu0 %v3171
        %3220 = vmatprep.subr.bf16.mxu0 0
        %3221 = vmatpush1.bf16.msra.mxu0 0
        %3222 = vmatprep.subr.bf16.mxu0 0
        %3223 = vmatpush1.bf16.msra.mxu0 0
        %3224 = vmatprep.subr.bf16.mxu0 0
        %3225 = vmatpush1.bf16.msra.mxu0 0
        %3226 = vmatprep.subr.bf16.mxu0 0
        %3227 = vmatpush1.bf16.msra.mxu0 0
        %3228 = vmatprep.subr.bf16.mxu0 0
        %3229 = vmatpush1.bf16.msra.mxu0 0
        %3230 = vmatprep.subr.bf16.mxu0 0
        %3231 = vmatpush1.bf16.msra.mxu0 0
        %3232 = vmatprep.subr.bf16.mxu0 0
        %3233 = vmatpush1.bf16.msra.mxu0 0
        %3234 = vmatprep.subr.bf16.mxu0 0
        %3235 = vmatpush1.bf16.msra.mxu0 0
        %3236 = vmatprep.subr.bf16.mxu0 0
        %3237 = vmatpush1.bf16.msra.mxu0 0
        %3238 = vmatprep.subr.bf16.mxu0 0
        %3239 = vmatpush1.bf16.msra.mxu0 0
        %3240 = vmatprep.subr.bf16.mxu0 0
        %3241 = vmatpush1.bf16.msra.mxu0 0
        %3242 = vmatprep.subr.bf16.mxu0 0
        %3243 = vmatpush1.bf16.msra.mxu0 0
        %3244 = vmatprep.mubr.bf16.mxu0 0
        %3245 = vmatmul.mubr.bf16.gmra.mrb[0].mxu0 %v3177
        %v3246 = vpop.f32.mrb[0].mxu0
        %v3247 = vadd.f32 0.0, %v3246
        %v3248 = vpop.f32.mrb[0].mxu0
        %v3249 = vpop.f32.mrb[0].mxu0
        %v3250 = vadd.f32 0.0, %v3249
        %v3251 = vpop.f32.mrb[0].mxu0
        %3252 = vmatprep.mubr.bf16.mxu0 0
        %3253 = vmatmul.mubr.bf16.gmra.mrb[0].mxu0 %v3180
        %v3254 = vpop.f32.mrb[0].mxu0
        %v3255 = vadd.f32 0.0, %v3254
        %v3256 = vpop.f32.mrb[0].mxu0
        %v3257 = vpop.f32.mrb[0].mxu0
        %v3258 = vadd.f32 0.0, %v3257
        %v3259 = vpop.f32.mrb[0].mxu0
        %3260 = vmatprep.mubr.bf16.mxu0 0
        %3261 = vmatmul.mubr.bf16.gmra.mrb[0].mxu0 %v3183
        %v3262 = vpop.f32.mrb[0].mxu0
        %v3263 = vadd.f32 0.0, %v3262
        %v3264 = vpop.f32.mrb[0].mxu0
        %v3265 = vpop.f32.mrb[0].mxu0
        %v3266 = vadd.f32 0.0, %v3265
        %v3267 = vpop.f32.mrb[0].mxu0
        %3268 = vmatprep.mubr.bf16.mxu0 0
        %3269 = vmatmul.mubr.bf16.gmra.mrb[0].mxu0 %v3186
        %v3270 = vpop.f32.mrb[0].mxu0
        %v3271 = vadd.f32 0.0, %v3270
        %v3272 = vpop.f32.mrb[0].mxu0
        %v3273 = vpop.f32.mrb[0].mxu0
        %v3274 = vadd.f32 0.0, %v3273
        %v3275 = vpop.f32.mrb[0].mxu0
        %3276 = vmatprep.mubr.bf16.mxu0 0
        %3277 = vmatmul.mubr.bf16.gmra.mrb[0].mxu0 %v3189
        %v3278 = vpop.f32.mrb[0].mxu0
        %v3279 = vadd.f32 0.0, %v3278
        %v3280 = vpop.f32.mrb[0].mxu0
        %v3281 = vpop.f32.mrb[0].mxu0
        %v3282 = vadd.f32 0.0, %v3281
        %v3283 = vpop.f32.mrb[0].mxu0
        %3284 = vmatprep.mubr.bf16.mxu0 0
        %3285 = vmatmul.mubr.bf16.gmra.mrb[0].mxu0 %v3192
        %v3286 = vpop.f32.mrb[0].mxu0
        %v3287 = vadd.f32 0.0, %v3286
        %v3288 = vpop.f32.mrb[0].mxu0
        %v3289 = vpop.f32.mrb[0].mxu0
        %v3290 = vadd.f32 0.0, %v3289
        %v3291 = vpop.f32.mrb[0].mxu0
        %3292 = vmatprep.mubr.bf16.mxu0 0
        %3293 = vmatmul.mubr.bf16.gmra.mrb[0].mxu0 %v3195
        %v3294 = vpop.f32.mrb[0].mxu0
        %v3295 = vadd.f32 0.0, %v3294
        %v3296 = vpop.f32.mrb[0].mxu0
        %v3297 = vpop.f32.mrb[0].mxu0
        %v3298 = vadd.f32 0.0, %v3297
        %v3299 = vpop.f32.mrb[0].mxu0
        %3300 = vmatprep.mubr.bf16.mxu0 0
        %3301 = vmatmul.mubr.bf16.gmra.mrb[0].mxu0 %v3198
        %v3302 = vpop.f32.mrb[0].mxu0
        %v3303 = vadd.f32 0.0, %v3302
        %v3304 = vpop.f32.mrb[0].mxu0
        %v3305 = vpop.f32.mrb[0].mxu0
        %v3306 = vadd.f32 0.0, %v3305
        %v3307 = vpop.f32.mrb[0].mxu0
        %3308 = vmatprep.mubr.bf16.mxu0 0
        %3309 = vmatmul.mubr.bf16.gmra.mrb[0].mxu0 %v3201
        %v3310 = vpop.f32.mrb[0].mxu0
        %v3311 = vadd.f32 0.0, %v3310
        %v3312 = vpop.f32.mrb[0].mxu0
        %v3313 = vpop.f32.mrb[0].mxu0
        %v3314 = vadd.f32 0.0, %v3313
        %v3315 = vpop.f32.mrb[0].mxu0
        %3316 = vmatprep.mubr.bf16.mxu0 0
        %3317 = vmatmul.mubr.bf16.gmra.mrb[0].mxu0 %v3204
        %v3318 = vpop.f32.mrb[0].mxu0
        %v3319 = vadd.f32 0.0, %v3318
        %v3320 = vpop.f32.mrb[0].mxu0
        %v3321 = vpop.f32.mrb[0].mxu0
        %v3322 = vadd.f32 0.0, %v3321
        %v3323 = vpop.f32.mrb[0].mxu0
        %3324 = vmatprep.mubr.bf16.mxu0 0
        %3325 = vmatmul.mubr.bf16.gmra.mrb[0].mxu0 %v3207
        %v3326 = vpop.f32.mrb[0].mxu0
        %v3327 = vadd.f32 0.0, %v3326
        %v3328 = vpop.f32.mrb[0].mxu0
        %v3329 = vpop.f32.mrb[0].mxu0
        %v3330 = vadd.f32 0.0, %v3329
        %v3331 = vpop.f32.mrb[0].mxu0
        %3332 = vmatprep.mubr.bf16.mxu0 0
        %3333 = vmatmul.mubr.bf16.gmra.mrb[0].mxu0 %v3210
        %v3334 = vpop.f32.mrb[0].mxu0
        %v3335 = vadd.f32 0.0, %v3334
        %v3336 = vpop.f32.mrb[0].mxu0
        %v3337 = vpop.f32.mrb[0].mxu0
        %v3338 = vadd.f32 0.0, %v3337
        %v3339 = vpop.f32.mrb[0].mxu0
        %3340 = vdwg.mxu0
        %v3341 = vld [vmem:[#allocation2] sm:$0xff]
        %v3342 = vld [vmem:[#allocation2 + $0x8] sm:$0xff]
        %v3343 = vld [vmem:[#allocation2 + $0x10] sm:$0xff]
        %v3344 = vld [vmem:[#allocation2 + $0x18] sm:$0xff]
        %v3345 = vld [vmem:[#allocation2 + $0x20] sm:$0xff]
        %v3346 = vld [vmem:[#allocation2 + $0x28] sm:$0xff]
        %v3347 = vld [vmem:[#allocation2 + $0x30] sm:$0xff]
        %v3348 = vld [vmem:[#allocation2 + $0x38] sm:$0xff]
        %v3349 = vld [vmem:[#allocation2 + $0x40] sm:$0xff]
        %v3350 = vld [vmem:[#allocation2 + $0x48] sm:$0xff]
        %v3351 = vld [vmem:[#allocation2 + $0x50] sm:$0xff]
        %v3352 = vld [vmem:[#allocation2 + $0x58] sm:$0xff]
        %v3353 = vld [vmem:[#allocation2 + $0x60] sm:$0xff]
        %v3354 = vld [vmem:[#allocation2 + $0x68] sm:$0xff]
        %v3355 = vld [vmem:[#allocation2 + $0x70] sm:$0xff]
        %v3356 = vld [vmem:[#allocation2 + $0x78] sm:$0xff]
        %v3357 = vld [vmem:[#allocation2 + $0x80] sm:$0xff]
        %v3358 = vld [vmem:[#allocation2 + $0x88] sm:$0xff]
        %v3359 = vld [vmem:[#allocation2 + $0x90] sm:$0xff]
        %v3360 = vld [vmem:[#allocation2 + $0x98] sm:$0xff]
        %v3361 = vld [vmem:[#allocation2 + $0xa0] sm:$0xff]
        %v3362 = vld [vmem:[#allocation2 + $0xa8] sm:$0xff]
        %v3363 = vld [vmem:[#allocation2 + $0xb0] sm:$0xff]
        %v3364 = vld [vmem:[#allocation2 + $0xb8] sm:$0xff]
        %v3365 = vadd.f32 %v3341, %v3247
        %v3366 = vadd.f32 %v3342, %v3250
        %v3367 = vadd.f32 %v3343, %v3255
        %v3368 = vadd.f32 %v3344, %v3258
        %v3369 = vadd.f32 %v3345, %v3263
        %v3370 = vadd.f32 %v3346, %v3266
        %v3371 = vadd.f32 %v3347, %v3271
        %v3372 = vadd.f32 %v3348, %v3274
        %v3373 = vadd.f32 %v3349, %v3279
        %v3374 = vadd.f32 %v3350, %v3282
        %v3375 = vadd.f32 %v3351, %v3287
        %v3376 = vadd.f32 %v3352, %v3290
        %v3377 = vadd.f32 %v3353, %v3295
        %v3378 = vadd.f32 %v3354, %v3298
        %v3379 = vadd.f32 %v3355, %v3303
        %v3380 = vadd.f32 %v3356, %v3306
        %v3381 = vadd.f32 %v3357, %v3311
        %v3382 = vadd.f32 %v3358, %v3314
        %v3383 = vadd.f32 %v3359, %v3319
        %v3384 = vadd.f32 %v3360, %v3322
        %v3385 = vadd.f32 %v3361, %v3327
        %v3386 = vadd.f32 %v3362, %v3330
        %v3387 = vadd.f32 %v3363, %v3335
        %v3388 = vadd.f32 %v3364, %v3338
        %3389 = vst [vmem:[#allocation2] sm:$0xff] %v3365
        %3390 = vst [vmem:[#allocation2 + $0x8] sm:$0xff] %v3366
        %3391 = vst [vmem:[#allocation2 + $0x10] sm:$0xff] %v3367
        %3392 = vst [vmem:[#allocation2 + $0x18] sm:$0xff] %v3368
        %3393 = vst [vmem:[#allocation2 + $0x20] sm:$0xff] %v3369
        %3394 = vst [vmem:[#allocation2 + $0x28] sm:$0xff] %v3370
        %3395 = vst [vmem:[#allocation2 + $0x30] sm:$0xff] %v3371
        %3396 = vst [vmem:[#allocation2 + $0x38] sm:$0xff] %v3372
        %3397 = vst [vmem:[#allocation2 + $0x40] sm:$0xff] %v3373
        %3398 = vst [vmem:[#allocation2 + $0x48] sm:$0xff] %v3374
        %3399 = vst [vmem:[#allocation2 + $0x50] sm:$0xff] %v3375
        %3400 = vst [vmem:[#allocation2 + $0x58] sm:$0xff] %v3376
        %3401 = vst [vmem:[#allocation2 + $0x60] sm:$0xff] %v3377
        %3402 = vst [vmem:[#allocation2 + $0x68] sm:$0xff] %v3378
        %3403 = vst [vmem:[#allocation2 + $0x70] sm:$0xff] %v3379
        %3404 = vst [vmem:[#allocation2 + $0x78] sm:$0xff] %v3380
        %3405 = vst [vmem:[#allocation2 + $0x80] sm:$0xff] %v3381
        %3406 = vst [vmem:[#allocation2 + $0x88] sm:$0xff] %v3382
        %3407 = vst [vmem:[#allocation2 + $0x90] sm:$0xff] %v3383
        %3408 = vst [vmem:[#allocation2 + $0x98] sm:$0xff] %v3384
        %3409 = vst [vmem:[#allocation2 + $0xa0] sm:$0xff] %v3385
        %3410 = vst [vmem:[#allocation2 + $0xa8] sm:$0xff] %v3386
        %3411 = vst [vmem:[#allocation2 + $0xb0] sm:$0xff] %v3387
        %3412 = vst [vmem:[#allocation2 + $0xb8] sm:$0xff] %v3388
        %v3413 = vld [vmem:[%s237 + $0xc] sm:$0xf]
        %v3414 = vld [vmem:[%s237 + $0x10] sm:$0xf]
        %v3415 = vld [vmem:[%s237 + $0x14] sm:$0xf]
        %v3416 = vld [vmem:[%s237 + $0x18] sm:$0xf]
        %v3417 = vld [vmem:[%s237 + $0x1c] sm:$0xf]
        %v3418 = vld [vmem:[%s237 + $0x20] sm:$0xf]
        %v3419 = vld [vmem:[%s237 + $0x24] sm:$0xf]
        %v3420 = vld [vmem:[%s237 + $0x28] sm:$0xf]
        %v3421 = vld [vmem:[%s237 + $0x2c] sm:$0x1]
        %v3422 = vld [vmem:[%s237 + $0x3c] sm:$0xf]
        %v3423 = vld [vmem:[%s237 + $0x40] sm:$0xf]
        %v3424 = vld [vmem:[%s237 + $0x44] sm:$0xf]
        %v3425 = vld [vmem:[%s237 + $0x48] sm:$0xf]
        %v3426 = vld [vmem:[%s237 + $0x4c] sm:$0xf]
        %v3427 = vld [vmem:[%s237 + $0x50] sm:$0xf]
        %v3428 = vld [vmem:[%s237 + $0x54] sm:$0xf]
        %v3429 = vld [vmem:[%s237 + $0x58] sm:$0xf]
        %v3430 = vld [vmem:[%s237 + $0x5c] sm:$0x1]
        %v3431 = vld [vmem:[%s237 + $0x6c] sm:$0xf]
        %v3432 = vld [vmem:[%s237 + $0x70] sm:$0xf]
        %v3433 = vld [vmem:[%s237 + $0x74] sm:$0xf]
        %v3434 = vld [vmem:[%s237 + $0x78] sm:$0xf]
        %v3435 = vld [vmem:[%s237 + $0x7c] sm:$0xf]
        %v3436 = vld [vmem:[%s237 + $0x80] sm:$0xf]
        %v3437 = vld [vmem:[%s237 + $0x84] sm:$0xf]
        %v3438 = vld [vmem:[%s237 + $0x88] sm:$0xf]
        %v3439 = vld [vmem:[%s237 + $0x8c] sm:$0x1]
        %v3441 = vshrl.u32 %v3413, 16
        %v3443 = vrot.slane %v3441, 4
        %v3444 = vshll.u32 %v3413, 16
        %v3446 = vrot.slane %v3444, 5
        %v3447 = vor.u32 %v3443, %v3446
        %v3448 = vrot.slane %v3447, 4
        %v3450 = vshll.u32 %v3414, 16
        %v3452 = vrot.slane %v3450, 5
        %v3453 = vsel %vm2500, %v3448, %v3452
        %v3454 = vshrl.u32 %v3414, 16
        %v3456 = vrot.slane %v3454, 4
        %v3457 = vor.u32 %v3456, %v3452
        %v3458 = vrot.slane %v3457, 4
        %v3460 = vshll.u32 %v3415, 16
        %v3462 = vrot.slane %v3460, 5
        %v3463 = vsel %vm2500, %v3458, %v3462
        %v3464 = vshrl.u32 %v3415, 16
        %v3466 = vrot.slane %v3464, 4
        %v3467 = vor.u32 %v3466, %v3462
        %v3468 = vrot.slane %v3467, 4
        %v3470 = vshll.u32 %v3416, 16
        %v3472 = vrot.slane %v3470, 5
        %v3473 = vsel %vm2500, %v3468, %v3472
        %v3474 = vshrl.u32 %v3416, 16
        %v3476 = vrot.slane %v3474, 4
        %v3477 = vor.u32 %v3476, %v3472
        %v3478 = vrot.slane %v3477, 4
        %v3480 = vshll.u32 %v3417, 16
        %v3482 = vrot.slane %v3480, 5
        %v3483 = vsel %vm2500, %v3478, %v3482
        %v3484 = vshrl.u32 %v3417, 16
        %v3486 = vrot.slane %v3484, 4
        %v3487 = vor.u32 %v3486, %v3482
        %v3488 = vrot.slane %v3487, 4
        %v3490 = vshll.u32 %v3418, 16
        %v3492 = vrot.slane %v3490, 5
        %v3493 = vsel %vm2500, %v3488, %v3492
        %v3494 = vshrl.u32 %v3418, 16
        %v3496 = vrot.slane %v3494, 4
        %v3497 = vor.u32 %v3496, %v3492
        %v3498 = vrot.slane %v3497, 4
        %v3500 = vshll.u32 %v3419, 16
        %v3502 = vrot.slane %v3500, 5
        %v3503 = vsel %vm2500, %v3498, %v3502
        %v3504 = vshrl.u32 %v3419, 16
        %v3506 = vrot.slane %v3504, 4
        %v3507 = vor.u32 %v3506, %v3502
        %v3508 = vrot.slane %v3507, 4
        %v3510 = vshll.u32 %v3420, 16
        %v3512 = vrot.slane %v3510, 5
        %v3513 = vsel %vm2500, %v3508, %v3512
        %v3514 = vshrl.u32 %v3420, 16
        %v3516 = vrot.slane %v3514, 4
        %v3517 = vor.u32 %v3516, %v3512
        %v3518 = vrot.slane %v3517, 4
        %v3520 = vshll.u32 %v3421, 16
        %v3522 = vrot.slane %v3520, 5
        %v3523 = vsel %vm2500, %v3518, %v3522
        %v3525 = vshrl.u32 %v3422, 16
        %v3527 = vrot.slane %v3525, 4
        %v3528 = vshll.u32 %v3422, 16
        %v3530 = vrot.slane %v3528, 5
        %v3531 = vor.u32 %v3527, %v3530
        %v3532 = vrot.slane %v3531, 4
        %v3534 = vshll.u32 %v3423, 16
        %v3536 = vrot.slane %v3534, 5
        %v3537 = vsel %vm2500, %v3532, %v3536
        %v3538 = vshrl.u32 %v3423, 16
        %v3540 = vrot.slane %v3538, 4
        %v3541 = vor.u32 %v3540, %v3536
        %v3542 = vrot.slane %v3541, 4
        %v3544 = vshll.u32 %v3424, 16
        %v3546 = vrot.slane %v3544, 5
        %v3547 = vsel %vm2500, %v3542, %v3546
        %v3548 = vshrl.u32 %v3424, 16
        %v3550 = vrot.slane %v3548, 4
        %v3551 = vor.u32 %v3550, %v3546
        %v3552 = vrot.slane %v3551, 4
        %v3554 = vshll.u32 %v3425, 16
        %v3556 = vrot.slane %v3554, 5
        %v3557 = vsel %vm2500, %v3552, %v3556
        %v3558 = vshrl.u32 %v3425, 16
        %v3560 = vrot.slane %v3558, 4
        %v3561 = vor.u32 %v3560, %v3556
        %v3562 = vrot.slane %v3561, 4
        %v3564 = vshll.u32 %v3426, 16
        %v3566 = vrot.slane %v3564, 5
        %v3567 = vsel %vm2500, %v3562, %v3566
        %v3568 = vshrl.u32 %v3426, 16
        %v3570 = vrot.slane %v3568, 4
        %v3571 = vor.u32 %v3570, %v3566
        %v3572 = vrot.slane %v3571, 4
        %v3574 = vshll.u32 %v3427, 16
        %v3576 = vrot.slane %v3574, 5
        %v3577 = vsel %vm2500, %v3572, %v3576
        %v3578 = vshrl.u32 %v3427, 16
        %v3580 = vrot.slane %v3578, 4
        %v3581 = vor.u32 %v3580, %v3576
        %v3582 = vrot.slane %v3581, 4
        %v3584 = vshll.u32 %v3428, 16
        %v3586 = vrot.slane %v3584, 5
        %v3587 = vsel %vm2500, %v3582, %v3586
        %v3588 = vshrl.u32 %v3428, 16
        %v3590 = vrot.slane %v3588, 4
        %v3591 = vor.u32 %v3590, %v3586
        %v3592 = vrot.slane %v3591, 4
        %v3594 = vshll.u32 %v3429, 16
        %v3596 = vrot.slane %v3594, 5
        %v3597 = vsel %vm2500, %v3592, %v3596
        %v3598 = vshrl.u32 %v3429, 16
        %v3600 = vrot.slane %v3598, 4
        %v3601 = vor.u32 %v3600, %v3596
        %v3602 = vrot.slane %v3601, 4
        %v3604 = vshll.u32 %v3430, 16
        %v3606 = vrot.slane %v3604, 5
        %v3607 = vsel %vm2500, %v3602, %v3606
        %v3609 = vshrl.u32 %v3431, 16
        %v3611 = vrot.slane %v3609, 4
        %v3612 = vshll.u32 %v3431, 16
        %v3614 = vrot.slane %v3612, 5
        %v3615 = vor.u32 %v3611, %v3614
        %v3616 = vrot.slane %v3615, 4
        %v3618 = vshll.u32 %v3432, 16
        %v3620 = vrot.slane %v3618, 5
        %v3621 = vsel %vm2500, %v3616, %v3620
        %v3622 = vshrl.u32 %v3432, 16
        %v3624 = vrot.slane %v3622, 4
        %v3625 = vor.u32 %v3624, %v3620
        %v3626 = vrot.slane %v3625, 4
        %v3628 = vshll.u32 %v3433, 16
        %v3630 = vrot.slane %v3628, 5
        %v3631 = vsel %vm2500, %v3626, %v3630
        %v3632 = vshrl.u32 %v3433, 16
        %v3634 = vrot.slane %v3632, 4
        %v3635 = vor.u32 %v3634, %v3630
        %v3636 = vrot.slane %v3635, 4
        %v3638 = vshll.u32 %v3434, 16
        %v3640 = vrot.slane %v3638, 5
        %v3641 = vsel %vm2500, %v3636, %v3640
        %v3642 = vshrl.u32 %v3434, 16
        %v3644 = vrot.slane %v3642, 4
        %v3645 = vor.u32 %v3644, %v3640
        %v3646 = vrot.slane %v3645, 4
        %v3648 = vshll.u32 %v3435, 16
        %v3650 = vrot.slane %v3648, 5
        %v3651 = vsel %vm2500, %v3646, %v3650
        %v3652 = vshrl.u32 %v3435, 16
        %v3654 = vrot.slane %v3652, 4
        %v3655 = vor.u32 %v3654, %v3650
        %v3656 = vrot.slane %v3655, 4
        %v3658 = vshll.u32 %v3436, 16
        %v3660 = vrot.slane %v3658, 5
        %v3661 = vsel %vm2500, %v3656, %v3660
        %v3662 = vshrl.u32 %v3436, 16
        %v3664 = vrot.slane %v3662, 4
        %v3665 = vor.u32 %v3664, %v3660
        %v3666 = vrot.slane %v3665, 4
        %v3668 = vshll.u32 %v3437, 16
        %v3670 = vrot.slane %v3668, 5
        %v3671 = vsel %vm2500, %v3666, %v3670
        %v3672 = vshrl.u32 %v3437, 16
        %v3674 = vrot.slane %v3672, 4
        %v3675 = vor.u32 %v3674, %v3670
        %v3676 = vrot.slane %v3675, 4
        %v3678 = vshll.u32 %v3438, 16
        %v3680 = vrot.slane %v3678, 5
        %v3681 = vsel %vm2500, %v3676, %v3680
        %v3682 = vshrl.u32 %v3438, 16
        %v3684 = vrot.slane %v3682, 4
        %v3685 = vor.u32 %v3684, %v3680
        %v3686 = vrot.slane %v3685, 4
        %v3688 = vshll.u32 %v3439, 16
        %v3690 = vrot.slane %v3688, 5
        %v3691 = vsel %vm2500, %v3686, %v3690
        %s3692 = scalar_lea.vmem %s242, 224
        %v3693 = vld [vmem:[%s3692] sm:$0xf]
        %v3694 = vld [vmem:[%s3692 + $0x4] sm:$0xf]
        %v3695 = vld [vmem:[%s3692 + $0x8] sm:$0xf]
        %v3696 = vld [vmem:[%s3692 + $0xc] sm:$0xf]
        %v3697 = vld [vmem:[%s3692 + $0x10] sm:$0xf]
        %v3698 = vld [vmem:[%s3692 + $0x14] sm:$0xf]
        %v3699 = vld [vmem:[%s3692 + $0x18] sm:$0xf]
        %v3700 = vld [vmem:[%s3692 + $0x1c] sm:$0xf]
        %v3701 = vunpack.c.l.b16 %v3453
        %v3702 = vunpack.c.l.b16 %v3463
        %v3703 = vunpack.c.l.b16 %v3473
        %v3704 = vunpack.c.l.b16 %v3483
        %v3705 = vunpack.c.l.b16 %v3493
        %v3706 = vunpack.c.l.b16 %v3503
        %v3707 = vunpack.c.l.b16 %v3513
        %v3708 = vunpack.c.l.b16 %v3523
        %v3709 = vunpack.c.l.b16 %v3537
        %v3710 = vunpack.c.l.b16 %v3547
        %v3711 = vunpack.c.l.b16 %v3557
        %v3712 = vunpack.c.l.b16 %v3567
        %v3713 = vunpack.c.l.b16 %v3577
        %v3714 = vunpack.c.l.b16 %v3587
        %v3715 = vunpack.c.l.b16 %v3597
        %v3716 = vunpack.c.l.b16 %v3607
        %v3717 = vunpack.c.l.b16 %v3621
        %v3718 = vunpack.c.l.b16 %v3631
        %v3719 = vunpack.c.l.b16 %v3641
        %v3720 = vunpack.c.l.b16 %v3651
        %v3721 = vunpack.c.l.b16 %v3661
        %v3722 = vunpack.c.l.b16 %v3671
        %v3723 = vunpack.c.l.b16 %v3681
        %v3724 = vunpack.c.l.b16 %v3691
        %v3725 = vpack.c.b16 %v3702, %v3701
        %v3726 = vpack.c.b16 %v3704, %v3703
        %v3727 = vpack.c.b16 %v3706, %v3705
        %v3728 = vpack.c.b16 %v3708, %v3707
        %v3729 = vpack.c.b16 %v3710, %v3709
        %v3730 = vpack.c.b16 %v3712, %v3711
        %v3731 = vpack.c.b16 %v3714, %v3713
        %v3732 = vpack.c.b16 %v3716, %v3715
        %v3733 = vpack.c.b16 %v3718, %v3717
        %v3734 = vpack.c.b16 %v3720, %v3719
        %v3735 = vpack.c.b16 %v3722, %v3721
        %v3736 = vpack.c.b16 %v3724, %v3723
        %v3745 = vunpack.c.l.b16 %v3693
        %v3746 = vunpack.c.l.b16 %v3694
        %v3747 = vunpack.c.l.b16 %v3695
        %v3748 = vunpack.c.l.b16 %v3696
        %v3749 = vunpack.c.l.b16 %v3697
        %v3750 = vunpack.c.l.b16 %v3698
        %v3751 = vunpack.c.l.b16 %v3699
        %v3752 = vunpack.c.l.b16 %v3700
        %v3753 = vpack.c.b16 %v3746, %v3745
        %v3754 = vpack.c.b16 %v3748, %v3747
        %v3755 = vpack.c.b16 %v3750, %v3749
        %v3756 = vpack.c.b16 %v3752, %v3751
        %v3762 = vsel %vm448, %v3725, 0
        %v3765 = vsel %vm448, %v3726, 0
        %v3768 = vsel %vm448, %v3727, 0
        %v3771 = vsel %vm448, %v3728, 0
        %v3774 = vsel %vm448, %v3729, 0
        %v3777 = vsel %vm448, %v3730, 0
        %v3780 = vsel %vm448, %v3731, 0
        %v3783 = vsel %vm448, %v3732, 0
        %v3786 = vsel %vm448, %v3733, 0
        %v3789 = vsel %vm448, %v3734, 0
        %v3792 = vsel %vm448, %v3735, 0
        %v3795 = vsel %vm448, %v3736, 0
        %3797 = vmatprep.subr.bf16.mxu0 0
        %3798 = vmatpush1.bf16.msra.mxu0 %v3753
        %3799 = vmatprep.subr.bf16.mxu0 0
        %3800 = vmatpush1.bf16.msra.mxu0 %v3754
        %3801 = vmatprep.subr.bf16.mxu0 0
        %3802 = vmatpush1.bf16.msra.mxu0 %v3755
        %3803 = vmatprep.subr.bf16.mxu0 0
        %3804 = vmatpush1.bf16.msra.mxu0 %v3756
        %3805 = vmatprep.subr.bf16.mxu0 0
        %3806 = vmatpush1.bf16.msra.mxu0 0
        %3807 = vmatprep.subr.bf16.mxu0 0
        %3808 = vmatpush1.bf16.msra.mxu0 0
        %3809 = vmatprep.subr.bf16.mxu0 0
        %3810 = vmatpush1.bf16.msra.mxu0 0
        %3811 = vmatprep.subr.bf16.mxu0 0
        %3812 = vmatpush1.bf16.msra.mxu0 0
        %3813 = vmatprep.subr.bf16.mxu0 0
        %3814 = vmatpush1.bf16.msra.mxu0 0
        %3815 = vmatprep.subr.bf16.mxu0 0
        %3816 = vmatpush1.bf16.msra.mxu0 0
        %3817 = vmatprep.subr.bf16.mxu0 0
        %3818 = vmatpush1.bf16.msra.mxu0 0
        %3819 = vmatprep.subr.bf16.mxu0 0
        %3820 = vmatpush1.bf16.msra.mxu0 0
        %3821 = vmatprep.subr.bf16.mxu0 0
        %3822 = vmatpush1.bf16.msra.mxu0 0
        %3823 = vmatprep.subr.bf16.mxu0 0
        %3824 = vmatpush1.bf16.msra.mxu0 0
        %3825 = vmatprep.subr.bf16.mxu0 0
        %3826 = vmatpush1.bf16.msra.mxu0 0
        %3827 = vmatprep.subr.bf16.mxu0 0
        %3828 = vmatpush1.bf16.msra.mxu0 0
        %3829 = vmatprep.mubr.bf16.mxu0 0
        %3830 = vmatmul.mubr.bf16.gmra.mrb[0].mxu0 %v3762
        %v3831 = vpop.f32.mrb[0].mxu0
        %v3832 = vadd.f32 0.0, %v3831
        %v3833 = vpop.f32.mrb[0].mxu0
        %v3834 = vpop.f32.mrb[0].mxu0
        %v3835 = vadd.f32 0.0, %v3834
        %v3836 = vpop.f32.mrb[0].mxu0
        %3837 = vmatprep.mubr.bf16.mxu0 0
        %3838 = vmatmul.mubr.bf16.gmra.mrb[0].mxu0 %v3765
        %v3839 = vpop.f32.mrb[0].mxu0
        %v3840 = vadd.f32 0.0, %v3839
        %v3841 = vpop.f32.mrb[0].mxu0
        %v3842 = vpop.f32.mrb[0].mxu0
        %v3843 = vadd.f32 0.0, %v3842
        %v3844 = vpop.f32.mrb[0].mxu0
        %3845 = vmatprep.mubr.bf16.mxu0 0
        %3846 = vmatmul.mubr.bf16.gmra.mrb[0].mxu0 %v3768
        %v3847 = vpop.f32.mrb[0].mxu0
        %v3848 = vadd.f32 0.0, %v3847
        %v3849 = vpop.f32.mrb[0].mxu0
        %v3850 = vpop.f32.mrb[0].mxu0
        %v3851 = vadd.f32 0.0, %v3850
        %v3852 = vpop.f32.mrb[0].mxu0
        %3853 = vmatprep.mubr.bf16.mxu0 0
        %3854 = vmatmul.mubr.bf16.gmra.mrb[0].mxu0 %v3771
        %v3855 = vpop.f32.mrb[0].mxu0
        %v3856 = vadd.f32 0.0, %v3855
        %v3857 = vpop.f32.mrb[0].mxu0
        %v3858 = vpop.f32.mrb[0].mxu0
        %v3859 = vadd.f32 0.0, %v3858
        %v3860 = vpop.f32.mrb[0].mxu0
        %3861 = vmatprep.mubr.bf16.mxu0 0
        %3862 = vmatmul.mubr.bf16.gmra.mrb[0].mxu0 %v3774
        %v3863 = vpop.f32.mrb[0].mxu0
        %v3864 = vadd.f32 0.0, %v3863
        %v3865 = vpop.f32.mrb[0].mxu0
        %v3866 = vpop.f32.mrb[0].mxu0
        %v3867 = vadd.f32 0.0, %v3866
        %v3868 = vpop.f32.mrb[0].mxu0
        %3869 = vmatprep.mubr.bf16.mxu0 0
        %3870 = vmatmul.mubr.bf16.gmra.mrb[0].mxu0 %v3777
        %v3871 = vpop.f32.mrb[0].mxu0
        %v3872 = vadd.f32 0.0, %v3871
        %v3873 = vpop.f32.mrb[0].mxu0
        %v3874 = vpop.f32.mrb[0].mxu0
        %v3875 = vadd.f32 0.0, %v3874
        %v3876 = vpop.f32.mrb[0].mxu0
        %3877 = vmatprep.mubr.bf16.mxu0 0
        %3878 = vmatmul.mubr.bf16.gmra.mrb[0].mxu0 %v3780
        %v3879 = vpop.f32.mrb[0].mxu0
        %v3880 = vadd.f32 0.0, %v3879
        %v3881 = vpop.f32.mrb[0].mxu0
        %v3882 = vpop.f32.mrb[0].mxu0
        %v3883 = vadd.f32 0.0, %v3882
        %v3884 = vpop.f32.mrb[0].mxu0
        %3885 = vmatprep.mubr.bf16.mxu0 0
        %3886 = vmatmul.mubr.bf16.gmra.mrb[0].mxu0 %v3783
        %v3887 = vpop.f32.mrb[0].mxu0
        %v3888 = vadd.f32 0.0, %v3887
        %v3889 = vpop.f32.mrb[0].mxu0
        %v3890 = vpop.f32.mrb[0].mxu0
        %v3891 = vadd.f32 0.0, %v3890
        %v3892 = vpop.f32.mrb[0].mxu0
        %3893 = vmatprep.mubr.bf16.mxu0 0
        %3894 = vmatmul.mubr.bf16.gmra.mrb[0].mxu0 %v3786
        %v3895 = vpop.f32.mrb[0].mxu0
        %v3896 = vadd.f32 0.0, %v3895
        %v3897 = vpop.f32.mrb[0].mxu0
        %v3898 = vpop.f32.mrb[0].mxu0
        %v3899 = vadd.f32 0.0, %v3898
        %v3900 = vpop.f32.mrb[0].mxu0
        %3901 = vmatprep.mubr.bf16.mxu0 0
        %3902 = vmatmul.mubr.bf16.gmra.mrb[0].mxu0 %v3789
        %v3903 = vpop.f32.mrb[0].mxu0
        %v3904 = vadd.f32 0.0, %v3903
        %v3905 = vpop.f32.mrb[0].mxu0
        %v3906 = vpop.f32.mrb[0].mxu0
        %v3907 = vadd.f32 0.0, %v3906
        %v3908 = vpop.f32.mrb[0].mxu0
        %3909 = vmatprep.mubr.bf16.mxu0 0
        %3910 = vmatmul.mubr.bf16.gmra.mrb[0].mxu0 %v3792
        %v3911 = vpop.f32.mrb[0].mxu0
        %v3912 = vadd.f32 0.0, %v3911
        %v3913 = vpop.f32.mrb[0].mxu0
        %v3914 = vpop.f32.mrb[0].mxu0
        %v3915 = vadd.f32 0.0, %v3914
        %v3916 = vpop.f32.mrb[0].mxu0
        %3917 = vmatprep.mubr.bf16.mxu0 0
        %3918 = vmatmul.mubr.bf16.gmra.mrb[0].mxu0 %v3795
        %v3919 = vpop.f32.mrb[0].mxu0
        %v3920 = vadd.f32 0.0, %v3919
        %v3921 = vpop.f32.mrb[0].mxu0
        %v3922 = vpop.f32.mrb[0].mxu0
        %v3923 = vadd.f32 0.0, %v3922
        %v3924 = vpop.f32.mrb[0].mxu0
        %3925 = vdwg.mxu0
        %v3926 = vld [vmem:[#allocation2] sm:$0xff]
        %v3927 = vld [vmem:[#allocation2 + $0x8] sm:$0xff]
        %v3928 = vld [vmem:[#allocation2 + $0x10] sm:$0xff]
        %v3929 = vld [vmem:[#allocation2 + $0x18] sm:$0xff]
        %v3930 = vld [vmem:[#allocation2 + $0x20] sm:$0xff]
        %v3931 = vld [vmem:[#allocation2 + $0x28] sm:$0xff]
        %v3932 = vld [vmem:[#allocation2 + $0x30] sm:$0xff]
        %v3933 = vld [vmem:[#allocation2 + $0x38] sm:$0xff]
        %v3934 = vld [vmem:[#allocation2 + $0x40] sm:$0xff]
        %v3935 = vld [vmem:[#allocation2 + $0x48] sm:$0xff]
        %v3936 = vld [vmem:[#allocation2 + $0x50] sm:$0xff]
        %v3937 = vld [vmem:[#allocation2 + $0x58] sm:$0xff]
        %v3938 = vld [vmem:[#allocation2 + $0x60] sm:$0xff]
        %v3939 = vld [vmem:[#allocation2 + $0x68] sm:$0xff]
        %v3940 = vld [vmem:[#allocation2 + $0x70] sm:$0xff]
        %v3941 = vld [vmem:[#allocation2 + $0x78] sm:$0xff]
        %v3942 = vld [vmem:[#allocation2 + $0x80] sm:$0xff]
        %v3943 = vld [vmem:[#allocation2 + $0x88] sm:$0xff]
        %v3944 = vld [vmem:[#allocation2 + $0x90] sm:$0xff]
        %v3945 = vld [vmem:[#allocation2 + $0x98] sm:$0xff]
        %v3946 = vld [vmem:[#allocation2 + $0xa0] sm:$0xff]
        %v3947 = vld [vmem:[#allocation2 + $0xa8] sm:$0xff]
        %v3948 = vld [vmem:[#allocation2 + $0xb0] sm:$0xff]
        %v3949 = vld [vmem:[#allocation2 + $0xb8] sm:$0xff]
        %v3950 = vadd.f32 %v3926, %v3832
        %v3951 = vadd.f32 %v3927, %v3835
        %v3952 = vadd.f32 %v3928, %v3840
        %v3953 = vadd.f32 %v3929, %v3843
        %v3954 = vadd.f32 %v3930, %v3848
        %v3955 = vadd.f32 %v3931, %v3851
        %v3956 = vadd.f32 %v3932, %v3856
        %v3957 = vadd.f32 %v3933, %v3859
        %v3958 = vadd.f32 %v3934, %v3864
        %v3959 = vadd.f32 %v3935, %v3867
        %v3960 = vadd.f32 %v3936, %v3872
        %v3961 = vadd.f32 %v3937, %v3875
        %v3962 = vadd.f32 %v3938, %v3880
        %v3963 = vadd.f32 %v3939, %v3883
        %v3964 = vadd.f32 %v3940, %v3888
        %v3965 = vadd.f32 %v3941, %v3891
        %v3966 = vadd.f32 %v3942, %v3896
        %v3967 = vadd.f32 %v3943, %v3899
        %v3968 = vadd.f32 %v3944, %v3904
        %v3969 = vadd.f32 %v3945, %v3907
        %v3970 = vadd.f32 %v3946, %v3912
        %v3971 = vadd.f32 %v3947, %v3915
        %v3972 = vadd.f32 %v3948, %v3920
        %v3973 = vadd.f32 %v3949, %v3923
        %3974 = vst [vmem:[#allocation2] sm:$0xff] %v3950
        %3975 = vst [vmem:[#allocation2 + $0x8] sm:$0xff] %v3951
        %3976 = vst [vmem:[#allocation2 + $0x10] sm:$0xff] %v3952
        %3977 = vst [vmem:[#allocation2 + $0x18] sm:$0xff] %v3953
        %3978 = vst [vmem:[#allocation2 + $0x20] sm:$0xff] %v3954
        %3979 = vst [vmem:[#allocation2 + $0x28] sm:$0xff] %v3955
        %3980 = vst [vmem:[#allocation2 + $0x30] sm:$0xff] %v3956
        %3981 = vst [vmem:[#allocation2 + $0x38] sm:$0xff] %v3957
        %3982 = vst [vmem:[#allocation2 + $0x40] sm:$0xff] %v3958
        %3983 = vst [vmem:[#allocation2 + $0x48] sm:$0xff] %v3959
        %3984 = vst [vmem:[#allocation2 + $0x50] sm:$0xff] %v3960
        %3985 = vst [vmem:[#allocation2 + $0x58] sm:$0xff] %v3961
        %3986 = vst [vmem:[#allocation2 + $0x60] sm:$0xff] %v3962
        %3987 = vst [vmem:[#allocation2 + $0x68] sm:$0xff] %v3963
        %3988 = vst [vmem:[#allocation2 + $0x70] sm:$0xff] %v3964
        %3989 = vst [vmem:[#allocation2 + $0x78] sm:$0xff] %v3965
        %3990 = vst [vmem:[#allocation2 + $0x80] sm:$0xff] %v3966
        %3991 = vst [vmem:[#allocation2 + $0x88] sm:$0xff] %v3967
        %3992 = vst [vmem:[#allocation2 + $0x90] sm:$0xff] %v3968
        %3993 = vst [vmem:[#allocation2 + $0x98] sm:$0xff] %v3969
        %3994 = vst [vmem:[#allocation2 + $0xa0] sm:$0xff] %v3970
        %3995 = vst [vmem:[#allocation2 + $0xa8] sm:$0xff] %v3971
        %3996 = vst [vmem:[#allocation2 + $0xb0] sm:$0xff] %v3972
        %3997 = vst [vmem:[#allocation2 + $0xb8] sm:$0xff] %v3973
        %v3998 = vld [vmem:[%s237 + $0xc] sm:$0xe]
        %v3999 = vld [vmem:[%s237 + $0x10] sm:$0xf]
        %v4000 = vld [vmem:[%s237 + $0x14] sm:$0xf]
        %v4001 = vld [vmem:[%s237 + $0x18] sm:$0xf]
        %v4002 = vld [vmem:[%s237 + $0x1c] sm:$0xf]
        %v4003 = vld [vmem:[%s237 + $0x20] sm:$0xf]
        %v4004 = vld [vmem:[%s237 + $0x24] sm:$0xf]
        %v4005 = vld [vmem:[%s237 + $0x28] sm:$0xf]
        %v4006 = vld [vmem:[%s237 + $0x2c] sm:$0x1]
        %v4007 = vld [vmem:[%s237 + $0x3c] sm:$0xe]
        %v4008 = vld [vmem:[%s237 + $0x40] sm:$0xf]
        %v4009 = vld [vmem:[%s237 + $0x44] sm:$0xf]
        %v4010 = vld [vmem:[%s237 + $0x48] sm:$0xf]
        %v4011 = vld [vmem:[%s237 + $0x4c] sm:$0xf]
        %v4012 = vld [vmem:[%s237 + $0x50] sm:$0xf]
        %v4013 = vld [vmem:[%s237 + $0x54] sm:$0xf]
        %v4014 = vld [vmem:[%s237 + $0x58] sm:$0xf]
        %v4015 = vld [vmem:[%s237 + $0x5c] sm:$0x1]
        %v4016 = vld [vmem:[%s237 + $0x6c] sm:$0xe]
        %v4017 = vld [vmem:[%s237 + $0x70] sm:$0xf]
        %v4018 = vld [vmem:[%s237 + $0x74] sm:$0xf]
        %v4019 = vld [vmem:[%s237 + $0x78] sm:$0xf]
        %v4020 = vld [vmem:[%s237 + $0x7c] sm:$0xf]
        %v4021 = vld [vmem:[%s237 + $0x80] sm:$0xf]
        %v4022 = vld [vmem:[%s237 + $0x84] sm:$0xf]
        %v4023 = vld [vmem:[%s237 + $0x88] sm:$0xf]
        %v4024 = vld [vmem:[%s237 + $0x8c] sm:$0x1]
        %vm4052 = vcmask 1042432
        %vm4053 = vcmask 1046532
        %vm4054 = vmor %vm4052, %vm4053
        %v4055 = vrot.slane %v3998, 5
        %v4056 = vrot.slane %v4055, 4
        %v4057 = vrot.slane %v3999, 5
        %v4058 = vsel %vm4054, %v4056, %v4057
        %v4059 = vrot.slane %v4057, 4
        %v4060 = vrot.slane %v4000, 5
        %v4061 = vsel %vm4054, %v4059, %v4060
        %v4062 = vrot.slane %v4060, 4
        %v4063 = vrot.slane %v4001, 5
        %v4064 = vsel %vm4054, %v4062, %v4063
        %v4065 = vrot.slane %v4063, 4
        %v4066 = vrot.slane %v4002, 5
        %v4067 = vsel %vm4054, %v4065, %v4066
        %v4068 = vrot.slane %v4066, 4
        %v4069 = vrot.slane %v4003, 5
        %v4070 = vsel %vm4054, %v4068, %v4069
        %v4071 = vrot.slane %v4069, 4
        %v4072 = vrot.slane %v4004, 5
        %v4073 = vsel %vm4054, %v4071, %v4072
        %v4074 = vrot.slane %v4072, 4
        %v4075 = vrot.slane %v4005, 5
        %v4076 = vsel %vm4054, %v4074, %v4075
        %v4077 = vrot.slane %v4075, 4
        %v4078 = vrot.slane %v4006, 5
        %v4079 = vsel %vm4054, %v4077, %v4078
        %v4080 = vrot.slane %v4007, 5
        %v4081 = vrot.slane %v4080, 4
        %v4082 = vrot.slane %v4008, 5
        %v4083 = vsel %vm4054, %v4081, %v4082
        %v4084 = vrot.slane %v4082, 4
        %v4085 = vrot.slane %v4009, 5
        %v4086 = vsel %vm4054, %v4084, %v4085
        %v4087 = vrot.slane %v4085, 4
        %v4088 = vrot.slane %v4010, 5
        %v4089 = vsel %vm4054, %v4087, %v4088
        %v4090 = vrot.slane %v4088, 4
        %v4091 = vrot.slane %v4011, 5
        %v4092 = vsel %vm4054, %v4090, %v4091
        %v4093 = vrot.slane %v4091, 4
        %v4094 = vrot.slane %v4012, 5
        %v4095 = vsel %vm4054, %v4093, %v4094
        %v4096 = vrot.slane %v4094, 4
        %v4097 = vrot.slane %v4013, 5
        %v4098 = vsel %vm4054, %v4096, %v4097
        %v4099 = vrot.slane %v4097, 4
        %v4100 = vrot.slane %v4014, 5
        %v4101 = vsel %vm4054, %v4099, %v4100
        %v4102 = vrot.slane %v4100, 4
        %v4103 = vrot.slane %v4015, 5
        %v4104 = vsel %vm4054, %v4102, %v4103
        %v4105 = vrot.slane %v4016, 5
        %v4106 = vrot.slane %v4105, 4
        %v4107 = vrot.slane %v4017, 5
        %v4108 = vsel %vm4054, %v4106, %v4107
        %v4109 = vrot.slane %v4107, 4
        %v4110 = vrot.slane %v4018, 5
        %v4111 = vsel %vm4054, %v4109, %v4110
        %v4112 = vrot.slane %v4110, 4
        %v4113 = vrot.slane %v4019, 5
        %v4114 = vsel %vm4054, %v4112, %v4113
        %v4115 = vrot.slane %v4113, 4
        %v4116 = vrot.slane %v4020, 5
        %v4117 = vsel %vm4054, %v4115, %v4116
        %v4118 = vrot.slane %v4116, 4
        %v4119 = vrot.slane %v4021, 5
        %v4120 = vsel %vm4054, %v4118, %v4119
        %v4121 = vrot.slane %v4119, 4
        %v4122 = vrot.slane %v4022, 5
        %v4123 = vsel %vm4054, %v4121, %v4122
        %v4124 = vrot.slane %v4122, 4
        %v4125 = vrot.slane %v4023, 5
        %v4126 = vsel %vm4054, %v4124, %v4125
        %v4127 = vrot.slane %v4125, 4
        %v4128 = vrot.slane %v4024, 5
        %v4129 = vsel %vm4054, %v4127, %v4128
        %s4130 = scalar_lea.vmem %s242, 256
        %v4131 = vld [vmem:[%s4130] sm:$0xf]
        %v4132 = vld [vmem:[%s4130 + $0x4] sm:$0xf]
        %v4133 = vld [vmem:[%s4130 + $0x8] sm:$0xf]
        %v4134 = vld [vmem:[%s4130 + $0xc] sm:$0xf]
        %v4135 = vld [vmem:[%s4130 + $0x10] sm:$0xf]
        %v4136 = vld [vmem:[%s4130 + $0x14] sm:$0xf]
        %v4137 = vld [vmem:[%s4130 + $0x18] sm:$0xf]
        %v4138 = vld [vmem:[%s4130 + $0x1c] sm:$0xf]
        %v4139 = vunpack.c.l.b16 %v4058
        %v4140 = vunpack.c.l.b16 %v4061
        %v4141 = vunpack.c.l.b16 %v4064
        %v4142 = vunpack.c.l.b16 %v4067
        %v4143 = vunpack.c.l.b16 %v4070
        %v4144 = vunpack.c.l.b16 %v4073
        %v4145 = vunpack.c.l.b16 %v4076
        %v4146 = vunpack.c.l.b16 %v4079
        %v4147 = vunpack.c.l.b16 %v4083
        %v4148 = vunpack.c.l.b16 %v4086
        %v4149 = vunpack.c.l.b16 %v4089
        %v4150 = vunpack.c.l.b16 %v4092
        %v4151 = vunpack.c.l.b16 %v4095
        %v4152 = vunpack.c.l.b16 %v4098
        %v4153 = vunpack.c.l.b16 %v4101
        %v4154 = vunpack.c.l.b16 %v4104
        %v4155 = vunpack.c.l.b16 %v4108
        %v4156 = vunpack.c.l.b16 %v4111
        %v4157 = vunpack.c.l.b16 %v4114
        %v4158 = vunpack.c.l.b16 %v4117
        %v4159 = vunpack.c.l.b16 %v4120
        %v4160 = vunpack.c.l.b16 %v4123
        %v4161 = vunpack.c.l.b16 %v4126
        %v4162 = vunpack.c.l.b16 %v4129
        %v4163 = vpack.c.b16 %v4140, %v4139
        %v4164 = vpack.c.b16 %v4142, %v4141
        %v4165 = vpack.c.b16 %v4144, %v4143
        %v4166 = vpack.c.b16 %v4146, %v4145
        %v4167 = vpack.c.b16 %v4148, %v4147
        %v4168 = vpack.c.b16 %v4150, %v4149
        %v4169 = vpack.c.b16 %v4152, %v4151
        %v4170 = vpack.c.b16 %v4154, %v4153
        %v4171 = vpack.c.b16 %v4156, %v4155
        %v4172 = vpack.c.b16 %v4158, %v4157
        %v4173 = vpack.c.b16 %v4160, %v4159
        %v4174 = vpack.c.b16 %v4162, %v4161
        %v4183 = vunpack.c.l.b16 %v4131
        %v4184 = vunpack.c.l.b16 %v4132
        %v4185 = vunpack.c.l.b16 %v4133
        %v4186 = vunpack.c.l.b16 %v4134
        %v4187 = vunpack.c.l.b16 %v4135
        %v4188 = vunpack.c.l.b16 %v4136
        %v4189 = vunpack.c.l.b16 %v4137
        %v4190 = vunpack.c.l.b16 %v4138
        %v4191 = vpack.c.b16 %v4184, %v4183
        %v4192 = vpack.c.b16 %v4186, %v4185
        %v4193 = vpack.c.b16 %v4188, %v4187
        %v4194 = vpack.c.b16 %v4190, %v4189
        %v4200 = vsel %vm448, %v4163, 0
        %v4203 = vsel %vm448, %v4164, 0
        %v4206 = vsel %vm448, %v4165, 0
        %v4209 = vsel %vm448, %v4166, 0
        %v4212 = vsel %vm448, %v4167, 0
        %v4215 = vsel %vm448, %v4168, 0
        %v4218 = vsel %vm448, %v4169, 0
        %v4221 = vsel %vm448, %v4170, 0
        %v4224 = vsel %vm448, %v4171, 0
        %v4227 = vsel %vm448, %v4172, 0
        %v4230 = vsel %vm448, %v4173, 0
        %v4233 = vsel %vm448, %v4174, 0
        %4235 = vmatprep.subr.bf16.mxu0 0
        %4236 = vmatpush1.bf16.msra.mxu0 %v4191
        %4237 = vmatprep.subr.bf16.mxu0 0
        %4238 = vmatpush1.bf16.msra.mxu0 %v4192
        %4239 = vmatprep.subr.bf16.mxu0 0
        %4240 = vmatpush1.bf16.msra.mxu0 %v4193
        %4241 = vmatprep.subr.bf16.mxu0 0
        %4242 = vmatpush1.bf16.msra.mxu0 %v4194
        %4243 = vmatprep.subr.bf16.mxu0 0
        %4244 = vmatpush1.bf16.msra.mxu0 0
        %4245 = vmatprep.subr.bf16.mxu0 0
        %4246 = vmatpush1.bf16.msra.mxu0 0
        %4247 = vmatprep.subr.bf16.mxu0 0
        %4248 = vmatpush1.bf16.msra.mxu0 0
        %4249 = vmatprep.subr.bf16.mxu0 0
        %4250 = vmatpush1.bf16.msra.mxu0 0
        %4251 = vmatprep.subr.bf16.mxu0 0
        %4252 = vmatpush1.bf16.msra.mxu0 0
        %4253 = vmatprep.subr.bf16.mxu0 0
        %4254 = vmatpush1.bf16.msra.mxu0 0
        %4255 = vmatprep.subr.bf16.mxu0 0
        %4256 = vmatpush1.bf16.msra.mxu0 0
        %4257 = vmatprep.subr.bf16.mxu0 0
        %4258 = vmatpush1.bf16.msra.mxu0 0
        %4259 = vmatprep.subr.bf16.mxu0 0
        %4260 = vmatpush1.bf16.msra.mxu0 0
        %4261 = vmatprep.subr.bf16.mxu0 0
        %4262 = vmatpush1.bf16.msra.mxu0 0
        %4263 = vmatprep.subr.bf16.mxu0 0
        %4264 = vmatpush1.bf16.msra.mxu0 0
        %4265 = vmatprep.subr.bf16.mxu0 0
        %4266 = vmatpush1.bf16.msra.mxu0 0
        %4267 = vmatprep.mubr.bf16.mxu0 0
        %4268 = vmatmul.mubr.bf16.gmra.mrb[0].mxu0 %v4200
        %v4269 = vpop.f32.mrb[0].mxu0
        %v4270 = vadd.f32 0.0, %v4269
        %v4271 = vpop.f32.mrb[0].mxu0
        %v4272 = vpop.f32.mrb[0].mxu0
        %v4273 = vadd.f32 0.0, %v4272
        %v4274 = vpop.f32.mrb[0].mxu0
        %4275 = vmatprep.mubr.bf16.mxu0 0
        %4276 = vmatmul.mubr.bf16.gmra.mrb[0].mxu0 %v4203
        %v4277 = vpop.f32.mrb[0].mxu0
        %v4278 = vadd.f32 0.0, %v4277
        %v4279 = vpop.f32.mrb[0].mxu0
        %v4280 = vpop.f32.mrb[0].mxu0
        %v4281 = vadd.f32 0.0, %v4280
        %v4282 = vpop.f32.mrb[0].mxu0
        %4283 = vmatprep.mubr.bf16.mxu0 0
        %4284 = vmatmul.mubr.bf16.gmra.mrb[0].mxu0 %v4206
        %v4285 = vpop.f32.mrb[0].mxu0
        %v4286 = vadd.f32 0.0, %v4285
        %v4287 = vpop.f32.mrb[0].mxu0
        %v4288 = vpop.f32.mrb[0].mxu0
        %v4289 = vadd.f32 0.0, %v4288
        %v4290 = vpop.f32.mrb[0].mxu0
        %4291 = vmatprep.mubr.bf16.mxu0 0
        %4292 = vmatmul.mubr.bf16.gmra.mrb[0].mxu0 %v4209
        %v4293 = vpop.f32.mrb[0].mxu0
        %v4294 = vadd.f32 0.0, %v4293
        %v4295 = vpop.f32.mrb[0].mxu0
        %v4296 = vpop.f32.mrb[0].mxu0
        %v4297 = vadd.f32 0.0, %v4296
        %v4298 = vpop.f32.mrb[0].mxu0
        %4299 = vmatprep.mubr.bf16.mxu0 0
        %4300 = vmatmul.mubr.bf16.gmra.mrb[0].mxu0 %v4212
        %v4301 = vpop.f32.mrb[0].mxu0
        %v4302 = vadd.f32 0.0, %v4301
        %v4303 = vpop.f32.mrb[0].mxu0
        %v4304 = vpop.f32.mrb[0].mxu0
        %v4305 = vadd.f32 0.0, %v4304
        %v4306 = vpop.f32.mrb[0].mxu0
        %4307 = vmatprep.mubr.bf16.mxu0 0
        %4308 = vmatmul.mubr.bf16.gmra.mrb[0].mxu0 %v4215
        %v4309 = vpop.f32.mrb[0].mxu0
        %v4310 = vadd.f32 0.0, %v4309
        %v4311 = vpop.f32.mrb[0].mxu0
        %v4312 = vpop.f32.mrb[0].mxu0
        %v4313 = vadd.f32 0.0, %v4312
        %v4314 = vpop.f32.mrb[0].mxu0
        %4315 = vmatprep.mubr.bf16.mxu0 0
        %4316 = vmatmul.mubr.bf16.gmra.mrb[0].mxu0 %v4218
        %v4317 = vpop.f32.mrb[0].mxu0
        %v4318 = vadd.f32 0.0, %v4317
        %v4319 = vpop.f32.mrb[0].mxu0
        %v4320 = vpop.f32.mrb[0].mxu0
        %v4321 = vadd.f32 0.0, %v4320
        %v4322 = vpop.f32.mrb[0].mxu0
        %4323 = vmatprep.mubr.bf16.mxu0 0
        %4324 = vmatmul.mubr.bf16.gmra.mrb[0].mxu0 %v4221
        %v4325 = vpop.f32.mrb[0].mxu0
        %v4326 = vadd.f32 0.0, %v4325
        %v4327 = vpop.f32.mrb[0].mxu0
        %v4328 = vpop.f32.mrb[0].mxu0
        %v4329 = vadd.f32 0.0, %v4328
        %v4330 = vpop.f32.mrb[0].mxu0
        %4331 = vmatprep.mubr.bf16.mxu0 0
        %4332 = vmatmul.mubr.bf16.gmra.mrb[0].mxu0 %v4224
        %v4333 = vpop.f32.mrb[0].mxu0
        %v4334 = vadd.f32 0.0, %v4333
        %v4335 = vpop.f32.mrb[0].mxu0
        %v4336 = vpop.f32.mrb[0].mxu0
        %v4337 = vadd.f32 0.0, %v4336
        %v4338 = vpop.f32.mrb[0].mxu0
        %4339 = vmatprep.mubr.bf16.mxu0 0
        %4340 = vmatmul.mubr.bf16.gmra.mrb[0].mxu0 %v4227
        %v4341 = vpop.f32.mrb[0].mxu0
        %v4342 = vadd.f32 0.0, %v4341
        %v4343 = vpop.f32.mrb[0].mxu0
        %v4344 = vpop.f32.mrb[0].mxu0
        %v4345 = vadd.f32 0.0, %v4344
        %v4346 = vpop.f32.mrb[0].mxu0
        %4347 = vmatprep.mubr.bf16.mxu0 0
        %4348 = vmatmul.mubr.bf16.gmra.mrb[0].mxu0 %v4230
        %v4349 = vpop.f32.mrb[0].mxu0
        %v4350 = vadd.f32 0.0, %v4349
        %v4351 = vpop.f32.mrb[0].mxu0
        %v4352 = vpop.f32.mrb[0].mxu0
        %v4353 = vadd.f32 0.0, %v4352
        %v4354 = vpop.f32.mrb[0].mxu0
        %4355 = vmatprep.mubr.bf16.mxu0 0
        %4356 = vmatmul.mubr.bf16.gmra.mrb[0].mxu0 %v4233
        %v4357 = vpop.f32.mrb[0].mxu0
        %v4358 = vadd.f32 0.0, %v4357
        %v4359 = vpop.f32.mrb[0].mxu0
        %v4360 = vpop.f32.mrb[0].mxu0
        %v4361 = vadd.f32 0.0, %v4360
        %v4362 = vpop.f32.mrb[0].mxu0
        %4363 = vdwg.mxu0
        %v4364 = vld [vmem:[#allocation2] sm:$0xff]
        %v4365 = vld [vmem:[#allocation2 + $0x8] sm:$0xff]
        %v4366 = vld [vmem:[#allocation2 + $0x10] sm:$0xff]
        %v4367 = vld [vmem:[#allocation2 + $0x18] sm:$0xff]
        %v4368 = vld [vmem:[#allocation2 + $0x20] sm:$0xff]
        %v4369 = vld [vmem:[#allocation2 + $0x28] sm:$0xff]
        %v4370 = vld [vmem:[#allocation2 + $0x30] sm:$0xff]
        %v4371 = vld [vmem:[#allocation2 + $0x38] sm:$0xff]
        %v4372 = vld [vmem:[#allocation2 + $0x40] sm:$0xff]
        %v4373 = vld [vmem:[#allocation2 + $0x48] sm:$0xff]
        %v4374 = vld [vmem:[#allocation2 + $0x50] sm:$0xff]
        %v4375 = vld [vmem:[#allocation2 + $0x58] sm:$0xff]
        %v4376 = vld [vmem:[#allocation2 + $0x60] sm:$0xff]
        %v4377 = vld [vmem:[#allocation2 + $0x68] sm:$0xff]
        %v4378 = vld [vmem:[#allocation2 + $0x70] sm:$0xff]
        %v4379 = vld [vmem:[#allocation2 + $0x78] sm:$0xff]
        %v4380 = vld [vmem:[#allocation2 + $0x80] sm:$0xff]
        %v4381 = vld [vmem:[#allocation2 + $0x88] sm:$0xff]
        %v4382 = vld [vmem:[#allocation2 + $0x90] sm:$0xff]
        %v4383 = vld [vmem:[#allocation2 + $0x98] sm:$0xff]
        %v4384 = vld [vmem:[#allocation2 + $0xa0] sm:$0xff]
        %v4385 = vld [vmem:[#allocation2 + $0xa8] sm:$0xff]
        %v4386 = vld [vmem:[#allocation2 + $0xb0] sm:$0xff]
        %v4387 = vld [vmem:[#allocation2 + $0xb8] sm:$0xff]
        %v4388 = vadd.f32 %v4364, %v4270
        %v4389 = vadd.f32 %v4365, %v4273
        %v4390 = vadd.f32 %v4366, %v4278
        %v4391 = vadd.f32 %v4367, %v4281
        %v4392 = vadd.f32 %v4368, %v4286
        %v4393 = vadd.f32 %v4369, %v4289
        %v4394 = vadd.f32 %v4370, %v4294
        %v4395 = vadd.f32 %v4371, %v4297
        %v4396 = vadd.f32 %v4372, %v4302
        %v4397 = vadd.f32 %v4373, %v4305
        %v4398 = vadd.f32 %v4374, %v4310
        %v4399 = vadd.f32 %v4375, %v4313
        %v4400 = vadd.f32 %v4376, %v4318
        %v4401 = vadd.f32 %v4377, %v4321
        %v4402 = vadd.f32 %v4378, %v4326
        %v4403 = vadd.f32 %v4379, %v4329
        %v4404 = vadd.f32 %v4380, %v4334
        %v4405 = vadd.f32 %v4381, %v4337
        %v4406 = vadd.f32 %v4382, %v4342
        %v4407 = vadd.f32 %v4383, %v4345
        %v4408 = vadd.f32 %v4384, %v4350
        %v4409 = vadd.f32 %v4385, %v4353
        %v4410 = vadd.f32 %v4386, %v4358
        %v4411 = vadd.f32 %v4387, %v4361
        %4412 = vst [vmem:[#allocation2] sm:$0xff] %v4388
        %4413 = vst [vmem:[#allocation2 + $0x8] sm:$0xff] %v4389
        %4414 = vst [vmem:[#allocation2 + $0x10] sm:$0xff] %v4390
        %4415 = vst [vmem:[#allocation2 + $0x18] sm:$0xff] %v4391
        %4416 = vst [vmem:[#allocation2 + $0x20] sm:$0xff] %v4392
        %4417 = vst [vmem:[#allocation2 + $0x28] sm:$0xff] %v4393
        %4418 = vst [vmem:[#allocation2 + $0x30] sm:$0xff] %v4394
        %4419 = vst [vmem:[#allocation2 + $0x38] sm:$0xff] %v4395
        %4420 = vst [vmem:[#allocation2 + $0x40] sm:$0xff] %v4396
        %4421 = vst [vmem:[#allocation2 + $0x48] sm:$0xff] %v4397
        %4422 = vst [vmem:[#allocation2 + $0x50] sm:$0xff] %v4398
        %4423 = vst [vmem:[#allocation2 + $0x58] sm:$0xff] %v4399
        %4424 = vst [vmem:[#allocation2 + $0x60] sm:$0xff] %v4400
        %4425 = vst [vmem:[#allocation2 + $0x68] sm:$0xff] %v4401
        %4426 = vst [vmem:[#allocation2 + $0x70] sm:$0xff] %v4402
        %4427 = vst [vmem:[#allocation2 + $0x78] sm:$0xff] %v4403
        %4428 = vst [vmem:[#allocation2 + $0x80] sm:$0xff] %v4404
        %4429 = vst [vmem:[#allocation2 + $0x88] sm:$0xff] %v4405
        %4430 = vst [vmem:[#allocation2 + $0x90] sm:$0xff] %v4406
        %4431 = vst [vmem:[#allocation2 + $0x98] sm:$0xff] %v4407
        %4432 = vst [vmem:[#allocation2 + $0xa0] sm:$0xff] %v4408
        %4433 = vst [vmem:[#allocation2 + $0xa8] sm:$0xff] %v4409
        %4434 = vst [vmem:[#allocation2 + $0xb0] sm:$0xff] %v4410
        %4435 = vst [vmem:[#allocation2 + $0xb8] sm:$0xff] %v4411
        %v4436 = vld [vmem:[#allocation2] sm:$0xff]
        %v4437 = vld [vmem:[#allocation2 + $0x8] sm:$0xff]
        %v4438 = vld [vmem:[#allocation2 + $0x10] sm:$0xff]
        %v4439 = vld [vmem:[#allocation2 + $0x18] sm:$0xff]
        %v4440 = vld [vmem:[#allocation2 + $0x20] sm:$0xff]
        %v4441 = vld [vmem:[#allocation2 + $0x28] sm:$0xff]
        %v4442 = vld [vmem:[#allocation2 + $0x30] sm:$0xff]
        %v4443 = vld [vmem:[#allocation2 + $0x38] sm:$0xff]
        %v4444 = vld [vmem:[#allocation2 + $0x40] sm:$0xff]
        %v4445 = vld [vmem:[#allocation2 + $0x48] sm:$0xff]
        %v4446 = vld [vmem:[#allocation2 + $0x50] sm:$0xff]
        %v4447 = vld [vmem:[#allocation2 + $0x58] sm:$0xff]
        %v4448 = vld [vmem:[#allocation2 + $0x60] sm:$0xff]
        %v4449 = vld [vmem:[#allocation2 + $0x68] sm:$0xff]
        %v4450 = vld [vmem:[#allocation2 + $0x70] sm:$0xff]
        %v4451 = vld [vmem:[#allocation2 + $0x78] sm:$0xff]
        %v4452 = vld [vmem:[#allocation2 + $0x80] sm:$0xff]
        %v4453 = vld [vmem:[#allocation2 + $0x88] sm:$0xff]
        %v4454 = vld [vmem:[#allocation2 + $0x90] sm:$0xff]
        %v4455 = vld [vmem:[#allocation2 + $0x98] sm:$0xff]
        %v4456 = vld [vmem:[#allocation2 + $0xa0] sm:$0xff]
        %v4457 = vld [vmem:[#allocation2 + $0xa8] sm:$0xff]
        %v4458 = vld [vmem:[#allocation2 + $0xb0] sm:$0xff]
        %v4459 = vld [vmem:[#allocation2 + $0xb8] sm:$0xff]
        %v4460 = vld [vmem:[%s245] sm:$0x1]
        %v4462 = vlaneseq
        %v4463 = vshrl.u32 %v4462, 7
        %v4464 = vsub.s32 0, %v4463
        %v4465 = vrot.slane %v4460, %v4464
        %v4467 = vadd.f32 %v4436, %v4465
        %v4468 = vadd.f32 %v4437, %v4465
        %v4469 = vadd.f32 %v4438, %v4465
        %v4470 = vadd.f32 %v4439, %v4465
        %v4471 = vadd.f32 %v4440, %v4465
        %v4472 = vadd.f32 %v4441, %v4465
        %v4473 = vadd.f32 %v4442, %v4465
        %v4474 = vadd.f32 %v4443, %v4465
        %v4475 = vadd.f32 %v4444, %v4465
        %v4476 = vadd.f32 %v4445, %v4465
        %v4477 = vadd.f32 %v4446, %v4465
        %v4478 = vadd.f32 %v4447, %v4465
        %v4479 = vadd.f32 %v4448, %v4465
        %v4480 = vadd.f32 %v4449, %v4465
        %v4481 = vadd.f32 %v4450, %v4465
        %v4482 = vadd.f32 %v4451, %v4465
        %v4483 = vadd.f32 %v4452, %v4465
        %v4484 = vadd.f32 %v4453, %v4465
        %v4485 = vadd.f32 %v4454, %v4465
        %v4486 = vadd.f32 %v4455, %v4465
        %v4487 = vadd.f32 %v4456, %v4465
        %v4488 = vadd.f32 %v4457, %v4465
        %v4489 = vadd.f32 %v4458, %v4465
        %v4490 = vadd.f32 %v4459, %v4465
        %v4491 = vmax.f32 %v4467, 0.0
        %v4492 = vmax.f32 %v4468, 0.0
        %v4493 = vmax.f32 %v4469, 0.0
        %v4494 = vmax.f32 %v4470, 0.0
        %v4495 = vmax.f32 %v4471, 0.0
        %v4496 = vmax.f32 %v4472, 0.0
        %v4497 = vmax.f32 %v4473, 0.0
        %v4498 = vmax.f32 %v4474, 0.0
        %v4499 = vmax.f32 %v4475, 0.0
        %v4500 = vmax.f32 %v4476, 0.0
        %v4501 = vmax.f32 %v4477, 0.0
        %v4502 = vmax.f32 %v4478, 0.0
        %v4503 = vmax.f32 %v4479, 0.0
        %v4504 = vmax.f32 %v4480, 0.0
        %v4505 = vmax.f32 %v4481, 0.0
        %v4506 = vmax.f32 %v4482, 0.0
        %v4507 = vmax.f32 %v4483, 0.0
        %v4508 = vmax.f32 %v4484, 0.0
        %v4509 = vmax.f32 %v4485, 0.0
        %v4510 = vmax.f32 %v4486, 0.0
        %v4511 = vmax.f32 %v4487, 0.0
        %v4512 = vmax.f32 %v4488, 0.0
        %v4513 = vmax.f32 %v4489, 0.0
        %v4514 = vmax.f32 %v4490, 0.0
        %v4515 = vld [vmem:[%s3] sm:$0xff]
        %v4516 = vld [vmem:[%s3 + $0x8] sm:$0xff]
        %v4517 = vld [vmem:[%s3 + $0x10] sm:$0xff]
        %v4518 = vld [vmem:[%s3 + $0x18] sm:$0xff]
        %v4519 = vld [vmem:[%s3 + $0x20] sm:$0xff]
        %v4520 = vld [vmem:[%s3 + $0x28] sm:$0xff]
        %v4521 = vld [vmem:[%s3 + $0x30] sm:$0xff]
        %v4522 = vld [vmem:[%s3 + $0x38] sm:$0xff]
        %v4523 = vld [vmem:[%s3 + $0x40] sm:$0xff]
        %v4524 = vld [vmem:[%s3 + $0x48] sm:$0xff]
        %v4525 = vld [vmem:[%s3 + $0x50] sm:$0xff]
        %v4526 = vld [vmem:[%s3 + $0x58] sm:$0xff]
        %v4527 = vld [vmem:[%s3 + $0x60] sm:$0xff]
        %v4528 = vld [vmem:[%s3 + $0x68] sm:$0xff]
        %v4529 = vld [vmem:[%s3 + $0x70] sm:$0xff]
        %v4530 = vld [vmem:[%s3 + $0x78] sm:$0xff]
        %v4531 = vld [vmem:[%s3 + $0x80] sm:$0xff]
        %v4532 = vld [vmem:[%s3 + $0x88] sm:$0xff]
        %v4533 = vld [vmem:[%s3 + $0x90] sm:$0xff]
        %v4534 = vld [vmem:[%s3 + $0x98] sm:$0xff]
        %v4535 = vld [vmem:[%s3 + $0xa0] sm:$0xff]
        %v4536 = vld [vmem:[%s3 + $0xa8] sm:$0xff]
        %v4537 = vld [vmem:[%s3 + $0xb0] sm:$0xff]
        %v4538 = vld [vmem:[%s3 + $0xb8] sm:$0xff]
        %4540 = vset.pattern.permute.xlu0 0
        %4541 = vperm.xlu0 %4540, %v4515
        %v4542 = vpop.permute.xlu0 %4541
        %4545 = vset.pattern.permute.xlu0 0
        %4546 = vperm.xlu0 %4545, %v4516
        %v4547 = vpop.permute.xlu0 %4546
        %4550 = vset.pattern.permute.xlu0 0
        %4551 = vperm.xlu0 %4550, %v4517
        %v4552 = vpop.permute.xlu0 %4551
        %4555 = vset.pattern.permute.xlu0 0
        %4556 = vperm.xlu0 %4555, %v4518
        %v4557 = vpop.permute.xlu0 %4556
        %4560 = vset.pattern.permute.xlu0 0
        %4561 = vperm.xlu0 %4560, %v4519
        %v4562 = vpop.permute.xlu0 %4561
        %4565 = vset.pattern.permute.xlu0 0
        %4566 = vperm.xlu0 %4565, %v4520
        %v4567 = vpop.permute.xlu0 %4566
        %4570 = vset.pattern.permute.xlu0 0
        %4571 = vperm.xlu0 %4570, %v4521
        %v4572 = vpop.permute.xlu0 %4571
        %4575 = vset.pattern.permute.xlu0 0
        %4576 = vperm.xlu0 %4575, %v4522
        %v4577 = vpop.permute.xlu0 %4576
        %4580 = vset.pattern.permute.xlu0 0
        %4581 = vperm.xlu0 %4580, %v4523
        %v4582 = vpop.permute.xlu0 %4581
        %4585 = vset.pattern.permute.xlu0 0
        %4586 = vperm.xlu0 %4585, %v4524
        %v4587 = vpop.permute.xlu0 %4586
        %4590 = vset.pattern.permute.xlu0 0
        %4591 = vperm.xlu0 %4590, %v4525
        %v4592 = vpop.permute.xlu0 %4591
        %4595 = vset.pattern.permute.xlu0 0
        %4596 = vperm.xlu0 %4595, %v4526
        %v4597 = vpop.permute.xlu0 %4596
        %4600 = vset.pattern.permute.xlu0 0
        %4601 = vperm.xlu0 %4600, %v4527
        %v4602 = vpop.permute.xlu0 %4601
        %4605 = vset.pattern.permute.xlu0 0
        %4606 = vperm.xlu0 %4605, %v4528
        %v4607 = vpop.permute.xlu0 %4606
        %4610 = vset.pattern.permute.xlu0 0
        %4611 = vperm.xlu0 %4610, %v4529
        %v4612 = vpop.permute.xlu0 %4611
        %4615 = vset.pattern.permute.xlu0 0
        %4616 = vperm.xlu0 %4615, %v4530
        %v4617 = vpop.permute.xlu0 %4616
        %4620 = vset.pattern.permute.xlu0 0
        %4621 = vperm.xlu0 %4620, %v4531
        %v4622 = vpop.permute.xlu0 %4621
        %4625 = vset.pattern.permute.xlu0 0
        %4626 = vperm.xlu0 %4625, %v4532
        %v4627 = vpop.permute.xlu0 %4626
        %4630 = vset.pattern.permute.xlu0 0
        %4631 = vperm.xlu0 %4630, %v4533
        %v4632 = vpop.permute.xlu0 %4631
        %4635 = vset.pattern.permute.xlu0 0
        %4636 = vperm.xlu0 %4635, %v4534
        %v4637 = vpop.permute.xlu0 %4636
        %4640 = vset.pattern.permute.xlu0 0
        %4641 = vperm.xlu0 %4640, %v4535
        %v4642 = vpop.permute.xlu0 %4641
        %4645 = vset.pattern.permute.xlu0 0
        %4646 = vperm.xlu0 %4645, %v4536
        %v4647 = vpop.permute.xlu0 %4646
        %4650 = vset.pattern.permute.xlu0 0
        %4651 = vperm.xlu0 %4650, %v4537
        %v4652 = vpop.permute.xlu0 %4651
        %4655 = vset.pattern.permute.xlu0 0
        %4656 = vperm.xlu0 %4655, %v4538
        %v4657 = vpop.permute.xlu0 %4656
        %v4659 = vmul.f32 %v4491, %v4542
        %v4660 = vmul.f32 %v4492, %v4547
        %v4661 = vmul.f32 %v4493, %v4552
        %v4662 = vmul.f32 %v4494, %v4557
        %v4663 = vmul.f32 %v4495, %v4562
        %v4664 = vmul.f32 %v4496, %v4567
        %v4665 = vmul.f32 %v4497, %v4572
        %v4666 = vmul.f32 %v4498, %v4577
        %v4667 = vmul.f32 %v4499, %v4582
        %v4668 = vmul.f32 %v4500, %v4587
        %v4669 = vmul.f32 %v4501, %v4592
        %v4670 = vmul.f32 %v4502, %v4597
        %v4671 = vmul.f32 %v4503, %v4602
        %v4672 = vmul.f32 %v4504, %v4607
        %v4673 = vmul.f32 %v4505, %v4612
        %v4674 = vmul.f32 %v4506, %v4617
        %v4675 = vmul.f32 %v4507, %v4622
        %v4676 = vmul.f32 %v4508, %v4627
        %v4677 = vmul.f32 %v4509, %v4632
        %v4678 = vmul.f32 %v4510, %v4637
        %v4679 = vmul.f32 %v4511, %v4642
        %v4680 = vmul.f32 %v4512, %v4647
        %v4681 = vmul.f32 %v4513, %v4652
        %v4682 = vmul.f32 %v4514, %v4657
        %v4683 = vpack.c.bf16 %v4660, %v4659
        %v4684 = vpack.c.bf16 %v4662, %v4661
        %v4685 = vpack.c.bf16 %v4664, %v4663
        %v4686 = vpack.c.bf16 %v4666, %v4665
        %v4687 = vpack.c.bf16 %v4668, %v4667
        %v4688 = vpack.c.bf16 %v4670, %v4669
        %v4689 = vpack.c.bf16 %v4672, %v4671
        %v4690 = vpack.c.bf16 %v4674, %v4673
        %v4691 = vpack.c.bf16 %v4676, %v4675
        %v4692 = vpack.c.bf16 %v4678, %v4677
        %v4693 = vpack.c.bf16 %v4680, %v4679
        %v4694 = vpack.c.bf16 %v4682, %v4681
        %v4707 = vunpack.c.l.b16 %v4683
        %v4708 = vunpack.c.h.b16 %v4683
        %v4709 = vunpack.c.l.b16 %v4684
        %v4710 = vunpack.c.h.b16 %v4684
        %v4711 = vunpack.c.l.b16 %v4685
        %v4712 = vunpack.c.h.b16 %v4685
        %v4713 = vunpack.c.l.b16 %v4686
        %v4714 = vunpack.c.h.b16 %v4686
        %v4715 = vunpack.c.l.b16 %v4687
        %v4716 = vunpack.c.h.b16 %v4687
        %v4717 = vunpack.c.l.b16 %v4688
        %v4718 = vunpack.c.h.b16 %v4688
        %v4719 = vunpack.c.l.b16 %v4689
        %v4720 = vunpack.c.h.b16 %v4689
        %v4721 = vunpack.c.l.b16 %v4690
        %v4722 = vunpack.c.h.b16 %v4690
        %v4723 = vunpack.c.l.b16 %v4691
        %v4724 = vunpack.c.h.b16 %v4691
        %v4725 = vunpack.c.l.b16 %v4692
        %v4726 = vunpack.c.h.b16 %v4692
        %v4727 = vunpack.c.l.b16 %v4693
        %v4728 = vunpack.c.h.b16 %v4693
        %v4729 = vunpack.c.l.b16 %v4694
        %v4730 = vunpack.c.h.b16 %v4694
        %v4731 = vpack.c.b16 %v4707, %v4707
        %v4732 = vpack.c.b16 %v4708, %v4708
        %v4733 = vpack.c.b16 %v4709, %v4709
        %v4734 = vpack.c.b16 %v4710, %v4710
        %v4735 = vpack.c.b16 %v4711, %v4711
        %v4736 = vpack.c.b16 %v4712, %v4712
        %v4737 = vpack.c.b16 %v4713, %v4713
        %v4738 = vpack.c.b16 %v4714, %v4714
        %v4739 = vpack.c.b16 %v4715, %v4715
        %v4740 = vpack.c.b16 %v4716, %v4716
        %v4741 = vpack.c.b16 %v4717, %v4717
        %v4742 = vpack.c.b16 %v4718, %v4718
        %v4743 = vpack.c.b16 %v4719, %v4719
        %v4744 = vpack.c.b16 %v4720, %v4720
        %v4745 = vpack.c.b16 %v4721, %v4721
        %v4746 = vpack.c.b16 %v4722, %v4722
        %v4747 = vpack.c.b16 %v4723, %v4723
        %v4748 = vpack.c.b16 %v4724, %v4724
        %v4749 = vpack.c.b16 %v4725, %v4725
        %v4750 = vpack.c.b16 %v4726, %v4726
        %v4751 = vpack.c.b16 %v4727, %v4727
        %v4752 = vpack.c.b16 %v4728, %v4728
        %v4753 = vpack.c.b16 %v4729, %v4729
        %v4754 = vpack.c.b16 %v4730, %v4730
        %4779 = vst [vmem:[%s231] sm:$0xf] %v4731
        %4780 = vst [vmem:[%s231 + $0x4] sm:$0xf] %v4732
        %4781 = vst [vmem:[%s231 + $0x8] sm:$0xf] %v4733
        %4782 = vst [vmem:[%s231 + $0xc] sm:$0xf] %v4734
        %4783 = vst [vmem:[%s231 + $0x10] sm:$0xf] %v4735
        %4784 = vst [vmem:[%s231 + $0x14] sm:$0xf] %v4736
        %4785 = vst [vmem:[%s231 + $0x18] sm:$0xf] %v4737
        %4786 = vst [vmem:[%s231 + $0x1c] sm:$0xf] %v4738
        %4787 = vst [vmem:[%s231 + $0x20] sm:$0xf] %v4739
        %4788 = vst [vmem:[%s231 + $0x24] sm:$0xf] %v4740
        %4789 = vst [vmem:[%s231 + $0x28] sm:$0xf] %v4741
        %4790 = vst [vmem:[%s231 + $0x2c] sm:$0xf] %v4742
        %4791 = vst [vmem:[%s231 + $0x30] sm:$0xf] %v4743
        %4792 = vst [vmem:[%s231 + $0x34] sm:$0xf] %v4744
        %4793 = vst [vmem:[%s231 + $0x38] sm:$0xf] %v4745
        %4794 = vst [vmem:[%s231 + $0x3c] sm:$0xf] %v4746
        %4795 = vst [vmem:[%s231 + $0x40] sm:$0xf] %v4747
        %4796 = vst [vmem:[%s231 + $0x44] sm:$0xf] %v4748
        %4797 = vst [vmem:[%s231 + $0x48] sm:$0xf] %v4749
        %4798 = vst [vmem:[%s231 + $0x4c] sm:$0xf] %v4750
        %4799 = vst [vmem:[%s231 + $0x50] sm:$0xf] %v4751
        %4800 = vst [vmem:[%s231 + $0x54] sm:$0xf] %v4752
        %4801 = vst [vmem:[%s231 + $0x58] sm:$0xf] %v4753
        %4802 = vst [vmem:[%s231 + $0x5c] sm:$0xf] %v4754
        %s4803 = sand.u32 %s139, 1
        %s4804 = scalar_lea.sflag [#allocation4], %s4803
        %s4805 = sand.u32 %s139, 1
        %s4806 = smul.addr %s4805, 96
        %s4807 = scalar_lea.vmem [#allocation3], %s4806
        // Predicated region
        $region37: #{tpu_custom_call.1} parent=35 // pred_check
          %p4808 = pneg %p149
        $region38: #{tpu_custom_call.1} parent=35 // pred_check_branch
          %4810 = sbr.rel (%p4808) target = $region40
        $region39: #{tpu_custom_call.1} parent=35 // pred_region
          %s4811 = smul.u32 3, %s22
          %s4813 = ssub.s32 1536, 1536
          %4814 = vsyncadd %s4804, %s4813
          %s4815 = smul.addr %s4811, 8
          %s4816 = sadd.s32 %s23, %s4815
          %s4817 = smul.addr %s4816, 64
          %s4818 = scalar_lea.hbm %s4, %s4817
          %s4819 = sshll.u32 %s4807, 4
          %s4820 = int_to_ptr.vmem [resolvable:$true] %s4819
          %4825 = dma.vmem_to_hbm [thread:$0]  %s4820, 1536, %s4818, %s4804, 64, 64, 4
        $region40: #{tpu_custom_call.1} parent=35 // pred_fallthru
          _
      $region36: #{tpu_custom_call.1} parent=5 // pred_fallthru
        _
      %p4826 = scmp.le.s32.totalorder 2, %s13
      // Predicated region
      $region41: #{tpu_custom_call.1} parent=5 // pred_check
        %p4827 = pneg %p4826
      $region42: #{tpu_custom_call.1} parent=5 // pred_check_branch
        %4829 = sbr.rel (%p4827) target = $region44
      $region43: #{tpu_custom_call.1} parent=5 // pred_region
        %s4830 = ssub.s32 %s13, 2
        // Predicated region
        $region45: #{tpu_custom_call.1} parent=43 // pred_check
          %p4831 = pneg %p155
        $region46: #{tpu_custom_call.1} parent=43 // pred_check_branch
          %4833 = sbr.rel (%p4831) target = $region48
        $region47: #{tpu_custom_call.1} parent=43 // pred_region
          %s4834 = sand.u32 %s140, 1
          %s4835 = scalar_lea.sflag [#allocation4], %s4834
          %s4836 = sand.u32 %s140, 1
          %s4837 = smul.addr %s4836, 96
          %s4838 = scalar_lea.vmem [#allocation3], %s4837
          %4839 = dma.done %s4835, 1536
        $region48: #{tpu_custom_call.1} parent=43 // pred_fallthru
          _
      $region44: #{tpu_custom_call.1} parent=5 // pred_fallthru
        _
    $region6: #{tpu_custom_call.1} parent=1 // loop_footer
      %s17 = sadd.s32 1, %s13
    $region7: #{tpu_custom_call.1} parent=1 // loop_footer_branch
      %12 = sbr.rel target = $region3
    $region8: #{tpu_custom_call.1} parent=1 // loop_exit
      _
    %4840 = vsyncpa [#allocation4], 1
    %s4841 = scalar_lea.sflag [#allocation4], 1
    %4842 = vsyncpa %s4841, 1

</llo_original>
